<compile_context>
chip_gen: v7x
topology: tpu7x:2x2x1
jax: 0.10.0
libtpu: 0.0.40
codegen_flags: <defaults>
</compile_context>

<pallas_src>
import functools

import jax
import jax.numpy as jnp
from jax import lax
from jax.experimental import pallas as pl
from jax.experimental.pallas import tpu as pltpu


_TM_MAX = 256      # max M (row) tile for the gridded fused matmul
_M_ALIGN = 16      # row alignment (covers bf16 sublane packing)


def _round_up(x, m):
    return (x + m - 1) // m * m


# ----------------------------------------------------------------------------
# Pallas kernel: fused  Y = affine( LeakyReLU( X @ W[sel] + b[sel] ) )
#   aff_ref rows: 0 = bias, 1 = scale, 2 = shift (packed into one operand)
#   sel_ref (scalar prefetch) is consumed by the index_maps only.
# ----------------------------------------------------------------------------
def _fused_matmul_kernel(sel_ref, x_ref, w_ref, aff_ref, o_ref, *,
                         apply_leaky, neg_slope):
    del sel_ref
    aff = aff_ref[0]                                               # [8, N] f32
    y = jnp.dot(x_ref[...], w_ref[0], preferred_element_type=jnp.float32)
    y = y + aff[0:1, :]
    if apply_leaky:
        # LeakyReLU with slope < 1  ==  max(y, slope*y)  (cheaper than where)
        y = jnp.maximum(y, neg_slope * y)
    o_ref[...] = (y * aff[1:2, :] + aff[2:3, :]).astype(o_ref.dtype)


def fused_matmul_grouped(xs, ws, biases, scales=None, shifts=None, *,
                         apply_leaky=False, neg_slope=0.2,
                         compute_dtype=jnp.bfloat16):
    """Per-segment  affine(LeakyReLU(xs[s] @ ws[s] + b[s]))  in ONE pallas_call.

    All segments must share K and N.  Rows of every segment are padded with zero
    rows to a multiple of the tile `tm` and concatenated; a scalar-prefetched
    per-tile weight id selects the [K, N] weight block and packed bias/scale/shift
    for each row tile, so heterogeneous-weight branches share one grid.
    """
    n = len(xs)
    K = xs[0].shape[1]
    N = ws[0].shape[1]
    for x, w in zip(xs, ws):
        assert x.shape[1] == K and w.shape == (K, N), (x.shape, w.shape)
    if scales is None:
        scales = [None] * n
    if shifts is None:
        shifts = [None] * n

    # Row tile: big enough to amortize per-step overhead, never bigger than needed.
    max_m = max(x.shape[0] for x in xs)
    tm = min(_TM_MAX, _round_up(max(max_m, _M_ALIGN), _M_ALIGN))

    xs_pad, tile_sel, offsets = [], [], []
    total = 0
    for s, x in enumerate(xs):
        m = x.shape[0]
        m_pad = _round_up(max(m, 1), tm)
        xc = x.astype(compute_dtype)
        if m_pad != m:
            xc = jnp.pad(xc, ((0, m_pad - m), (0, 0)))
        xs_pad.append(xc)
        offsets.append(total)
        total += m_pad
        tile_sel += [s] * (m_pad // tm)
    x_all = xs_pad[0] if n == 1 else jnp.concatenate(xs_pad, axis=0)
    sel = jnp.asarray(tile_sel, jnp.int32)                          # per-tile weight id

    w_all = jnp.stack([w.astype(compute_dtype) for w in ws], axis=0)   # [n, K, N]
    aff_rows = []
    for s in range(n):
        b = biases[s].astype(jnp.float32).reshape(N)
        sc = (jnp.ones((N,), jnp.float32) if scales[s] is None
              else scales[s].astype(jnp.float32).reshape(N))
        sh = (jnp.zeros((N,), jnp.float32) if shifts[s] is None
              else shifts[s].astype(jnp.float32).reshape(N))
        aff_rows.append(jnp.concatenate(
            [b[None], sc[None], sh[None], jnp.zeros((5, N), jnp.float32)], axis=0))
    aff = jnp.stack(aff_rows, axis=0)                                  # [n, 8, N]

    grid_m = total // tm

    # Explicit VMEM budget (double-buffered x/out tiles + weight + affine blocks),
    # clamped so it is safe on v5e (16 MiB default) through v7x (64 MiB physical).
    itm = jnp.dtype(compute_dtype).itemsize
    bytes_needed = (2 * tm * K * itm        # double-buffered x tiles
                    + 2 * K * N * itm       # double-buffered weight block
                    + 2 * 8 * N * 4         # double-buffered affine block
                    + 2 * tm * N * 4)       # double-buffered f32 out tiles
    vmem_limit = int(min(max(4 * bytes_needed, 16 << 20), 32 << 20))

    kern = functools.partial(_fused_matmul_kernel,
                             apply_leaky=apply_leaky, neg_slope=neg_slope)
    out = pl.pallas_call(
        kern,
        out_shape=jax.ShapeDtypeStruct((total, N), jnp.float32),
        grid_spec=pltpu.PrefetchScalarGridSpec(
            num_scalar_prefetch=1,
            grid=(grid_m,),
            in_specs=[
                pl.BlockSpec((tm, K), lambda i, sel_ref: (i, 0)),          # rows
                pl.BlockSpec((1, K, N), lambda i, sel_ref: (sel_ref[i], 0, 0)),  # W sel
                pl.BlockSpec((1, 8, N), lambda i, sel_ref: (sel_ref[i], 0, 0)),  # aff sel
            ],
            out_specs=pl.BlockSpec((tm, N), lambda i, sel_ref: (i, 0)),
        ),
        compiler_params=pltpu.CompilerParams(
            dimension_semantics=("parallel",),
            vmem_limit_bytes=vmem_limit),
    )(sel, x_all, w_all, aff)
    return [out[offsets[s]:offsets[s] + xs[s].shape[0]] for s in range(n)]


def fused_matmul(x, w, bias, scale=None, shift=None, *, apply_leaky=False,
                 neg_slope=0.2):
    return fused_matmul_grouped(
        [x], [w], [bias],
        None if scale is None else [scale],
        None if shift is None else [shift],
        apply_leaky=apply_leaky, neg_slope=neg_slope)[0]


# ----------------------------------------------------------------------------
# Conv2d(kernel=3x3, stride=2, pad=1) block = im2col (XLA glue) + fused kernel
# ----------------------------------------------------------------------------
def _im2col_stride2(x_nhwc):
    B, H, W, Cin = x_nhwc.shape
    Ho = (H - 1) // 2 + 1
    Wo = (W - 1) // 2 + 1
    xp = jnp.pad(x_nhwc, ((0, 0), (1, 1), (1, 1), (0, 0)))
    cols = []
    for kh in range(3):
        for kw in range(3):
            sl = lax.slice(
                xp,
                (0, kh, kw, 0),
                (B, kh + 2 * (Ho - 1) + 1, kw + 2 * (Wo - 1) + 1, Cin),
                (1, 2, 2, 1))
            cols.append(sl)                       # [B, Ho, Wo, Cin]
    p = jnp.stack(cols, axis=3)                   # [B, Ho, Wo, 9, Cin]
    return p.reshape(B * Ho * Wo, 9 * Cin), (B, Ho, Wo)


def conv_block_multi(xs_nhwc, blocks):
    """One Conv2d(3x3,s2,p1) -> LeakyReLU(0.2) -> [Dropout2d=id] -> BN-affine per
    input, all inputs in ONE pallas_call (per-tile weight selection)."""
    patches, shapes = [], []
    for x in xs_nhwc:
        # Cast before im2col so the 9x-duplicated patch buffer lives in bf16.
        p, shp = _im2col_stride2(x.astype(jnp.bfloat16))
        patches.append(p)
        shapes.append(shp)
    ws = [blk["w"].reshape(-1, blk["w"].shape[-1]) for blk in blocks]
    outs = fused_matmul_grouped(
        patches, ws,
        [blk["b"] for blk in blocks],
        [blk["scale"] for blk in blocks],
        [blk["shift"] for blk in blocks],
        apply_leaky=True)
    return [o.reshape(B, Ho, Wo, blk["w"].shape[-1])
            for o, (B, Ho, Wo), blk in zip(outs, shapes, blocks)]


# ----------------------------------------------------------------------------
# Parameter initialization (deterministic, synthetic)
# ----------------------------------------------------------------------------
def _branch_params(key, c_in, hidden, bn_eps):
    """3 conv blocks; first two carry BatchNorm (folded to scale/shift), third not."""
    blocks = []
    cin = c_in
    for i in range(3):
        key, kw, kb, kg, kbe, krm, krv = jax.random.split(key, 7)
        w = 0.1 * jax.random.normal(kw, (3, 3, cin, hidden), jnp.float32)
        b = 0.1 * jax.random.normal(kb, (hidden,), jnp.float32)
        if i < 2:
            gamma = 1.0 + 0.1 * jax.random.normal(kg, (hidden,), jnp.float32)
            beta = 0.1 * jax.random.normal(kbe, (hidden,), jnp.float32)
            rmean = 0.1 * jax.random.normal(krm, (hidden,), jnp.float32)
            rvar = jnp.abs(1.0 + 0.1 * jax.random.normal(krv, (hidden,),
                                                         jnp.float32))
            scale = gamma / jnp.sqrt(rvar + bn_eps)
            shift = beta - rmean * scale
        else:
            scale = jnp.ones((hidden,), jnp.float32)
            shift = jnp.zeros((hidden,), jnp.float32)
        blocks.append(dict(w=w, b=b, scale=scale, shift=shift))
        cin = hidden
    return blocks


def init_params(key, time_length, freq_length, c_in, hidden):
    bn_eps = 0.8  # nn.BatchNorm2d(hidden_size, 0.8) -> eps = 0.8
    (k_un, k_emo, k_spk, k_ew, k_eb, k_sw, k_sb,
     k_eaw, k_eab, k_saw, k_sab) = jax.random.split(key, 11)

    ds0 = time_length // 8
    ds1a = (freq_length + 7) // 8
    ds1b = (freq_length + 128 + 7) // 8
    feat_u = hidden * ds0 * ds1a            # flattened size of the uncond branch
    feat_c = hidden * ds0 * ds1b            # flattened size of a conditioned branch

    # emo_layer / spk_layer (128x128) merged into one block-diagonal 256x256 matmul.
    w_emo_l = 0.1 * jax.random.normal(k_ew, (128, 128), jnp.float32)
    b_emo_l = 0.1 * jax.random.normal(k_eb, (128,), jnp.float32)
    w_spk_l = 0.1 * jax.random.normal(k_sw, (128, 128), jnp.float32)
    b_spk_l = 0.1 * jax.random.normal(k_sb, (128,), jnp.float32)
    w_cond = jnp.zeros((256, 256), jnp.float32)
    w_cond = w_cond.at[:128, :128].set(w_emo_l).at[128:, 128:].set(w_spk_l)
    b_cond = jnp.concatenate([b_emo_l, b_spk_l])

    # emo_adv / spk_adv (Linear(feat_u+feat_c, 1) each) merged into one [K, 2] matmul
    # over [x_f | x_emo_f | x_spk_f]; the shared x_f block feeds both columns.
    w_emo_adv = 0.1 * jax.random.normal(k_eaw, (feat_u + feat_c, 1), jnp.float32)
    b_emo_adv = 0.1 * jax.random.normal(k_eab, (1,), jnp.float32)
    w_spk_adv = 0.1 * jax.random.normal(k_saw, (feat_u + feat_c, 1), jnp.float32)
    b_spk_adv = 0.1 * jax.random.normal(k_sab, (1,), jnp.float32)
    k_all = feat_u + 2 * feat_c
    w_adv = jnp.zeros((k_all, 2), jnp.float32)
    w_adv = w_adv.at[:feat_u, 0].set(w_emo_adv[:feat_u, 0])
    w_adv = w_adv.at[feat_u:feat_u + feat_c, 0].set(w_emo_adv[feat_u:, 0])
    w_adv = w_adv.at[:feat_u, 1].set(w_spk_adv[:feat_u, 0])
    w_adv = w_adv.at[feat_u + feat_c:, 1].set(w_spk_adv[feat_u:, 0])
    b_adv = jnp.concatenate([b_emo_adv, b_spk_adv])

    return dict(
        uncond=_branch_params(k_un, c_in, hidden, bn_eps),
        emo_cond=_branch_params(k_emo, c_in, hidden, bn_eps),
        spk_cond=_branch_params(k_spk, c_in, hidden, bn_eps),  # unused (source quirk)
        cond_linear=dict(w=w_cond, b=b_cond),
        adv=dict(w=w_adv, b=b_adv),
    )


# ----------------------------------------------------------------------------
# Forward pass (mirrors SingleWindowDisc.forward, eval mode)
# ----------------------------------------------------------------------------
def single_window_disc_forward(params, x, emo_cond_embed, spk_cond_embed):
    """x: [B, C=1, T, n_bins]; *_cond_embed: [B, 1, 128] -> ([B,1], [B,1])."""
    B, C, T, _ = x.shape
    H = 128

    # Both 128x128 condition linears in ONE pallas_call (block-diagonal weights).
    emb = jnp.concatenate([emo_cond_embed.reshape(B, H),
                           spk_cond_embed.reshape(B, H)], axis=1)      # [B, 256]
    cond = fused_matmul(emb, params["cond_linear"]["w"],
                        params["cond_linear"]["b"])                    # [B, 256]
    emo = cond[:, :H]
    spk = cond[:, H:]

    emo_exp = jnp.broadcast_to(emo[:, None, None, :], (B, C, T, H))
    spk_exp = jnp.broadcast_to(spk[:, None, None, :], (B, C, T, H))
    x_emo_cond = jnp.concatenate([x, emo_exp], axis=-1)                # [B,1,T,F+128]
    x_spk_cond = jnp.concatenate([x, spk_exp], axis=-1)

    # The reference runs BOTH conditioned inputs through emo_cond_model, so they
    # share weights -> batch them and run the conv branch once on [2B, ...].
    x_cond = jnp.concatenate([x_emo_cond, x_spk_cond], axis=0)         # [2B,1,T,F+128]

    # Run the uncond branch and the (batched) conditioned branch together:
    # each conv layer of both branches shares ONE pallas_call (weight-id select).
    hu = jnp.transpose(x, (0, 2, 3, 1))                                # NCHW -> NHWC
    hc = jnp.transpose(x_cond, (0, 2, 3, 1))
    for blk_u, blk_c in zip(params["uncond"], params["emo_cond"]):
        hu, hc = conv_block_multi([hu, hc], [blk_u, blk_c])

    x_out = jnp.transpose(hu, (0, 3, 1, 2))                            # back to NCHW
    x_cond_out = jnp.transpose(hc, (0, 3, 1, 2))
    x_f = x_out.reshape(B, -1)                  # PyTorch .view(B,-1) on NCHW
    cond_f = x_cond_out.reshape(2 * B, -1)
    x_emo_f = cond_f[:B]
    x_spk_f = cond_f[B:]

    # Both adv heads in ONE pallas_call (N=2), sharing the x_f block of the input.
    x_all = jnp.concatenate([x_f, x_emo_f, x_spk_f], axis=1)
    validity = fused_matmul(x_all, params["adv"]["w"], params["adv"]["b"])  # [B, 2]
    emo_validity = validity[:, 0:1]
    spk_validity = validity[:, 1:2]
    return emo_validity, spk_validity


# ----------------------------------------------------------------------------
if __name__ == "__main__":
    # Small shapes consistent with the module: time_length=8, freq_length=16,
    # c_in=1, hidden_size=32 (condition embedding dim is fixed at 128).
    B, C_IN, T, F = 2, 1, 8, 16
    HIDDEN = 32

    key = jax.random.PRNGKey(0)
    kx, ke, ks, kp = jax.random.split(key, 4)
    x = jax.random.normal(kx, (B, C_IN, T, F), jnp.float32)
    emo_cond_embed = jax.random.normal(ke, (B, 1, 128), jnp.float32)
    spk_cond_embed = jax.random.normal(ks, (B, 1, 128), jnp.float32)

    params = init_params(kp, time_length=T, freq_length=F,
                         c_in=C_IN, hidden=HIDDEN)

    fwd = jax.jit(single_window_disc_forward)
    emo_validity, spk_validity = fwd(params, x, emo_cond_embed, spk_cond_embed)
    jax.block_until_ready((emo_validity, spk_validity))

    assert emo_validity.shape == (B, 1) and spk_validity.shape == (B, 1)
    assert jnp.all(jnp.isfinite(emo_validity)) and jnp.all(jnp.isfinite(spk_validity))
    print("KERNEL_OK")
</pallas_src>

<mosaic_0001>
module attributes {stable_mosaic.version = 11 : i64} {
  func.func @_fused_matmul_kernel(%arg0: i32, %arg1: memref<1xi32, #tpu.memory_space<smem>>, %arg2: memref<16x256xbf16, #tpu.memory_space<vmem>>, %arg3: memref<1x256x256xbf16, #tpu.memory_space<vmem>>, %arg4: memref<1x8x256xf32, #tpu.memory_space<vmem>>, %arg5: memref<16x256xf32, #tpu.memory_space<vmem>>) attributes {dimension_semantics = [#tpu.dimension_semantics<parallel>], iteration_bounds = array<i64: 1>, scalar_prefetch = 1 : i64, scratch_operands = 0 : i64, tpu.core_type = #tpu.core_type<tc>, window_params = [{transform_indices = @transform_0, window_bounds = array<i64: 16, 256>}, {transform_indices = @transform_1, window_bounds = array<i64: 1, 256, 256>}, {transform_indices = @transform_2, window_bounds = array<i64: 1, 8, 256>}, {transform_indices = @transform_3, window_bounds = array<i64: 16, 256>}]} {
    %c0 = arith.constant 0 : index
    %c0_0 = arith.constant 0 : index
    %c0_1 = arith.constant 0 : index
    %0 = vector.load %arg4[%c0, %c0_0, %c0_1] : memref<1x8x256xf32, #tpu.memory_space<vmem>>, vector<1x8x256xf32>
    %1 = vector.shape_cast %0 : vector<1x8x256xf32> to vector<8x256xf32>
    %c0_2 = arith.constant 0 : index
    %c0_3 = arith.constant 0 : index
    %2 = vector.load %arg2[%c0_2, %c0_3] : memref<16x256xbf16, #tpu.memory_space<vmem>>, vector<16x256xbf16>
    %c0_4 = arith.constant 0 : index
    %c0_5 = arith.constant 0 : index
    %c0_6 = arith.constant 0 : index
    %3 = vector.load %arg3[%c0_4, %c0_5, %c0_6] : memref<1x256x256xbf16, #tpu.memory_space<vmem>>, vector<1x256x256xbf16>
    %4 = vector.shape_cast %3 : vector<1x256x256xbf16> to vector<256x256xbf16>
    %cst = arith.constant dense<0.000000e+00> : vector<16x256xf32>
    %5 = tpu.matmul %2, %4, %cst {dimension_numbers = #tpu.dot_dimension_numbers<[1], [0], [0], [1], [0, 0, 1, 1], [], []>} : vector<16x256xbf16>, vector<256x256xbf16>, vector<16x256xf32> -> vector<16x256xf32>
    %6 = vector.extract_strided_slice %1 {offsets = [0, 0], sizes = [1, 256], strides = [1, 1]} : vector<8x256xf32> to vector<1x256xf32>
    %7 = vector.broadcast %6 : vector<1x256xf32> to vector<16x256xf32>
    %8 = arith.addf %5, %7 : vector<16x256xf32>
    %9 = vector.extract_strided_slice %1 {offsets = [1, 0], sizes = [1, 256], strides = [1, 1]} : vector<8x256xf32> to vector<1x256xf32>
    %10 = vector.broadcast %9 : vector<1x256xf32> to vector<16x256xf32>
    %11 = arith.mulf %8, %10 : vector<16x256xf32>
    %12 = vector.extract_strided_slice %1 {offsets = [2, 0], sizes = [1, 256], strides = [1, 1]} : vector<8x256xf32> to vector<1x256xf32>
    %13 = vector.broadcast %12 : vector<1x256xf32> to vector<16x256xf32>
    %14 = arith.addf %11, %13 : vector<16x256xf32>
    %c0_7 = arith.constant 0 : index
    %c0_8 = arith.constant 0 : index
    %15 = vector.load %arg5[%c0_7, %c0_8] : memref<16x256xf32, #tpu.memory_space<vmem>>, vector<16x256xf32>
    tpu.vector_store %arg5[%c0_7, %c0_8], %14 {strides = array<i32>} : memref<16x256xf32, #tpu.memory_space<vmem>>, vector<16x256xf32>,
    return
  }
  func.func @transform_0(%arg0: i32, %arg1: memref<1xi32, #tpu.memory_space<smem>>) -> (i32, i32) {
    %c0_i32 = arith.constant 0 : i32
    %c0_i32_0 = arith.constant 0 : i32
    return %arg0, %c0_i32 : i32, i32
  }
  func.func @transform_1(%arg0: i32, %arg1: memref<1xi32, #tpu.memory_space<smem>>) -> (i32, i32, i32) {
    %0 = arith.index_cast %arg0 : i32 to index
    %1 = memref.load %arg1[%0] : memref<1xi32, #tpu.memory_space<smem>>
    %c0_i32 = arith.constant 0 : i32
    %c0_i32_0 = arith.constant 0 : i32
    %c0_i32_1 = arith.constant 0 : i32
    return %1, %c0_i32, %c0_i32_0 : i32, i32, i32
  }
  func.func @transform_2(%arg0: i32, %arg1: memref<1xi32, #tpu.memory_space<smem>>) -> (i32, i32, i32) {
    %0 = arith.index_cast %arg0 : i32 to index
    %1 = memref.load %arg1[%0] : memref<1xi32, #tpu.memory_space<smem>>
    %c0_i32 = arith.constant 0 : i32
    %c0_i32_0 = arith.constant 0 : i32
    %c0_i32_1 = arith.constant 0 : i32
    return %1, %c0_i32, %c0_i32_0 : i32, i32, i32
  }
  func.func @transform_3(%arg0: i32, %arg1: memref<1xi32, #tpu.memory_space<smem>>) -> (i32, i32) {
    %c0_i32 = arith.constant 0 : i32
    %c0_i32_0 = arith.constant 0 : i32
    return %arg0, %c0_i32 : i32, i32
  }
}

module attributes {stable_mosaic.version = 11 : i64} {
  func.func @_fused_matmul_kernel(%arg0: i32, %arg1: memref<6xi32, #tpu.memory_space<smem>>, %arg2: memref<256x9xbf16, #tpu.memory_space<vmem>>, %arg3: memref<1x9x32xbf16, #tpu.memory_space<vmem>>, %arg4: memref<1x8x32xf32, #tpu.memory_space<vmem>>, %arg5: memref<256x32xf32, #tpu.memory_space<vmem>>) attributes {dimension_semantics = [#tpu.dimension_semantics<parallel>], iteration_bounds = array<i64: 6>, scalar_prefetch = 1 : i64, scratch_operands = 0 : i64, tpu.core_type = #tpu.core_type<tc>, window_params = [{transform_indices = @transform_0, window_bounds = array<i64: 256, 9>}, {transform_indices = @transform_1, window_bounds = array<i64: 1, 9, 32>}, {transform_indices = @transform_2, window_bounds = array<i64: 1, 8, 32>}, {transform_indices = @transform_3, window_bounds = array<i64: 256, 32>}]} {
    %c0 = arith.constant 0 : index
    %c0_0 = arith.constant 0 : index
    %c0_1 = arith.constant 0 : index
    %0 = vector.load %arg4[%c0, %c0_0, %c0_1] : memref<1x8x32xf32, #tpu.memory_space<vmem>>, vector<1x8x32xf32>
    %1 = vector.shape_cast %0 : vector<1x8x32xf32> to vector<8x32xf32>
    %c0_2 = arith.constant 0 : index
    %c0_3 = arith.constant 0 : index
    %2 = vector.load %arg2[%c0_2, %c0_3] : memref<256x9xbf16, #tpu.memory_space<vmem>>, vector<256x9xbf16>
    %c0_4 = arith.constant 0 : index
    %c0_5 = arith.constant 0 : index
    %c0_6 = arith.constant 0 : index
    %3 = vector.load %arg3[%c0_4, %c0_5, %c0_6] : memref<1x9x32xbf16, #tpu.memory_space<vmem>>, vector<1x9x32xbf16>
    %4 = vector.shape_cast %3 : vector<1x9x32xbf16> to vector<9x32xbf16>
    %cst = arith.constant dense<0.000000e+00> : vector<256x32xf32>
    %5 = tpu.matmul %2, %4, %cst {dimension_numbers = #tpu.dot_dimension_numbers<[1], [0], [0], [1], [0, 0, 1, 1], [], []>} : vector<256x9xbf16>, vector<9x32xbf16>, vector<256x32xf32> -> vector<256x32xf32>
    %6 = vector.extract_strided_slice %1 {offsets = [0, 0], sizes = [1, 32], strides = [1, 1]} : vector<8x32xf32> to vector<1x32xf32>
    %7 = vector.broadcast %6 : vector<1x32xf32> to vector<256x32xf32>
    %8 = arith.addf %5, %7 : vector<256x32xf32>
    %cst_7 = arith.constant 2.000000e-01 : f32
    %9 = vector.broadcast %cst_7 : f32 to vector<256x32xf32>
    %10 = arith.mulf %9, %8 : vector<256x32xf32>
    %11 = arith.maximumf %8, %10 : vector<256x32xf32>
    %12 = vector.extract_strided_slice %1 {offsets = [1, 0], sizes = [1, 32], strides = [1, 1]} : vector<8x32xf32> to vector<1x32xf32>
    %13 = vector.broadcast %12 : vector<1x32xf32> to vector<256x32xf32>
    %14 = arith.mulf %11, %13 : vector<256x32xf32>
    %15 = vector.extract_strided_slice %1 {offsets = [2, 0], sizes = [1, 32], strides = [1, 1]} : vector<8x32xf32> to vector<1x32xf32>
    %16 = vector.broadcast %15 : vector<1x32xf32> to vector<256x32xf32>
    %17 = arith.addf %14, %16 : vector<256x32xf32>
    %c0_8 = arith.constant 0 : index
    %c0_9 = arith.constant 0 : index
    %18 = vector.load %arg5[%c0_8, %c0_9] : memref<256x32xf32, #tpu.memory_space<vmem>>, vector<256x32xf32>
    tpu.vector_store %arg5[%c0_8, %c0_9], %17 {strides = array<i32>} : memref<256x32xf32, #tpu.memory_space<vmem>>, vector<256x32xf32>,
    return
  }
  func.func @transform_0(%arg0: i32, %arg1: memref<6xi32, #tpu.memory_space<smem>>) -> (i32, i32) {
    %c0_i32 = arith.constant 0 : i32
    %c0_i32_0 = arith.constant 0 : i32
    return %arg0, %c0_i32 : i32, i32
  }
  func.func @transform_1(%arg0: i32, %arg1: memref<6xi32, #tpu.memory_space<smem>>) -> (i32, i32, i32) {
    %0 = arith.index_cast %arg0 : i32 to index
    %1 = memref.load %arg1[%0] : memref<6xi32, #tpu.memory_space<smem>>
    %c0_i32 = arith.constant 0 : i32
    %c0_i32_0 = arith.constant 0 : i32
    %c0_i32_1 = arith.constant 0 : i32
    return %1, %c0_i32, %c0_i32_0 : i32, i32, i32
  }
  func.func @transform_2(%arg0: i32, %arg1: memref<6xi32, #tpu.memory_space<smem>>) -> (i32, i32, i32) {
    %0 = arith.index_cast %arg0 : i32 to index
    %1 = memref.load %arg1[%0] : memref<6xi32, #tpu.memory_space<smem>>
    %c0_i32 = arith.constant 0 : i32
    %c0_i32_0 = arith.constant 0 : i32
    %c0_i32_1 = arith.constant 0 : i32
    return %1, %c0_i32, %c0_i32_0 : i32, i32, i32
  }
  func.func @transform_3(%arg0: i32, %arg1: memref<6xi32, #tpu.memory_space<smem>>) -> (i32, i32) {
    %c0_i32 = arith.constant 0 : i32
    %c0_i32_0 = arith.constant 0 : i32
    return %arg0, %c0_i32 : i32, i32
  }
}

module attributes {stable_mosaic.version = 11 : i64} {
  func.func @_fused_matmul_kernel(%arg0: i32, %arg1: memref<3xi32, #tpu.memory_space<smem>>, %arg2: memref<256x288xbf16, #tpu.memory_space<vmem>>, %arg3: memref<1x288x32xbf16, #tpu.memory_space<vmem>>, %arg4: memref<1x8x32xf32, #tpu.memory_space<vmem>>, %arg5: memref<256x32xf32, #tpu.memory_space<vmem>>) attributes {dimension_semantics = [#tpu.dimension_semantics<parallel>], iteration_bounds = array<i64: 3>, scalar_prefetch = 1 : i64, scratch_operands = 0 : i64, tpu.core_type = #tpu.core_type<tc>, window_params = [{transform_indices = @transform_0, window_bounds = array<i64: 256, 288>}, {transform_indices = @transform_1, window_bounds = array<i64: 1, 288, 32>}, {transform_indices = @transform_2, window_bounds = array<i64: 1, 8, 32>}, {transform_indices = @transform_3, window_bounds = array<i64: 256, 32>}]} {
    %c0 = arith.constant 0 : index
    %c0_0 = arith.constant 0 : index
    %c0_1 = arith.constant 0 : index
    %0 = vector.load %arg4[%c0, %c0_0, %c0_1] : memref<1x8x32xf32, #tpu.memory_space<vmem>>, vector<1x8x32xf32>
    %1 = vector.shape_cast %0 : vector<1x8x32xf32> to vector<8x32xf32>
    %c0_2 = arith.constant 0 : index
    %c0_3 = arith.constant 0 : index
    %2 = vector.load %arg2[%c0_2, %c0_3] : memref<256x288xbf16, #tpu.memory_space<vmem>>, vector<256x288xbf16>
    %c0_4 = arith.constant 0 : index
    %c0_5 = arith.constant 0 : index
    %c0_6 = arith.constant 0 : index
    %3 = vector.load %arg3[%c0_4, %c0_5, %c0_6] : memref<1x288x32xbf16, #tpu.memory_space<vmem>>, vector<1x288x32xbf16>
    %4 = vector.shape_cast %3 : vector<1x288x32xbf16> to vector<288x32xbf16>
    %cst = arith.constant dense<0.000000e+00> : vector<256x32xf32>
    %5 = tpu.matmul %2, %4, %cst {dimension_numbers = #tpu.dot_dimension_numbers<[1], [0], [0], [1], [0, 0, 1, 1], [], []>} : vector<256x288xbf16>, vector<288x32xbf16>, vector<256x32xf32> -> vector<256x32xf32>
    %6 = vector.extract_strided_slice %1 {offsets = [0, 0], sizes = [1, 32], strides = [1, 1]} : vector<8x32xf32> to vector<1x32xf32>
    %7 = vector.broadcast %6 : vector<1x32xf32> to vector<256x32xf32>
    %8 = arith.addf %5, %7 : vector<256x32xf32>
    %cst_7 = arith.constant 2.000000e-01 : f32
    %9 = vector.broadcast %cst_7 : f32 to vector<256x32xf32>
    %10 = arith.mulf %9, %8 : vector<256x32xf32>
    %11 = arith.maximumf %8, %10 : vector<256x32xf32>
    %12 = vector.extract_strided_slice %1 {offsets = [1, 0], sizes = [1, 32], strides = [1, 1]} : vector<8x32xf32> to vector<1x32xf32>
    %13 = vector.broadcast %12 : vector<1x32xf32> to vector<256x32xf32>
    %14 = arith.mulf %11, %13 : vector<256x32xf32>
    %15 = vector.extract_strided_slice %1 {offsets = [2, 0], sizes = [1, 32], strides = [1, 1]} : vector<8x32xf32> to vector<1x32xf32>
    %16 = vector.broadcast %15 : vector<1x32xf32> to vector<256x32xf32>
    %17 = arith.addf %14, %16 : vector<256x32xf32>
    %c0_8 = arith.constant 0 : index
    %c0_9 = arith.constant 0 : index
    %18 = vector.load %arg5[%c0_8, %c0_9] : memref<256x32xf32, #tpu.memory_space<vmem>>, vector<256x32xf32>
    tpu.vector_store %arg5[%c0_8, %c0_9], %17 {strides = array<i32>} : memref<256x32xf32, #tpu.memory_space<vmem>>, vector<256x32xf32>,
    return
  }
  func.func @transform_0(%arg0: i32, %arg1: memref<3xi32, #tpu.memory_space<smem>>) -> (i32, i32) {
    %c0_i32 = arith.constant 0 : i32
    %c0_i32_0 = arith.constant 0 : i32
    return %arg0, %c0_i32 : i32, i32
  }
  func.func @transform_1(%arg0: i32, %arg1: memref<3xi32, #tpu.memory_space<smem>>) -> (i32, i32, i32) {
    %0 = arith.index_cast %arg0 : i32 to index
    %1 = memref.load %arg1[%0] : memref<3xi32, #tpu.memory_space<smem>>
    %c0_i32 = arith.constant 0 : i32
    %c0_i32_0 = arith.constant 0 : i32
    %c0_i32_1 = arith.constant 0 : i32
    return %1, %c0_i32, %c0_i32_0 : i32, i32, i32
  }
  func.func @transform_2(%arg0: i32, %arg1: memref<3xi32, #tpu.memory_space<smem>>) -> (i32, i32, i32) {
    %0 = arith.index_cast %arg0 : i32 to index
    %1 = memref.load %arg1[%0] : memref<3xi32, #tpu.memory_space<smem>>
    %c0_i32 = arith.constant 0 : i32
    %c0_i32_0 = arith.constant 0 : i32
    %c0_i32_1 = arith.constant 0 : i32
    return %1, %c0_i32, %c0_i32_0 : i32, i32, i32
  }
  func.func @transform_3(%arg0: i32, %arg1: memref<3xi32, #tpu.memory_space<smem>>) -> (i32, i32) {
    %c0_i32 = arith.constant 0 : i32
    %c0_i32_0 = arith.constant 0 : i32
    return %arg0, %c0_i32 : i32, i32
  }
}

module attributes {stable_mosaic.version = 11 : i64} {
  func.func @_fused_matmul_kernel(%arg0: i32, %arg1: memref<2xi32, #tpu.memory_space<smem>>, %arg2: memref<80x288xbf16, #tpu.memory_space<vmem>>, %arg3: memref<1x288x32xbf16, #tpu.memory_space<vmem>>, %arg4: memref<1x8x32xf32, #tpu.memory_space<vmem>>, %arg5: memref<80x32xf32, #tpu.memory_space<vmem>>) attributes {dimension_semantics = [#tpu.dimension_semantics<parallel>], iteration_bounds = array<i64: 2>, scalar_prefetch = 1 : i64, scratch_operands = 0 : i64, tpu.core_type = #tpu.core_type<tc>, window_params = [{transform_indices = @transform_0, window_bounds = array<i64: 80, 288>}, {transform_indices = @transform_1, window_bounds = array<i64: 1, 288, 32>}, {transform_indices = @transform_2, window_bounds = array<i64: 1, 8, 32>}, {transform_indices = @transform_3, window_bounds = array<i64: 80, 32>}]} {
    %c0 = arith.constant 0 : index
    %c0_0 = arith.constant 0 : index
    %c0_1 = arith.constant 0 : index
    %0 = vector.load %arg4[%c0, %c0_0, %c0_1] : memref<1x8x32xf32, #tpu.memory_space<vmem>>, vector<1x8x32xf32>
    %1 = vector.shape_cast %0 : vector<1x8x32xf32> to vector<8x32xf32>
    %c0_2 = arith.constant 0 : index
    %c0_3 = arith.constant 0 : index
    %2 = vector.load %arg2[%c0_2, %c0_3] : memref<80x288xbf16, #tpu.memory_space<vmem>>, vector<80x288xbf16>
    %c0_4 = arith.constant 0 : index
    %c0_5 = arith.constant 0 : index
    %c0_6 = arith.constant 0 : index
    %3 = vector.load %arg3[%c0_4, %c0_5, %c0_6] : memref<1x288x32xbf16, #tpu.memory_space<vmem>>, vector<1x288x32xbf16>
    %4 = vector.shape_cast %3 : vector<1x288x32xbf16> to vector<288x32xbf16>
    %cst = arith.constant dense<0.000000e+00> : vector<80x32xf32>
    %5 = tpu.matmul %2, %4, %cst {dimension_numbers = #tpu.dot_dimension_numbers<[1], [0], [0], [1], [0, 0, 1, 1], [], []>} : vector<80x288xbf16>, vector<288x32xbf16>, vector<80x32xf32> -> vector<80x32xf32>
    %6 = vector.extract_strided_slice %1 {offsets = [0, 0], sizes = [1, 32], strides = [1, 1]} : vector<8x32xf32> to vector<1x32xf32>
    %7 = vector.broadcast %6 : vector<1x32xf32> to vector<80x32xf32>
    %8 = arith.addf %5, %7 : vector<80x32xf32>
    %cst_7 = arith.constant 2.000000e-01 : f32
    %9 = vector.broadcast %cst_7 : f32 to vector<80x32xf32>
    %10 = arith.mulf %9, %8 : vector<80x32xf32>
    %11 = arith.maximumf %8, %10 : vector<80x32xf32>
    %12 = vector.extract_strided_slice %1 {offsets = [1, 0], sizes = [1, 32], strides = [1, 1]} : vector<8x32xf32> to vector<1x32xf32>
    %13 = vector.broadcast %12 : vector<1x32xf32> to vector<80x32xf32>
    %14 = arith.mulf %11, %13 : vector<80x32xf32>
    %15 = vector.extract_strided_slice %1 {offsets = [2, 0], sizes = [1, 32], strides = [1, 1]} : vector<8x32xf32> to vector<1x32xf32>
    %16 = vector.broadcast %15 : vector<1x32xf32> to vector<80x32xf32>
    %17 = arith.addf %14, %16 : vector<80x32xf32>
    %c0_8 = arith.constant 0 : index
    %c0_9 = arith.constant 0 : index
    %18 = vector.load %arg5[%c0_8, %c0_9] : memref<80x32xf32, #tpu.memory_space<vmem>>, vector<80x32xf32>
    tpu.vector_store %arg5[%c0_8, %c0_9], %17 {strides = array<i32>} : memref<80x32xf32, #tpu.memory_space<vmem>>, vector<80x32xf32>,
    return
  }
  func.func @transform_0(%arg0: i32, %arg1: memref<2xi32, #tpu.memory_space<smem>>) -> (i32, i32) {
    %c0_i32 = arith.constant 0 : i32
    %c0_i32_0 = arith.constant 0 : i32
    return %arg0, %c0_i32 : i32, i32
  }
  func.func @transform_1(%arg0: i32, %arg1: memref<2xi32, #tpu.memory_space<smem>>) -> (i32, i32, i32) {
    %0 = arith.index_cast %arg0 : i32 to index
    %1 = memref.load %arg1[%0] : memref<2xi32, #tpu.memory_space<smem>>
    %c0_i32 = arith.constant 0 : i32
    %c0_i32_0 = arith.constant 0 : i32
    %c0_i32_1 = arith.constant 0 : i32
    return %1, %c0_i32, %c0_i32_0 : i32, i32, i32
  }
  func.func @transform_2(%arg0: i32, %arg1: memref<2xi32, #tpu.memory_space<smem>>) -> (i32, i32, i32) {
    %0 = arith.index_cast %arg0 : i32 to index
    %1 = memref.load %arg1[%0] : memref<2xi32, #tpu.memory_space<smem>>
    %c0_i32 = arith.constant 0 : i32
    %c0_i32_0 = arith.constant 0 : i32
    %c0_i32_1 = arith.constant 0 : i32
    return %1, %c0_i32, %c0_i32_0 : i32, i32, i32
  }
  func.func @transform_3(%arg0: i32, %arg1: memref<2xi32, #tpu.memory_space<smem>>) -> (i32, i32) {
    %c0_i32 = arith.constant 0 : i32
    %c0_i32_0 = arith.constant 0 : i32
    return %arg0, %c0_i32 : i32, i32
  }
}

module attributes {stable_mosaic.version = 11 : i64} {
  func.func @_fused_matmul_kernel(%arg0: i32, %arg1: memref<1xi32, #tpu.memory_space<smem>>, %arg2: memref<16x1216xbf16, #tpu.memory_space<vmem>>, %arg3: memref<1x1216x2xbf16, #tpu.memory_space<vmem>>, %arg4: memref<1x8x2xf32, #tpu.memory_space<vmem>>, %arg5: memref<16x2xf32, #tpu.memory_space<vmem>>) attributes {dimension_semantics = [#tpu.dimension_semantics<parallel>], iteration_bounds = array<i64: 1>, scalar_prefetch = 1 : i64, scratch_operands = 0 : i64, tpu.core_type = #tpu.core_type<tc>, window_params = [{transform_indices = @transform_0, window_bounds = array<i64: 16, 1216>}, {transform_indices = @transform_1, window_bounds = array<i64: 1, 1216, 2>}, {transform_indices = @transform_2, window_bounds = array<i64: 1, 8, 2>}, {transform_indices = @transform_3, window_bounds = array<i64: 16, 2>}]} {
    %c0 = arith.constant 0 : index
    %c0_0 = arith.constant 0 : index
    %c0_1 = arith.constant 0 : index
    %0 = vector.load %arg4[%c0, %c0_0, %c0_1] : memref<1x8x2xf32, #tpu.memory_space<vmem>>, vector<1x8x2xf32>
    %1 = vector.shape_cast %0 : vector<1x8x2xf32> to vector<8x2xf32>
    %c0_2 = arith.constant 0 : index
    %c0_3 = arith.constant 0 : index
    %2 = vector.load %arg2[%c0_2, %c0_3] : memref<16x1216xbf16, #tpu.memory_space<vmem>>, vector<16x1216xbf16>
    %c0_4 = arith.constant 0 : index
    %c0_5 = arith.constant 0 : index
    %c0_6 = arith.constant 0 : index
    %3 = vector.load %arg3[%c0_4, %c0_5, %c0_6] : memref<1x1216x2xbf16, #tpu.memory_space<vmem>>, vector<1x1216x2xbf16>
    %4 = vector.shape_cast %3 : vector<1x1216x2xbf16> to vector<1216x2xbf16>
    %cst = arith.constant dense<0.000000e+00> : vector<16x2xf32>
    %5 = tpu.matmul %2, %4, %cst {dimension_numbers = #tpu.dot_dimension_numbers<[1], [0], [0], [1], [0, 0, 1, 1], [], []>} : vector<16x1216xbf16>, vector<1216x2xbf16>, vector<16x2xf32> -> vector<16x2xf32>
    %6 = vector.extract_strided_slice %1 {offsets = [0, 0], sizes = [1, 2], strides = [1, 1]} : vector<8x2xf32> to vector<1x2xf32>
    %7 = vector.broadcast %6 : vector<1x2xf32> to vector<16x2xf32>
    %8 = arith.addf %5, %7 : vector<16x2xf32>
    %9 = vector.extract_strided_slice %1 {offsets = [1, 0], sizes = [1, 2], strides = [1, 1]} : vector<8x2xf32> to vector<1x2xf32>
    %10 = vector.broadcast %9 : vector<1x2xf32> to vector<16x2xf32>
    %11 = arith.mulf %8, %10 : vector<16x2xf32>
    %12 = vector.extract_strided_slice %1 {offsets = [2, 0], sizes = [1, 2], strides = [1, 1]} : vector<8x2xf32> to vector<1x2xf32>
    %13 = vector.broadcast %12 : vector<1x2xf32> to vector<16x2xf32>
    %14 = arith.addf %11, %13 : vector<16x2xf32>
    %c0_7 = arith.constant 0 : index
    %c0_8 = arith.constant 0 : index
    %15 = vector.load %arg5[%c0_7, %c0_8] : memref<16x2xf32, #tpu.memory_space<vmem>>, vector<16x2xf32>
    tpu.vector_store %arg5[%c0_7, %c0_8], %14 {strides = array<i32>} : memref<16x2xf32, #tpu.memory_space<vmem>>, vector<16x2xf32>,
    return
  }
  func.func @transform_0(%arg0: i32, %arg1: memref<1xi32, #tpu.memory_space<smem>>) -> (i32, i32) {
    %c0_i32 = arith.constant 0 : i32
    %c0_i32_0 = arith.constant 0 : i32
    return %arg0, %c0_i32 : i32, i32
  }
  func.func @transform_1(%arg0: i32, %arg1: memref<1xi32, #tpu.memory_space<smem>>) -> (i32, i32, i32) {
    %0 = arith.index_cast %arg0 : i32 to index
    %1 = memref.load %arg1[%0] : memref<1xi32, #tpu.memory_space<smem>>
    %c0_i32 = arith.constant 0 : i32
    %c0_i32_0 = arith.constant 0 : i32
    %c0_i32_1 = arith.constant 0 : i32
    return %1, %c0_i32, %c0_i32_0 : i32, i32, i32
  }
  func.func @transform_2(%arg0: i32, %arg1: memref<1xi32, #tpu.memory_space<smem>>) -> (i32, i32, i32) {
    %0 = arith.index_cast %arg0 : i32 to index
    %1 = memref.load %arg1[%0] : memref<1xi32, #tpu.memory_space<smem>>
    %c0_i32 = arith.constant 0 : i32
    %c0_i32_0 = arith.constant 0 : i32
    %c0_i32_1 = arith.constant 0 : i32
    return %1, %c0_i32, %c0_i32_0 : i32, i32, i32
  }
  func.func @transform_3(%arg0: i32, %arg1: memref<1xi32, #tpu.memory_space<smem>>) -> (i32, i32) {
    %c0_i32 = arith.constant 0 : i32
    %c0_i32_0 = arith.constant 0 : i32
    return %arg0, %c0_i32 : i32, i32
  }
}

</mosaic_0001>

<llo_original>
// kernel: single_window_disc_forward.5
$region0: #{single_window_disc_forward.5}
  #allocation0 [shape = 'u32[]', space=smem, size = 0x4, offset = 0x4, fixed_abs, tag = 'smem constant byte address 0x4 - core index']
  #allocation1 [shape = 'u32[144,128]{1,0:T(1,128)}', space=vmem, size = 0x12000, scoped, tag = 'internal scratch']
  #allocation2 [shape = 's32[1]{0}', space=sflag, size = 0x4, scoped, tag = 'scoped memory for single_window_disc_forward.5']
  #allocation3 [shape = 's32[1]{0:T(128)S(6)}', space=smem, size = 0x200, scoped, tag = 'prefetched SMEM operand 0']
  %s0 = inlined_call_operand.<no memory space> [shape: s32[1], index: 0, kind: input, shape index: {}]
  %s1 = inlined_call_operand.vmem [shape: bf16[16,256], index: 1, kind: input, shape index: {}]
  %s2 = inlined_call_operand.vmem [shape: bf16[1,256,256], index: 2, kind: input, shape index: {}]
  %s3 = inlined_call_operand.vmem [shape: f32[1,8,256], index: 3, kind: input, shape index: {}]
  %s4 = inlined_call_operand.vmem [shape: f32[16,256], index: 4, kind: output, shape index: {}]
  %s5 = sld [smem:[#allocation0]]
  $region22: #{single_window_disc_forward.5} parent=0
    _
  %s7 = ssub.s32 1, %s5
  %s8 = scalar_select 0, %s7, %s5
  %9 = sst [smem:[#allocation3]] %s0
  // Predicated region
  $region2: #{single_window_disc_forward.5} parent=0 // pred_check
    _
  $region3: #{single_window_disc_forward.5} parent=0 // pred_check_branch
    %11 = sbr.rel (0) target = $region5
  $region4: #{single_window_disc_forward.5} parent=0 // pred_region
    _
  $region5: #{single_window_disc_forward.5} parent=0 // pred_fallthru
    _
  // Predicated region
  $region6: #{single_window_disc_forward.5} parent=0 // pred_check
    _
  $region7: #{single_window_disc_forward.5} parent=0 // pred_check_branch
    %13 = sbr.rel (0) target = $region9
  $region8: #{single_window_disc_forward.5} parent=0 // pred_region
    %s14 = sld [smem:[#allocation3]]
    %p15 = scmp.lt.s32.totalorder %s14, 0
    %s16 = scalar_select %p15, %s14, 0
    %s17 = smul.addr %s16, 64
    %s18 = smul.addr %s17, 4
    %s19 = scalar_lea.vmem %s2, %s18
    %s20 = sld [smem:[#allocation3]]
  $region9: #{single_window_disc_forward.5} parent=0 // pred_fallthru
    _
  // Predicated region
  $region10: #{single_window_disc_forward.5} parent=0 // pred_check
    _
  $region11: #{single_window_disc_forward.5} parent=0 // pred_check_branch
    %22 = sbr.rel (0) target = $region13
  $region12: #{single_window_disc_forward.5} parent=0 // pred_region
    %s23 = sld [smem:[#allocation3]]
    %p24 = scmp.lt.s32.totalorder %s23, 0
    %s25 = scalar_select %p24, %s23, 0
    %s26 = smul.addr %s25, 2
    %s27 = smul.addr %s26, 8
    %s28 = scalar_lea.vmem %s3, %s27
    %s29 = sld [smem:[#allocation3]]
  $region13: #{single_window_disc_forward.5} parent=0 // pred_fallthru
    _
  %s30 = sld [smem:[#allocation3]]
  %p31 = scmp.lt.s32.totalorder %s30, 0
  %s32 = scalar_select %p31, %s30, 0
  %s33 = smul.addr %s32, 64
  %s34 = smul.addr %s33, 4
  %s35 = scalar_lea.vmem %s2, %s34
  %s36 = sld [smem:[#allocation3]]
  %p37 = scmp.lt.s32.totalorder %s36, 0
  %s38 = scalar_select %p37, %s36, 0
  %s39 = smul.addr %s38, 2
  %s40 = smul.addr %s39, 8
  %s41 = scalar_lea.vmem %s3, %s40
  %s42 = sld [smem:[#allocation3]]
  %p43 = scmp.lt.s32.totalorder %s42, 0
  %s44 = scalar_select %p43, %s42, 0
  %s45 = smul.addr %s44, 64
  %s46 = smul.addr %s45, 4
  %s47 = scalar_lea.vmem %s2, %s46
  %s48 = sld [smem:[#allocation3]]
  %s49 = sld [smem:[#allocation3]]
  %p50 = scmp.lt.s32.totalorder %s49, 0
  %s51 = scalar_select %p50, %s49, 0
  %s52 = smul.addr %s51, 2
  %s53 = smul.addr %s52, 8
  %s54 = scalar_lea.vmem %s3, %s53
  %s55 = sld [smem:[#allocation3]]
  %v56 = vld [vmem:[%s54] sm:$0xff]
  %v57 = vld [vmem:[%s54 + $0x8] sm:$0xff]
  %v58 = vld [vmem:[%s1] sm:$0xff]
  %v59 = vld [vmem:[%s1 + $0x8] sm:$0xff]
  %v60 = vld [vmem:[%s47] sm:$0xff]
  %v61 = vld [vmem:[%s47 + $0x8] sm:$0xff]
  %v62 = vld [vmem:[%s47 + $0x10] sm:$0xff]
  %v63 = vld [vmem:[%s47 + $0x18] sm:$0xff]
  %v64 = vld [vmem:[%s47 + $0x20] sm:$0xff]
  %v65 = vld [vmem:[%s47 + $0x28] sm:$0xff]
  %v66 = vld [vmem:[%s47 + $0x30] sm:$0xff]
  %v67 = vld [vmem:[%s47 + $0x38] sm:$0xff]
  %v68 = vld [vmem:[%s47 + $0x40] sm:$0xff]
  %v69 = vld [vmem:[%s47 + $0x48] sm:$0xff]
  %v70 = vld [vmem:[%s47 + $0x50] sm:$0xff]
  %v71 = vld [vmem:[%s47 + $0x58] sm:$0xff]
  %v72 = vld [vmem:[%s47 + $0x60] sm:$0xff]
  %v73 = vld [vmem:[%s47 + $0x68] sm:$0xff]
  %v74 = vld [vmem:[%s47 + $0x70] sm:$0xff]
  %v75 = vld [vmem:[%s47 + $0x78] sm:$0xff]
  %v76 = vld [vmem:[%s47 + $0x80] sm:$0xff]
  %v77 = vld [vmem:[%s47 + $0x88] sm:$0xff]
  %v78 = vld [vmem:[%s47 + $0x90] sm:$0xff]
  %v79 = vld [vmem:[%s47 + $0x98] sm:$0xff]
  %v80 = vld [vmem:[%s47 + $0xa0] sm:$0xff]
  %v81 = vld [vmem:[%s47 + $0xa8] sm:$0xff]
  %v82 = vld [vmem:[%s47 + $0xb0] sm:$0xff]
  %v83 = vld [vmem:[%s47 + $0xb8] sm:$0xff]
  %v84 = vld [vmem:[%s47 + $0xc0] sm:$0xff]
  %v85 = vld [vmem:[%s47 + $0xc8] sm:$0xff]
  %v86 = vld [vmem:[%s47 + $0xd0] sm:$0xff]
  %v87 = vld [vmem:[%s47 + $0xd8] sm:$0xff]
  %v88 = vld [vmem:[%s47 + $0xe0] sm:$0xff]
  %v89 = vld [vmem:[%s47 + $0xe8] sm:$0xff]
  %v90 = vld [vmem:[%s47 + $0xf0] sm:$0xff]
  %v91 = vld [vmem:[%s47 + $0xf8] sm:$0xff]
  %v92 = vlaneseq
  %v93 = vshrl.u32 %v92, 7
  %v94 = vsub.s32 0, %v93
  %v95 = vrot.slane %v56, %v94
  %v96 = vlaneseq
  %v97 = vshrl.u32 %v96, 7
  %v98 = vsub.s32 0, %v97
  %v99 = vrot.slane %v57, %v98
  %v102 = vunpack.c.l.b16 %v58
  %v103 = vunpack.c.h.b16 %v58
  %v104 = vunpack.c.l.b16 %v59
  %v105 = vunpack.c.h.b16 %v59
  %v106 = vpack.c.b16 %v104, %v102
  %v107 = vpack.c.b16 %v105, %v103
  %v142 = vunpack.c.l.b16 %v60
  %v143 = vunpack.c.h.b16 %v60
  %v144 = vunpack.c.l.b16 %v61
  %v145 = vunpack.c.h.b16 %v61
  %v146 = vunpack.c.l.b16 %v62
  %v147 = vunpack.c.h.b16 %v62
  %v148 = vunpack.c.l.b16 %v63
  %v149 = vunpack.c.h.b16 %v63
  %v150 = vunpack.c.l.b16 %v64
  %v151 = vunpack.c.h.b16 %v64
  %v152 = vunpack.c.l.b16 %v65
  %v153 = vunpack.c.h.b16 %v65
  %v154 = vunpack.c.l.b16 %v66
  %v155 = vunpack.c.h.b16 %v66
  %v156 = vunpack.c.l.b16 %v67
  %v157 = vunpack.c.h.b16 %v67
  %v158 = vunpack.c.l.b16 %v68
  %v159 = vunpack.c.h.b16 %v68
  %v160 = vunpack.c.l.b16 %v69
  %v161 = vunpack.c.h.b16 %v69
  %v162 = vunpack.c.l.b16 %v70
  %v163 = vunpack.c.h.b16 %v70
  %v164 = vunpack.c.l.b16 %v71
  %v165 = vunpack.c.h.b16 %v71
  %v166 = vunpack.c.l.b16 %v72
  %v167 = vunpack.c.h.b16 %v72
  %v168 = vunpack.c.l.b16 %v73
  %v169 = vunpack.c.h.b16 %v73
  %v170 = vunpack.c.l.b16 %v74
  %v171 = vunpack.c.h.b16 %v74
  %v172 = vunpack.c.l.b16 %v75
  %v173 = vunpack.c.h.b16 %v75
  %v174 = vunpack.c.l.b16 %v76
  %v175 = vunpack.c.h.b16 %v76
  %v176 = vunpack.c.l.b16 %v77
  %v177 = vunpack.c.h.b16 %v77
  %v178 = vunpack.c.l.b16 %v78
  %v179 = vunpack.c.h.b16 %v78
  %v180 = vunpack.c.l.b16 %v79
  %v181 = vunpack.c.h.b16 %v79
  %v182 = vunpack.c.l.b16 %v80
  %v183 = vunpack.c.h.b16 %v80
  %v184 = vunpack.c.l.b16 %v81
  %v185 = vunpack.c.h.b16 %v81
  %v186 = vunpack.c.l.b16 %v82
  %v187 = vunpack.c.h.b16 %v82
  %v188 = vunpack.c.l.b16 %v83
  %v189 = vunpack.c.h.b16 %v83
  %v190 = vunpack.c.l.b16 %v84
  %v191 = vunpack.c.h.b16 %v84
  %v192 = vunpack.c.l.b16 %v85
  %v193 = vunpack.c.h.b16 %v85
  %v194 = vunpack.c.l.b16 %v86
  %v195 = vunpack.c.h.b16 %v86
  %v196 = vunpack.c.l.b16 %v87
  %v197 = vunpack.c.h.b16 %v87
  %v198 = vunpack.c.l.b16 %v88
  %v199 = vunpack.c.h.b16 %v88
  %v200 = vunpack.c.l.b16 %v89
  %v201 = vunpack.c.h.b16 %v89
  %v202 = vunpack.c.l.b16 %v90
  %v203 = vunpack.c.h.b16 %v90
  %v204 = vunpack.c.l.b16 %v91
  %v205 = vunpack.c.h.b16 %v91
  %v206 = vpack.c.b16 %v144, %v142
  %v207 = vpack.c.b16 %v145, %v143
  %v208 = vpack.c.b16 %v148, %v146
  %v209 = vpack.c.b16 %v149, %v147
  %v210 = vpack.c.b16 %v152, %v150
  %v211 = vpack.c.b16 %v153, %v151
  %v212 = vpack.c.b16 %v156, %v154
  %v213 = vpack.c.b16 %v157, %v155
  %v214 = vpack.c.b16 %v160, %v158
  %v215 = vpack.c.b16 %v161, %v159
  %v216 = vpack.c.b16 %v164, %v162
  %v217 = vpack.c.b16 %v165, %v163
  %v218 = vpack.c.b16 %v168, %v166
  %v219 = vpack.c.b16 %v169, %v167
  %v220 = vpack.c.b16 %v172, %v170
  %v221 = vpack.c.b16 %v173, %v171
  %v222 = vpack.c.b16 %v176, %v174
  %v223 = vpack.c.b16 %v177, %v175
  %v224 = vpack.c.b16 %v180, %v178
  %v225 = vpack.c.b16 %v181, %v179
  %v226 = vpack.c.b16 %v184, %v182
  %v227 = vpack.c.b16 %v185, %v183
  %v228 = vpack.c.b16 %v188, %v186
  %v229 = vpack.c.b16 %v189, %v187
  %v230 = vpack.c.b16 %v192, %v190
  %v231 = vpack.c.b16 %v193, %v191
  %v232 = vpack.c.b16 %v196, %v194
  %v233 = vpack.c.b16 %v197, %v195
  %v234 = vpack.c.b16 %v200, %v198
  %v235 = vpack.c.b16 %v201, %v199
  %v236 = vpack.c.b16 %v204, %v202
  %v237 = vpack.c.b16 %v205, %v203
  %270 = vmatprep.subr.bf16.mxu0 %v207
  %271 = vmatpush1.bf16.msra.mxu0 %v206
  %272 = vmatprep.subr.bf16.mxu0 %v209
  %273 = vmatpush1.bf16.msra.mxu0 %v208
  %274 = vmatprep.subr.bf16.mxu0 %v211
  %275 = vmatpush1.bf16.msra.mxu0 %v210
  %276 = vmatprep.subr.bf16.mxu0 %v213
  %277 = vmatpush1.bf16.msra.mxu0 %v212
  %278 = vmatprep.subr.bf16.mxu0 %v215
  %279 = vmatpush1.bf16.msra.mxu0 %v214
  %280 = vmatprep.subr.bf16.mxu0 %v217
  %281 = vmatpush1.bf16.msra.mxu0 %v216
  %282 = vmatprep.subr.bf16.mxu0 %v219
  %283 = vmatpush1.bf16.msra.mxu0 %v218
  %284 = vmatprep.subr.bf16.mxu0 %v221
  %285 = vmatpush1.bf16.msra.mxu0 %v220
  %286 = vmatprep.subr.bf16.mxu0 %v223
  %287 = vmatpush1.bf16.msra.mxu0 %v222
  %288 = vmatprep.subr.bf16.mxu0 %v225
  %289 = vmatpush1.bf16.msra.mxu0 %v224
  %290 = vmatprep.subr.bf16.mxu0 %v227
  %291 = vmatpush1.bf16.msra.mxu0 %v226
  %292 = vmatprep.subr.bf16.mxu0 %v229
  %293 = vmatpush1.bf16.msra.mxu0 %v228
  %294 = vmatprep.subr.bf16.mxu0 %v231
  %295 = vmatpush1.bf16.msra.mxu0 %v230
  %296 = vmatprep.subr.bf16.mxu0 %v233
  %297 = vmatpush1.bf16.msra.mxu0 %v232
  %298 = vmatprep.subr.bf16.mxu0 %v235
  %299 = vmatpush1.bf16.msra.mxu0 %v234
  %300 = vmatprep.subr.bf16.mxu0 %v237
  %301 = vmatpush1.bf16.msra.mxu0 %v236
  %302 = vmatprep.mubr.bf16.mxu0 %v107
  %303 = vmatmul.mubr.bf16.gmra.mrb[0].mxu0 %v106
  %v304 = vpop.f32.mrb[0].mxu0
  %v305 = vadd.f32 %v95, %v304
  %v306 = vpop.f32.mrb[0].mxu0
  %v307 = vadd.f32 %v99, %v306
  %v308 = vpop.f32.mrb[0].mxu0
  %v309 = vadd.f32 %v95, %v308
  %v310 = vpop.f32.mrb[0].mxu0
  %v311 = vadd.f32 %v99, %v310
  %312 = vdwg.mxu0
  %v313 = vlaneseq
  %v314 = vshrl.u32 %v313, 7
  %v315 = vsub.s32 1, %v314
  %v316 = vrot.slane %v56, %v315
  %v317 = vlaneseq
  %v318 = vshrl.u32 %v317, 7
  %v319 = vsub.s32 1, %v318
  %v320 = vrot.slane %v57, %v319
  %v321 = vmul.f32 %v305, %v316
  %v322 = vmul.f32 %v307, %v320
  %v323 = vmul.f32 %v309, %v316
  %v324 = vmul.f32 %v311, %v320
  %v325 = vlaneseq
  %v326 = vshrl.u32 %v325, 7
  %v327 = vsub.s32 2, %v326
  %v328 = vrot.slane %v56, %v327
  %v329 = vlaneseq
  %v330 = vshrl.u32 %v329, 7
  %v331 = vsub.s32 2, %v330
  %v332 = vrot.slane %v57, %v331
  %v333 = vadd.f32 %v321, %v328
  %v334 = vadd.f32 %v322, %v332
  %v335 = vadd.f32 %v323, %v328
  %v336 = vadd.f32 %v324, %v332
  %337 = vst [vmem:[%s4] sm:$0xff] %v333
  %338 = vst [vmem:[%s4 + $0x8] sm:$0xff] %v334
  %339 = vst [vmem:[%s4 + $0x10] sm:$0xff] %v335
  %340 = vst [vmem:[%s4 + $0x18] sm:$0xff] %v336
  // Predicated region
  $region14: #{single_window_disc_forward.5} parent=0 // pred_check
    _
  $region15: #{single_window_disc_forward.5} parent=0 // pred_check_branch
    %342 = sbr.rel (0) target = $region17
  $region16: #{single_window_disc_forward.5} parent=0 // pred_region
    _
  $region17: #{single_window_disc_forward.5} parent=0 // pred_fallthru
    _
  // Predicated region
  $region18: #{single_window_disc_forward.5} parent=0 // pred_check
    _
  $region19: #{single_window_disc_forward.5} parent=0 // pred_check_branch
    %344 = sbr.rel (0) target = $region21
  $region20: #{single_window_disc_forward.5} parent=0 // pred_region
    _
  $region21: #{single_window_disc_forward.5} parent=0 // pred_fallthru
    _

// kernel: single_window_disc_forward.6
$region0: #{single_window_disc_forward.6}
  #allocation0 [shape = 'u32[]', space=smem, size = 0x4, offset = 0x4, fixed_abs, tag = 'smem constant byte address 0x4 - core index']
  #allocation1 [shape = 'u32[144,128]{1,0:T(1,128)}', space=vmem, size = 0x12000, scoped, tag = 'internal scratch']
  #allocation2 [shape = 's32[1]{0}', space=sflag, size = 0x4, scoped, tag = 'scoped memory for single_window_disc_forward.6']
  #allocation3 [shape = 'u8[512]{0}', space=smem, size = 0x200, scoped, tag = 'prefetched SMEM operand 0']
  %s0 = inlined_call_operand.vmem [shape: s32[6], index: 0, kind: input, shape index: {}]
  %s1 = inlined_call_operand.vmem [shape: bf16[1536,9], index: 1, kind: input, shape index: {}]
  %s2 = inlined_call_operand.vmem [shape: bf16[2,9,32], index: 2, kind: input, shape index: {}]
  %s3 = inlined_call_operand.vmem [shape: f32[2,8,32], index: 3, kind: input, shape index: {}]
  %s4 = inlined_call_operand.vmem [shape: f32[1536,32], index: 4, kind: output, shape index: {}]
  %s5 = sld [smem:[#allocation0]]
  $region45: #{single_window_disc_forward.6} parent=0
    _
  %s7 = ssub.s32 1, %s5
  %s8 = scalar_select 0, %s7, %s5
  %s9 = sshll.u32 %s0, 4
  %s10 = int_to_ptr.vmem [resolvable:$true] %s9
  %12 = dma.vmem_to_smem %s10, 16, [#allocation3], [#allocation2]
  %13 = dma.done [#allocation2], 16
  %14 = sfence
  loop: start=0, step=1, limit=8
  $region2: #{single_window_disc_forward.6} parent=0 // loop_pre_header
    _
  $region3: #{single_window_disc_forward.6} parent=0 // loop_header
    %s16 = sphi 0, %s20
    %p17 = scmp.ge.s32.totalorder %s16, 8
    %s26 = sphi 0, %s28
    %s29 = sphi 0, %s26
    %s30 = sphi 0, %s29
    %s46 = sphi 0, %s30
    %s54 = sphi 0, %s56
    %s57 = sphi 0, %s54
    %s58 = sphi 0, %s57
    %s74 = sphi 0, %s58
    %s82 = sphi 0, %s84
    %s85 = sphi 0, %s82
    %s86 = sphi 0, %s85
    %s102 = sphi 0, %s86
    %s108 = sphi 0, %s110
    %s111 = sphi 0, %s108
    %s112 = sphi 0, %s111
    %s128 = sphi 0, %s112
  $region4: #{single_window_disc_forward.6} parent=0 // loop_header_branch
    %19 = sbr.rel (%p17) target = $region8
  $region5: #{single_window_disc_forward.6} parent=0 // loop_body
    %s21 = ssub.s32 %s16, 1
    %s22 = ssub.s32 %s16, 2
    %s23 = sadd.s32 %s16, 1
    %s24 = ssub.s32 %s16, %s23
    %p25 = scmp.eq.s32.totalorder %s24, 0
    %s27 = sadd.s32 %s26, 1
    %s28 = scalar_select %p25, %s26, %s27
    %p31 = pneg %p25
    %p32 = scmp.eq.s32.totalorder %s16, 5
    %p33 = por %p31, %p32
    %p34 = scmp.ne.s32.totalorder %s26, %s29
    %p35 = scmp.eq.s32.totalorder %s16, 0
    %p36 = por %p34, %p35
    %p37 = scmp.ne.s32.totalorder %s26, %s29
    %p38 = scmp.eq.s32.totalorder %s21, 5
    %p39 = por %p37, %p38
    %p40 = scmp.ne.s32.totalorder %s29, %s30
    %p41 = scmp.eq.s32.totalorder %s21, 0
    %p42 = por %p40, %p41
    %p43 = scmp.ne.s32.totalorder %s29, %s30
    %p44 = scmp.eq.s32.totalorder %s22, 5
    %p45 = por %p43, %p44
    %p47 = scmp.ne.s32.totalorder %s30, %s46
    %p48 = scmp.eq.s32.totalorder %s22, 0
    %p49 = por %p47, %p48
    %s50 = sld [smem:[#allocation3 + %s16]]
    %s51 = sld [smem:[#allocation3 + %s23]]
    %s52 = ssub.s32 %s50, %s51
    %p53 = scmp.eq.s32.totalorder %s52, 0
    %s55 = sadd.s32 %s54, 1
    %s56 = scalar_select %p53, %s54, %s55
    %p59 = pneg %p53
    %p60 = scmp.eq.s32.totalorder %s16, 5
    %p61 = por %p59, %p60
    %p62 = scmp.ne.s32.totalorder %s54, %s57
    %p63 = scmp.eq.s32.totalorder %s16, 0
    %p64 = por %p62, %p63
    %p65 = scmp.ne.s32.totalorder %s54, %s57
    %p66 = scmp.eq.s32.totalorder %s21, 5
    %p67 = por %p65, %p66
    %p68 = scmp.ne.s32.totalorder %s57, %s58
    %p69 = scmp.eq.s32.totalorder %s21, 0
    %p70 = por %p68, %p69
    %p71 = scmp.ne.s32.totalorder %s57, %s58
    %p72 = scmp.eq.s32.totalorder %s22, 5
    %p73 = por %p71, %p72
    %p75 = scmp.ne.s32.totalorder %s58, %s74
    %p76 = scmp.eq.s32.totalorder %s22, 0
    %p77 = por %p75, %p76
    %s78 = sld [smem:[#allocation3 + %s16]]
    %s79 = sld [smem:[#allocation3 + %s23]]
    %s80 = ssub.s32 %s78, %s79
    %p81 = scmp.eq.s32.totalorder %s80, 0
    %s83 = sadd.s32 %s82, 1
    %s84 = scalar_select %p81, %s82, %s83
    %p87 = pneg %p81
    %p88 = scmp.eq.s32.totalorder %s16, 5
    %p89 = por %p87, %p88
    %p90 = scmp.ne.s32.totalorder %s82, %s85
    %p91 = scmp.eq.s32.totalorder %s16, 0
    %p92 = por %p90, %p91
    %p93 = scmp.ne.s32.totalorder %s82, %s85
    %p94 = scmp.eq.s32.totalorder %s21, 5
    %p95 = por %p93, %p94
    %p96 = scmp.ne.s32.totalorder %s85, %s86
    %p97 = scmp.eq.s32.totalorder %s21, 0
    %p98 = por %p96, %p97
    %p99 = scmp.ne.s32.totalorder %s85, %s86
    %p100 = scmp.eq.s32.totalorder %s22, 5
    %p101 = por %p99, %p100
    %p103 = scmp.ne.s32.totalorder %s86, %s102
    %p104 = scmp.eq.s32.totalorder %s22, 0
    %p105 = por %p103, %p104
    %s106 = ssub.s32 %s16, %s23
    %p107 = scmp.eq.s32.totalorder %s106, 0
    %s109 = sadd.s32 %s108, 1
    %s110 = scalar_select %p107, %s108, %s109
    %p113 = pneg %p107
    %p114 = scmp.eq.s32.totalorder %s16, 5
    %p115 = por %p113, %p114
    %p116 = scmp.ne.s32.totalorder %s108, %s111
    %p117 = scmp.eq.s32.totalorder %s16, 0
    %p118 = por %p116, %p117
    %p119 = scmp.ne.s32.totalorder %s108, %s111
    %p120 = scmp.eq.s32.totalorder %s21, 5
    %p121 = por %p119, %p120
    %p122 = scmp.ne.s32.totalorder %s111, %s112
    %p123 = scmp.eq.s32.totalorder %s21, 0
    %p124 = por %p122, %p123
    %p125 = scmp.ne.s32.totalorder %s111, %s112
    %p126 = scmp.eq.s32.totalorder %s22, 5
    %p127 = por %p125, %p126
    %p129 = scmp.ne.s32.totalorder %s112, %s128
    %p130 = scmp.eq.s32.totalorder %s22, 0
    %p131 = por %p129, %p130
    %p132 = scmp.le.s32.totalorder 1, %s16
    %p133 = scmp.lt.s32.totalorder %s16, 7
    %p134 = pnand %p132, %p133
    %p135 = pneg %p134
    // Predicated region
    $region9: #{single_window_disc_forward.6} parent=5 // pred_check
      _
    $region10: #{single_window_disc_forward.6} parent=5 // pred_check_branch
      %137 = sbr.rel (%p134) target = $region12
    $region11: #{single_window_disc_forward.6} parent=5 // pred_region
      %s138 = ssub.s32 %s16, 1
    $region12: #{single_window_disc_forward.6} parent=5 // pred_fallthru
      _
    %p139 = scmp.lt.s32.totalorder %s16, 6
    // Predicated region
    $region13: #{single_window_disc_forward.6} parent=5 // pred_check
      %p140 = pneg %p139
    $region14: #{single_window_disc_forward.6} parent=5 // pred_check_branch
      %142 = sbr.rel (%p140) target = $region16
    $region15: #{single_window_disc_forward.6} parent=5 // pred_region
      // Predicated region
      $region17: #{single_window_disc_forward.6} parent=15 // pred_check
        %p143 = pneg %p36
      $region18: #{single_window_disc_forward.6} parent=15 // pred_check_branch
        %145 = sbr.rel (%p143) target = $region20
      $region19: #{single_window_disc_forward.6} parent=15 // pred_region
        %s146 = smul.u32 32, %s16
        %p147 = scmp.lt.s32.totalorder %s146, 191
        %s148 = scalar_select %p147, %s146, 191
        %s149 = smul.addr %s148, 4
        %s150 = scalar_lea.vmem %s1, %s149
        %s151 = smul.u32 32, %s16
      $region20: #{single_window_disc_forward.6} parent=15 // pred_fallthru
        _
      // Predicated region
      $region21: #{single_window_disc_forward.6} parent=15 // pred_check
        %p152 = pneg %p64
      $region22: #{single_window_disc_forward.6} parent=15 // pred_check_branch
        %154 = sbr.rel (%p152) target = $region24
      $region23: #{single_window_disc_forward.6} parent=15 // pred_region
        %s155 = sld [smem:[#allocation3 + %s16]]
        %p156 = scmp.lt.s32.totalorder %s155, 1
        %s157 = scalar_select %p156, %s155, 1
        %s158 = smul.addr %s157, 2
        %s159 = smul.addr %s158, 4
        %s160 = scalar_lea.vmem %s2, %s159
        %s161 = sld [smem:[#allocation3 + %s16]]
      $region24: #{single_window_disc_forward.6} parent=15 // pred_fallthru
        _
      // Predicated region
      $region25: #{single_window_disc_forward.6} parent=15 // pred_check
        %p162 = pneg %p92
      $region26: #{single_window_disc_forward.6} parent=15 // pred_check_branch
        %164 = sbr.rel (%p162) target = $region28
      $region27: #{single_window_disc_forward.6} parent=15 // pred_region
        %s165 = sld [smem:[#allocation3 + %s16]]
        %p166 = scmp.lt.s32.totalorder %s165, 1
        %s167 = scalar_select %p166, %s165, 1
        %s168 = smul.addr %s167, 8
        %s169 = scalar_lea.vmem %s3, %s168
        %s170 = sld [smem:[#allocation3 + %s16]]
      $region28: #{single_window_disc_forward.6} parent=15 // pred_fallthru
        _
    $region16: #{single_window_disc_forward.6} parent=5 // pred_fallthru
      _
    %p171 = scmp.le.s32.totalorder 1, %s16
    %p172 = scmp.lt.s32.totalorder %s16, 7
    %p173 = pnand %p171, %p172
    %p174 = pneg %p173
    // Predicated region
    $region29: #{single_window_disc_forward.6} parent=5 // pred_check
      _
    $region30: #{single_window_disc_forward.6} parent=5 // pred_check_branch
      %176 = sbr.rel (%p173) target = $region32
    $region31: #{single_window_disc_forward.6} parent=5 // pred_region
      %s177 = ssub.s32 %s16, 1
      %s178 = smul.u32 32, %s21
      %p179 = scmp.lt.s32.totalorder %s178, 191
      %s180 = scalar_select %p179, %s178, 191
      %s181 = smul.addr %s180, 4
      %s182 = scalar_lea.vmem %s1, %s181
      %p183 = pneg %p42
      %p184 = pneg %p39
      %s185 = sld [smem:[#allocation3 + %s21]]
      %p186 = scmp.lt.s32.totalorder %s185, 1
      %s187 = scalar_select %p186, %s185, 1
      %s188 = smul.addr %s187, 2
      %s189 = smul.addr %s188, 4
      %s190 = scalar_lea.vmem %s2, %s189
      %p191 = pneg %p70
      %p192 = pneg %p67
      %s193 = sld [smem:[#allocation3 + %s21]]
      %p194 = scmp.lt.s32.totalorder %s193, 1
      %s195 = scalar_select %p194, %s193, 1
      %s196 = smul.addr %s195, 8
      %s197 = scalar_lea.vmem %s3, %s196
      %p198 = pneg %p98
      %p199 = pneg %p95
      %p200 = pneg %p124
      %p201 = pneg %p121
      %s202 = smul.u32 32, %s21
      %p203 = scmp.lt.s32.totalorder %s202, 191
      %s204 = scalar_select %p203, %s202, 191
      %s205 = smul.addr %s204, 8
      %s206 = scalar_lea.vmem %s4, %s205
      %s207 = smul.u32 32, %s21
      %p208 = scmp.lt.s32.totalorder %s207, 191
      %s209 = scalar_select %p208, %s207, 191
      %s210 = smul.addr %s209, 4
      %s211 = scalar_lea.vmem %s1, %s210
      %s212 = smul.u32 32, %s21
      %s213 = sld [smem:[#allocation3 + %s21]]
      %p214 = scmp.lt.s32.totalorder %s213, 1
      %s215 = scalar_select %p214, %s213, 1
      %s216 = smul.addr %s215, 2
      %s217 = smul.addr %s216, 4
      %s218 = scalar_lea.vmem %s2, %s217
      %s219 = sld [smem:[#allocation3 + %s21]]
      %s220 = sld [smem:[#allocation3 + %s21]]
      %p221 = scmp.lt.s32.totalorder %s220, 1
      %s222 = scalar_select %p221, %s220, 1
      %s223 = smul.addr %s222, 8
      %s224 = scalar_lea.vmem %s3, %s223
      %s225 = sld [smem:[#allocation3 + %s21]]
      %s226 = smul.u32 32, %s21
      %p227 = scmp.lt.s32.totalorder %s226, 191
      %s228 = scalar_select %p227, %s226, 191
      %s229 = smul.addr %s228, 8
      %s230 = scalar_lea.vmem %s4, %s229
      %s231 = smul.u32 32, %s21
      %v233 = vld [vmem:[%s224] sm:$0xff]
      %v234 = vld [vmem:[%s211] sm:$0xf]
      %v235 = vld [vmem:[%s211 + $0x4] sm:$0xf]
      %v236 = vld [vmem:[%s211 + $0x8] sm:$0xf]
      %v237 = vld [vmem:[%s211 + $0xc] sm:$0xf]
      %v238 = vld [vmem:[%s211 + $0x10] sm:$0xf]
      %v239 = vld [vmem:[%s211 + $0x14] sm:$0xf]
      %v240 = vld [vmem:[%s211 + $0x18] sm:$0xf]
      %v241 = vld [vmem:[%s211 + $0x1c] sm:$0xf]
      %v242 = vld [vmem:[%s211 + $0x20] sm:$0xf]
      %v243 = vld [vmem:[%s211 + $0x24] sm:$0xf]
      %v244 = vld [vmem:[%s211 + $0x28] sm:$0xf]
      %v245 = vld [vmem:[%s211 + $0x2c] sm:$0xf]
      %v246 = vld [vmem:[%s211 + $0x30] sm:$0xf]
      %v247 = vld [vmem:[%s211 + $0x34] sm:$0xf]
      %v248 = vld [vmem:[%s211 + $0x38] sm:$0xf]
      %v249 = vld [vmem:[%s211 + $0x3c] sm:$0xf]
      %v250 = vld [vmem:[%s211 + $0x40] sm:$0xf]
      %v251 = vld [vmem:[%s211 + $0x44] sm:$0xf]
      %v252 = vld [vmem:[%s211 + $0x48] sm:$0xf]
      %v253 = vld [vmem:[%s211 + $0x4c] sm:$0xf]
      %v254 = vld [vmem:[%s211 + $0x50] sm:$0xf]
      %v255 = vld [vmem:[%s211 + $0x54] sm:$0xf]
      %v256 = vld [vmem:[%s211 + $0x58] sm:$0xf]
      %v257 = vld [vmem:[%s211 + $0x5c] sm:$0xf]
      %v258 = vld [vmem:[%s211 + $0x60] sm:$0xf]
      %v259 = vld [vmem:[%s211 + $0x64] sm:$0xf]
      %v260 = vld [vmem:[%s211 + $0x68] sm:$0xf]
      %v261 = vld [vmem:[%s211 + $0x6c] sm:$0xf]
      %v262 = vld [vmem:[%s211 + $0x70] sm:$0xf]
      %v263 = vld [vmem:[%s211 + $0x74] sm:$0xf]
      %v264 = vld [vmem:[%s211 + $0x78] sm:$0xf]
      %v265 = vld [vmem:[%s211 + $0x7c] sm:$0xf]
      %v266 = vld [vmem:[%s218] sm:$0xf]
      %v267 = vld [vmem:[%s218 + $0x4] sm:$0x1]
      %v268 = vlaneseq
      %v269 = vshrl.u32 %v268, 7
      %v270 = vsub.s32 0, %v269
      %v271 = vrot.slane %v233, %v270
      %v304 = vunpack.c.l.b16 %v234
      %v305 = vunpack.c.l.b16 %v235
      %v306 = vunpack.c.l.b16 %v236
      %v307 = vunpack.c.l.b16 %v237
      %v308 = vunpack.c.l.b16 %v238
      %v309 = vunpack.c.l.b16 %v239
      %v310 = vunpack.c.l.b16 %v240
      %v311 = vunpack.c.l.b16 %v241
      %v312 = vunpack.c.l.b16 %v242
      %v313 = vunpack.c.l.b16 %v243
      %v314 = vunpack.c.l.b16 %v244
      %v315 = vunpack.c.l.b16 %v245
      %v316 = vunpack.c.l.b16 %v246
      %v317 = vunpack.c.l.b16 %v247
      %v318 = vunpack.c.l.b16 %v248
      %v319 = vunpack.c.l.b16 %v249
      %v320 = vunpack.c.l.b16 %v250
      %v321 = vunpack.c.l.b16 %v251
      %v322 = vunpack.c.l.b16 %v252
      %v323 = vunpack.c.l.b16 %v253
      %v324 = vunpack.c.l.b16 %v254
      %v325 = vunpack.c.l.b16 %v255
      %v326 = vunpack.c.l.b16 %v256
      %v327 = vunpack.c.l.b16 %v257
      %v328 = vunpack.c.l.b16 %v258
      %v329 = vunpack.c.l.b16 %v259
      %v330 = vunpack.c.l.b16 %v260
      %v331 = vunpack.c.l.b16 %v261
      %v332 = vunpack.c.l.b16 %v262
      %v333 = vunpack.c.l.b16 %v263
      %v334 = vunpack.c.l.b16 %v264
      %v335 = vunpack.c.l.b16 %v265
      %v336 = vpack.c.b16 %v305, %v304
      %v337 = vpack.c.b16 %v307, %v306
      %v338 = vpack.c.b16 %v309, %v308
      %v339 = vpack.c.b16 %v311, %v310
      %v340 = vpack.c.b16 %v313, %v312
      %v341 = vpack.c.b16 %v315, %v314
      %v342 = vpack.c.b16 %v317, %v316
      %v343 = vpack.c.b16 %v319, %v318
      %v344 = vpack.c.b16 %v321, %v320
      %v345 = vpack.c.b16 %v323, %v322
      %v346 = vpack.c.b16 %v325, %v324
      %v347 = vpack.c.b16 %v327, %v326
      %v348 = vpack.c.b16 %v329, %v328
      %v349 = vpack.c.b16 %v331, %v330
      %v350 = vpack.c.b16 %v333, %v332
      %v351 = vpack.c.b16 %v335, %v334
      %v354 = vunpack.c.l.b16 %v266
      %v355 = vunpack.c.l.b16 %v267
      %v356 = vpack.c.b16 %v355, %v354
      %vm357 = vcmask 72704
      %v359 = vsel %vm357, %v336, 0
      %v362 = vsel %vm357, %v337, 0
      %v365 = vsel %vm357, %v338, 0
      %v368 = vsel %vm357, %v339, 0
      %v371 = vsel %vm357, %v340, 0
      %v374 = vsel %vm357, %v341, 0
      %v377 = vsel %vm357, %v342, 0
      %v380 = vsel %vm357, %v343, 0
      %v383 = vsel %vm357, %v344, 0
      %v386 = vsel %vm357, %v345, 0
      %v389 = vsel %vm357, %v346, 0
      %v392 = vsel %vm357, %v347, 0
      %v395 = vsel %vm357, %v348, 0
      %v398 = vsel %vm357, %v349, 0
      %v401 = vsel %vm357, %v350, 0
      %v404 = vsel %vm357, %v351, 0
      %vm406 = vcmask 1043456
      %vm407 = vcmask 1044480
      %v408 = vsel %vm406, 4294967295, 65535
      %v409 = vsel %vm407, %v408, 0
      %v411 = vand.u32 %v356, %v409
      %413 = vmatprep.subr.bf16.mxu0 0
      %414 = vmatpush1.bf16.msra.mxu0 %v411
      %415 = vmatprep.subr.bf16.mxu0 0
      %416 = vmatpush1.bf16.msra.mxu0 0
      %417 = vmatprep.subr.bf16.mxu0 0
      %418 = vmatpush1.bf16.msra.mxu0 0
      %419 = vmatprep.subr.bf16.mxu0 0
      %420 = vmatpush1.bf16.msra.mxu0 0
      %421 = vmatprep.subr.bf16.mxu0 0
      %422 = vmatpush1.bf16.msra.mxu0 0
      %423 = vmatprep.subr.bf16.mxu0 0
      %424 = vmatpush1.bf16.msra.mxu0 0
      %425 = vmatprep.subr.bf16.mxu0 0
      %426 = vmatpush1.bf16.msra.mxu0 0
      %427 = vmatprep.subr.bf16.mxu0 0
      %428 = vmatpush1.bf16.msra.mxu0 0
      %429 = vmatprep.subr.bf16.mxu0 0
      %430 = vmatpush1.bf16.msra.mxu0 0
      %431 = vmatprep.subr.bf16.mxu0 0
      %432 = vmatpush1.bf16.msra.mxu0 0
      %433 = vmatprep.subr.bf16.mxu0 0
      %434 = vmatpush1.bf16.msra.mxu0 0
      %435 = vmatprep.subr.bf16.mxu0 0
      %436 = vmatpush1.bf16.msra.mxu0 0
      %437 = vmatprep.subr.bf16.mxu0 0
      %438 = vmatpush1.bf16.msra.mxu0 0
      %439 = vmatprep.subr.bf16.mxu0 0
      %440 = vmatpush1.bf16.msra.mxu0 0
      %441 = vmatprep.subr.bf16.mxu0 0
      %442 = vmatpush1.bf16.msra.mxu0 0
      %443 = vmatprep.subr.bf16.mxu0 0
      %444 = vmatpush1.bf16.msra.mxu0 0
      %445 = vmatprep.mubr.bf16.mxu0 0
      %446 = vmatmul.mubr.bf16.gmra.mrb[0].mxu0 %v359
      %v447 = vpop.f32.mrb[0].mxu0
      %v448 = vadd.f32 %v271, %v447
      %v449 = vpop.f32.mrb[0].mxu0
      %v450 = vpop.f32.mrb[0].mxu0
      %v451 = vadd.f32 %v271, %v450
      %v452 = vpop.f32.mrb[0].mxu0
      %453 = vmatprep.mubr.bf16.mxu0 0
      %454 = vmatmul.mubr.bf16.gmra.mrb[0].mxu0 %v362
      %v455 = vpop.f32.mrb[0].mxu0
      %v456 = vadd.f32 %v271, %v455
      %v457 = vpop.f32.mrb[0].mxu0
      %v458 = vpop.f32.mrb[0].mxu0
      %v459 = vadd.f32 %v271, %v458
      %v460 = vpop.f32.mrb[0].mxu0
      %461 = vmatprep.mubr.bf16.mxu0 0
      %462 = vmatmul.mubr.bf16.gmra.mrb[0].mxu0 %v365
      %v463 = vpop.f32.mrb[0].mxu0
      %v464 = vadd.f32 %v271, %v463
      %v465 = vpop.f32.mrb[0].mxu0
      %v466 = vpop.f32.mrb[0].mxu0
      %v467 = vadd.f32 %v271, %v466
      %v468 = vpop.f32.mrb[0].mxu0
      %469 = vmatprep.mubr.bf16.mxu0 0
      %470 = vmatmul.mubr.bf16.gmra.mrb[0].mxu0 %v368
      %v471 = vpop.f32.mrb[0].mxu0
      %v472 = vadd.f32 %v271, %v471
      %v473 = vpop.f32.mrb[0].mxu0
      %v474 = vpop.f32.mrb[0].mxu0
      %v475 = vadd.f32 %v271, %v474
      %v476 = vpop.f32.mrb[0].mxu0
      %477 = vmatprep.mubr.bf16.mxu0 0
      %478 = vmatmul.mubr.bf16.gmra.mrb[0].mxu0 %v371
      %v479 = vpop.f32.mrb[0].mxu0
      %v480 = vadd.f32 %v271, %v479
      %v481 = vpop.f32.mrb[0].mxu0
      %v482 = vpop.f32.mrb[0].mxu0
      %v483 = vadd.f32 %v271, %v482
      %v484 = vpop.f32.mrb[0].mxu0
      %485 = vmatprep.mubr.bf16.mxu0 0
      %486 = vmatmul.mubr.bf16.gmra.mrb[0].mxu0 %v374
      %v487 = vpop.f32.mrb[0].mxu0
      %v488 = vadd.f32 %v271, %v487
      %v489 = vpop.f32.mrb[0].mxu0
      %v490 = vpop.f32.mrb[0].mxu0
      %v491 = vadd.f32 %v271, %v490
      %v492 = vpop.f32.mrb[0].mxu0
      %493 = vmatprep.mubr.bf16.mxu0 0
      %494 = vmatmul.mubr.bf16.gmra.mrb[0].mxu0 %v377
      %v495 = vpop.f32.mrb[0].mxu0
      %v496 = vadd.f32 %v271, %v495
      %v497 = vpop.f32.mrb[0].mxu0
      %v498 = vpop.f32.mrb[0].mxu0
      %v499 = vadd.f32 %v271, %v498
      %v500 = vpop.f32.mrb[0].mxu0
      %501 = vmatprep.mubr.bf16.mxu0 0
      %502 = vmatmul.mubr.bf16.gmra.mrb[0].mxu0 %v380
      %v503 = vpop.f32.mrb[0].mxu0
      %v504 = vadd.f32 %v271, %v503
      %v505 = vpop.f32.mrb[0].mxu0
      %v506 = vpop.f32.mrb[0].mxu0
      %v507 = vadd.f32 %v271, %v506
      %v508 = vpop.f32.mrb[0].mxu0
      %509 = vmatprep.mubr.bf16.mxu0 0
      %510 = vmatmul.mubr.bf16.gmra.mrb[0].mxu0 %v383
      %v511 = vpop.f32.mrb[0].mxu0
      %v512 = vadd.f32 %v271, %v511
      %v513 = vpop.f32.mrb[0].mxu0
      %v514 = vpop.f32.mrb[0].mxu0
      %v515 = vadd.f32 %v271, %v514
      %v516 = vpop.f32.mrb[0].mxu0
      %517 = vmatprep.mubr.bf16.mxu0 0
      %518 = vmatmul.mubr.bf16.gmra.mrb[0].mxu0 %v386
      %v519 = vpop.f32.mrb[0].mxu0
      %v520 = vadd.f32 %v271, %v519
      %v521 = vpop.f32.mrb[0].mxu0
      %v522 = vpop.f32.mrb[0].mxu0
      %v523 = vadd.f32 %v271, %v522
      %v524 = vpop.f32.mrb[0].mxu0
      %525 = vmatprep.mubr.bf16.mxu0 0
      %526 = vmatmul.mubr.bf16.gmra.mrb[0].mxu0 %v389
      %v527 = vpop.f32.mrb[0].mxu0
      %v528 = vadd.f32 %v271, %v527
      %v529 = vpop.f32.mrb[0].mxu0
      %v530 = vpop.f32.mrb[0].mxu0
      %v531 = vadd.f32 %v271, %v530
      %v532 = vpop.f32.mrb[0].mxu0
      %533 = vmatprep.mubr.bf16.mxu0 0
      %534 = vmatmul.mubr.bf16.gmra.mrb[0].mxu0 %v392
      %v535 = vpop.f32.mrb[0].mxu0
      %v536 = vadd.f32 %v271, %v535
      %v537 = vpop.f32.mrb[0].mxu0
      %v538 = vpop.f32.mrb[0].mxu0
      %v539 = vadd.f32 %v271, %v538
      %v540 = vpop.f32.mrb[0].mxu0
      %541 = vmatprep.mubr.bf16.mxu0 0
      %542 = vmatmul.mubr.bf16.gmra.mrb[0].mxu0 %v395
      %v543 = vpop.f32.mrb[0].mxu0
      %v544 = vadd.f32 %v271, %v543
      %v545 = vpop.f32.mrb[0].mxu0
      %v546 = vpop.f32.mrb[0].mxu0
      %v547 = vadd.f32 %v271, %v546
      %v548 = vpop.f32.mrb[0].mxu0
      %549 = vmatprep.mubr.bf16.mxu0 0
      %550 = vmatmul.mubr.bf16.gmra.mrb[0].mxu0 %v398
      %v551 = vpop.f32.mrb[0].mxu0
      %v552 = vadd.f32 %v271, %v551
      %v553 = vpop.f32.mrb[0].mxu0
      %v554 = vpop.f32.mrb[0].mxu0
      %v555 = vadd.f32 %v271, %v554
      %v556 = vpop.f32.mrb[0].mxu0
      %557 = vmatprep.mubr.bf16.mxu0 0
      %558 = vmatmul.mubr.bf16.gmra.mrb[0].mxu0 %v401
      %v559 = vpop.f32.mrb[0].mxu0
      %v560 = vadd.f32 %v271, %v559
      %v561 = vpop.f32.mrb[0].mxu0
      %v562 = vpop.f32.mrb[0].mxu0
      %v563 = vadd.f32 %v271, %v562
      %v564 = vpop.f32.mrb[0].mxu0
      %565 = vmatprep.mubr.bf16.mxu0 0
      %566 = vmatmul.mubr.bf16.gmra.mrb[0].mxu0 %v404
      %v567 = vpop.f32.mrb[0].mxu0
      %v568 = vadd.f32 %v271, %v567
      %v569 = vpop.f32.mrb[0].mxu0
      %v570 = vpop.f32.mrb[0].mxu0
      %v571 = vadd.f32 %v271, %v570
      %v572 = vpop.f32.mrb[0].mxu0
      %573 = vdwg.mxu0
      %v574 = vmul.f32 %v448, 0.2
      %v575 = vmul.f32 %v451, 0.2
      %v576 = vmul.f32 %v456, 0.2
      %v577 = vmul.f32 %v459, 0.2
      %v578 = vmul.f32 %v464, 0.2
      %v579 = vmul.f32 %v467, 0.2
      %v580 = vmul.f32 %v472, 0.2
      %v581 = vmul.f32 %v475, 0.2
      %v582 = vmul.f32 %v480, 0.2
      %v583 = vmul.f32 %v483, 0.2
      %v584 = vmul.f32 %v488, 0.2
      %v585 = vmul.f32 %v491, 0.2
      %v586 = vmul.f32 %v496, 0.2
      %v587 = vmul.f32 %v499, 0.2
      %v588 = vmul.f32 %v504, 0.2
      %v589 = vmul.f32 %v507, 0.2
      %v590 = vmul.f32 %v512, 0.2
      %v591 = vmul.f32 %v515, 0.2
      %v592 = vmul.f32 %v520, 0.2
      %v593 = vmul.f32 %v523, 0.2
      %v594 = vmul.f32 %v528, 0.2
      %v595 = vmul.f32 %v531, 0.2
      %v596 = vmul.f32 %v536, 0.2
      %v597 = vmul.f32 %v539, 0.2
      %v598 = vmul.f32 %v544, 0.2
      %v599 = vmul.f32 %v547, 0.2
      %v600 = vmul.f32 %v552, 0.2
      %v601 = vmul.f32 %v555, 0.2
      %v602 = vmul.f32 %v560, 0.2
      %v603 = vmul.f32 %v563, 0.2
      %v604 = vmul.f32 %v568, 0.2
      %v605 = vmul.f32 %v571, 0.2
      %v606 = vmax.f32 %v448, %v574
      %v607 = vmax.f32 %v451, %v575
      %v608 = vmax.f32 %v456, %v576
      %v609 = vmax.f32 %v459, %v577
      %v610 = vmax.f32 %v464, %v578
      %v611 = vmax.f32 %v467, %v579
      %v612 = vmax.f32 %v472, %v580
      %v613 = vmax.f32 %v475, %v581
      %v614 = vmax.f32 %v480, %v582
      %v615 = vmax.f32 %v483, %v583
      %v616 = vmax.f32 %v488, %v584
      %v617 = vmax.f32 %v491, %v585
      %v618 = vmax.f32 %v496, %v586
      %v619 = vmax.f32 %v499, %v587
      %v620 = vmax.f32 %v504, %v588
      %v621 = vmax.f32 %v507, %v589
      %v622 = vmax.f32 %v512, %v590
      %v623 = vmax.f32 %v515, %v591
      %v624 = vmax.f32 %v520, %v592
      %v625 = vmax.f32 %v523, %v593
      %v626 = vmax.f32 %v528, %v594
      %v627 = vmax.f32 %v531, %v595
      %v628 = vmax.f32 %v536, %v596
      %v629 = vmax.f32 %v539, %v597
      %v630 = vmax.f32 %v544, %v598
      %v631 = vmax.f32 %v547, %v599
      %v632 = vmax.f32 %v552, %v600
      %v633 = vmax.f32 %v555, %v601
      %v634 = vmax.f32 %v560, %v602
      %v635 = vmax.f32 %v563, %v603
      %v636 = vmax.f32 %v568, %v604
      %v637 = vmax.f32 %v571, %v605
      %v638 = vlaneseq
      %v639 = vshrl.u32 %v638, 7
      %v640 = vsub.s32 1, %v639
      %v641 = vrot.slane %v233, %v640
      %v642 = vmul.f32 %v606, %v641
      %v643 = vmul.f32 %v607, %v641
      %v644 = vmul.f32 %v608, %v641
      %v645 = vmul.f32 %v609, %v641
      %v646 = vmul.f32 %v610, %v641
      %v647 = vmul.f32 %v611, %v641
      %v648 = vmul.f32 %v612, %v641
      %v649 = vmul.f32 %v613, %v641
      %v650 = vmul.f32 %v614, %v641
      %v651 = vmul.f32 %v615, %v641
      %v652 = vmul.f32 %v616, %v641
      %v653 = vmul.f32 %v617, %v641
      %v654 = vmul.f32 %v618, %v641
      %v655 = vmul.f32 %v619, %v641
      %v656 = vmul.f32 %v620, %v641
      %v657 = vmul.f32 %v621, %v641
      %v658 = vmul.f32 %v622, %v641
      %v659 = vmul.f32 %v623, %v641
      %v660 = vmul.f32 %v624, %v641
      %v661 = vmul.f32 %v625, %v641
      %v662 = vmul.f32 %v626, %v641
      %v663 = vmul.f32 %v627, %v641
      %v664 = vmul.f32 %v628, %v641
      %v665 = vmul.f32 %v629, %v641
      %v666 = vmul.f32 %v630, %v641
      %v667 = vmul.f32 %v631, %v641
      %v668 = vmul.f32 %v632, %v641
      %v669 = vmul.f32 %v633, %v641
      %v670 = vmul.f32 %v634, %v641
      %v671 = vmul.f32 %v635, %v641
      %v672 = vmul.f32 %v636, %v641
      %v673 = vmul.f32 %v637, %v641
      %v674 = vlaneseq
      %v675 = vshrl.u32 %v674, 7
      %v676 = vsub.s32 2, %v675
      %v677 = vrot.slane %v233, %v676
      %v678 = vadd.f32 %v642, %v677
      %v679 = vadd.f32 %v643, %v677
      %v680 = vadd.f32 %v644, %v677
      %v681 = vadd.f32 %v645, %v677
      %v682 = vadd.f32 %v646, %v677
      %v683 = vadd.f32 %v647, %v677
      %v684 = vadd.f32 %v648, %v677
      %v685 = vadd.f32 %v649, %v677
      %v686 = vadd.f32 %v650, %v677
      %v687 = vadd.f32 %v651, %v677
      %v688 = vadd.f32 %v652, %v677
      %v689 = vadd.f32 %v653, %v677
      %v690 = vadd.f32 %v654, %v677
      %v691 = vadd.f32 %v655, %v677
      %v692 = vadd.f32 %v656, %v677
      %v693 = vadd.f32 %v657, %v677
      %v694 = vadd.f32 %v658, %v677
      %v695 = vadd.f32 %v659, %v677
      %v696 = vadd.f32 %v660, %v677
      %v697 = vadd.f32 %v661, %v677
      %v698 = vadd.f32 %v662, %v677
      %v699 = vadd.f32 %v663, %v677
      %v700 = vadd.f32 %v664, %v677
      %v701 = vadd.f32 %v665, %v677
      %v702 = vadd.f32 %v666, %v677
      %v703 = vadd.f32 %v667, %v677
      %v704 = vadd.f32 %v668, %v677
      %v705 = vadd.f32 %v669, %v677
      %v706 = vadd.f32 %v670, %v677
      %v707 = vadd.f32 %v671, %v677
      %v708 = vadd.f32 %v672, %v677
      %v709 = vadd.f32 %v673, %v677
      %vm710 = vcmask 261120
      %711 = vst.msk [vmem:[%s230] sm:$0xff] %vm710, %v678
      %712 = vst.msk [vmem:[%s230 + $0x8] sm:$0xff] %vm710, %v679
      %713 = vst.msk [vmem:[%s230 + $0x10] sm:$0xff] %vm710, %v680
      %714 = vst.msk [vmem:[%s230 + $0x18] sm:$0xff] %vm710, %v681
      %715 = vst.msk [vmem:[%s230 + $0x20] sm:$0xff] %vm710, %v682
      %716 = vst.msk [vmem:[%s230 + $0x28] sm:$0xff] %vm710, %v683
      %717 = vst.msk [vmem:[%s230 + $0x30] sm:$0xff] %vm710, %v684
      %718 = vst.msk [vmem:[%s230 + $0x38] sm:$0xff] %vm710, %v685
      %719 = vst.msk [vmem:[%s230 + $0x40] sm:$0xff] %vm710, %v686
      %720 = vst.msk [vmem:[%s230 + $0x48] sm:$0xff] %vm710, %v687
      %721 = vst.msk [vmem:[%s230 + $0x50] sm:$0xff] %vm710, %v688
      %722 = vst.msk [vmem:[%s230 + $0x58] sm:$0xff] %vm710, %v689
      %723 = vst.msk [vmem:[%s230 + $0x60] sm:$0xff] %vm710, %v690
      %724 = vst.msk [vmem:[%s230 + $0x68] sm:$0xff] %vm710, %v691
      %725 = vst.msk [vmem:[%s230 + $0x70] sm:$0xff] %vm710, %v692
      %726 = vst.msk [vmem:[%s230 + $0x78] sm:$0xff] %vm710, %v693
      %727 = vst.msk [vmem:[%s230 + $0x80] sm:$0xff] %vm710, %v694
      %728 = vst.msk [vmem:[%s230 + $0x88] sm:$0xff] %vm710, %v695
      %729 = vst.msk [vmem:[%s230 + $0x90] sm:$0xff] %vm710, %v696
      %730 = vst.msk [vmem:[%s230 + $0x98] sm:$0xff] %vm710, %v697
      %731 = vst.msk [vmem:[%s230 + $0xa0] sm:$0xff] %vm710, %v698
      %732 = vst.msk [vmem:[%s230 + $0xa8] sm:$0xff] %vm710, %v699
      %733 = vst.msk [vmem:[%s230 + $0xb0] sm:$0xff] %vm710, %v700
      %734 = vst.msk [vmem:[%s230 + $0xb8] sm:$0xff] %vm710, %v701
      %735 = vst.msk [vmem:[%s230 + $0xc0] sm:$0xff] %vm710, %v702
      %736 = vst.msk [vmem:[%s230 + $0xc8] sm:$0xff] %vm710, %v703
      %737 = vst.msk [vmem:[%s230 + $0xd0] sm:$0xff] %vm710, %v704
      %738 = vst.msk [vmem:[%s230 + $0xd8] sm:$0xff] %vm710, %v705
      %739 = vst.msk [vmem:[%s230 + $0xe0] sm:$0xff] %vm710, %v706
      %740 = vst.msk [vmem:[%s230 + $0xe8] sm:$0xff] %vm710, %v707
      %741 = vst.msk [vmem:[%s230 + $0xf0] sm:$0xff] %vm710, %v708
      %742 = vst.msk [vmem:[%s230 + $0xf8] sm:$0xff] %vm710, %v709
      %s743 = smul.u32 32, %s21
      %p744 = scmp.lt.s32.totalorder %s743, 191
      %s745 = scalar_select %p744, %s743, 191
      %s746 = smul.addr %s745, 8
      %s747 = scalar_lea.vmem %s4, %s746
      // Predicated region
      $region33: #{single_window_disc_forward.6} parent=31 // pred_check
        %p748 = pneg %p121
      $region34: #{single_window_disc_forward.6} parent=31 // pred_check_branch
        %750 = sbr.rel (%p748) target = $region36
      $region35: #{single_window_disc_forward.6} parent=31 // pred_region
        %s751 = smul.u32 32, %s21
      $region36: #{single_window_disc_forward.6} parent=31 // pred_fallthru
        _
    $region32: #{single_window_disc_forward.6} parent=5 // pred_fallthru
      _
    %p752 = scmp.le.s32.totalorder 2, %s16
    // Predicated region
    $region37: #{single_window_disc_forward.6} parent=5 // pred_check
      %p753 = pneg %p752
    $region38: #{single_window_disc_forward.6} parent=5 // pred_check_branch
      %755 = sbr.rel (%p753) target = $region40
    $region39: #{single_window_disc_forward.6} parent=5 // pred_region
      %s756 = ssub.s32 %s16, 2
      // Predicated region
      $region41: #{single_window_disc_forward.6} parent=39 // pred_check
        %p757 = pneg %p127
      $region42: #{single_window_disc_forward.6} parent=39 // pred_check_branch
        %759 = sbr.rel (%p757) target = $region44
      $region43: #{single_window_disc_forward.6} parent=39 // pred_region
        %s760 = smul.u32 32, %s22
        %p761 = scmp.lt.s32.totalorder %s760, 191
        %s762 = scalar_select %p761, %s760, 191
        %s763 = smul.addr %s762, 8
        %s764 = scalar_lea.vmem %s4, %s763
      $region44: #{single_window_disc_forward.6} parent=39 // pred_fallthru
        _
    $region40: #{single_window_disc_forward.6} parent=5 // pred_fallthru
      _
  $region6: #{single_window_disc_forward.6} parent=0 // loop_footer
    %s20 = sadd.s32 1, %s16
  $region7: #{single_window_disc_forward.6} parent=0 // loop_footer_branch
    %15 = sbr.rel target = $region3
  $region8: #{single_window_disc_forward.6} parent=0 // loop_exit
    _

// kernel: single_window_disc_forward.7
$region0: #{single_window_disc_forward.7}
  #allocation0 [shape = 'u32[]', space=smem, size = 0x4, offset = 0x4, fixed_abs, tag = 'smem constant byte address 0x4 - core index']
  #allocation1 [shape = 'u32[144,128]{1,0:T(1,128)}', space=vmem, size = 0x12000, scoped, tag = 'internal scratch']
  #allocation2 [shape = 's32[1]{0}', space=sflag, size = 0x4, scoped, tag = 'scoped memory for single_window_disc_forward.7']
  #allocation3 [shape = 'u8[512]{0}', space=smem, size = 0x200, scoped, tag = 'prefetched SMEM operand 0']
  %s0 = inlined_call_operand.vmem [shape: s32[3], index: 0, kind: input, shape index: {}]
  %s1 = inlined_call_operand.vmem [shape: bf16[768,288], index: 1, kind: input, shape index: {}]
  %s2 = inlined_call_operand.vmem [shape: bf16[2,288,32], index: 2, kind: input, shape index: {}]
  %s3 = inlined_call_operand.vmem [shape: f32[2,8,32], index: 3, kind: input, shape index: {}]
  %s4 = inlined_call_operand.vmem [shape: f32[768,32], index: 4, kind: output, shape index: {}]
  %s5 = sld [smem:[#allocation0]]
  $region45: #{single_window_disc_forward.7} parent=0
    _
  %s7 = ssub.s32 1, %s5
  %s8 = scalar_select 0, %s7, %s5
  %s9 = sshll.u32 %s0, 4
  %s10 = int_to_ptr.vmem [resolvable:$true] %s9
  %12 = dma.vmem_to_smem %s10, 16, [#allocation3], [#allocation2]
  %13 = dma.done [#allocation2], 16
  %14 = sfence
  loop: start=0, step=1, limit=5
  $region2: #{single_window_disc_forward.7} parent=0 // loop_pre_header
    _
  $region3: #{single_window_disc_forward.7} parent=0 // loop_header
    %s16 = sphi 0, %s20
    %p17 = scmp.ge.s32.totalorder %s16, 5
    %s26 = sphi 0, %s28
    %s29 = sphi 0, %s26
    %s30 = sphi 0, %s29
    %s46 = sphi 0, %s30
    %s54 = sphi 0, %s56
    %s57 = sphi 0, %s54
    %s58 = sphi 0, %s57
    %s74 = sphi 0, %s58
    %s82 = sphi 0, %s84
    %s85 = sphi 0, %s82
    %s86 = sphi 0, %s85
    %s102 = sphi 0, %s86
    %s108 = sphi 0, %s110
    %s111 = sphi 0, %s108
    %s112 = sphi 0, %s111
    %s128 = sphi 0, %s112
  $region4: #{single_window_disc_forward.7} parent=0 // loop_header_branch
    %19 = sbr.rel (%p17) target = $region8
  $region5: #{single_window_disc_forward.7} parent=0 // loop_body
    %s21 = ssub.s32 %s16, 1
    %s22 = ssub.s32 %s16, 2
    %s23 = sadd.s32 %s16, 1
    %s24 = ssub.s32 %s16, %s23
    %p25 = scmp.eq.s32.totalorder %s24, 0
    %s27 = sadd.s32 %s26, 1
    %s28 = scalar_select %p25, %s26, %s27
    %p31 = pneg %p25
    %p32 = scmp.eq.s32.totalorder %s16, 2
    %p33 = por %p31, %p32
    %p34 = scmp.ne.s32.totalorder %s26, %s29
    %p35 = scmp.eq.s32.totalorder %s16, 0
    %p36 = por %p34, %p35
    %p37 = scmp.ne.s32.totalorder %s26, %s29
    %p38 = scmp.eq.s32.totalorder %s21, 2
    %p39 = por %p37, %p38
    %p40 = scmp.ne.s32.totalorder %s29, %s30
    %p41 = scmp.eq.s32.totalorder %s21, 0
    %p42 = por %p40, %p41
    %p43 = scmp.ne.s32.totalorder %s29, %s30
    %p44 = scmp.eq.s32.totalorder %s22, 2
    %p45 = por %p43, %p44
    %p47 = scmp.ne.s32.totalorder %s30, %s46
    %p48 = scmp.eq.s32.totalorder %s22, 0
    %p49 = por %p47, %p48
    %s50 = sld [smem:[#allocation3 + %s16]]
    %s51 = sld [smem:[#allocation3 + %s23]]
    %s52 = ssub.s32 %s50, %s51
    %p53 = scmp.eq.s32.totalorder %s52, 0
    %s55 = sadd.s32 %s54, 1
    %s56 = scalar_select %p53, %s54, %s55
    %p59 = pneg %p53
    %p60 = scmp.eq.s32.totalorder %s16, 2
    %p61 = por %p59, %p60
    %p62 = scmp.ne.s32.totalorder %s54, %s57
    %p63 = scmp.eq.s32.totalorder %s16, 0
    %p64 = por %p62, %p63
    %p65 = scmp.ne.s32.totalorder %s54, %s57
    %p66 = scmp.eq.s32.totalorder %s21, 2
    %p67 = por %p65, %p66
    %p68 = scmp.ne.s32.totalorder %s57, %s58
    %p69 = scmp.eq.s32.totalorder %s21, 0
    %p70 = por %p68, %p69
    %p71 = scmp.ne.s32.totalorder %s57, %s58
    %p72 = scmp.eq.s32.totalorder %s22, 2
    %p73 = por %p71, %p72
    %p75 = scmp.ne.s32.totalorder %s58, %s74
    %p76 = scmp.eq.s32.totalorder %s22, 0
    %p77 = por %p75, %p76
    %s78 = sld [smem:[#allocation3 + %s16]]
    %s79 = sld [smem:[#allocation3 + %s23]]
    %s80 = ssub.s32 %s78, %s79
    %p81 = scmp.eq.s32.totalorder %s80, 0
    %s83 = sadd.s32 %s82, 1
    %s84 = scalar_select %p81, %s82, %s83
    %p87 = pneg %p81
    %p88 = scmp.eq.s32.totalorder %s16, 2
    %p89 = por %p87, %p88
    %p90 = scmp.ne.s32.totalorder %s82, %s85
    %p91 = scmp.eq.s32.totalorder %s16, 0
    %p92 = por %p90, %p91
    %p93 = scmp.ne.s32.totalorder %s82, %s85
    %p94 = scmp.eq.s32.totalorder %s21, 2
    %p95 = por %p93, %p94
    %p96 = scmp.ne.s32.totalorder %s85, %s86
    %p97 = scmp.eq.s32.totalorder %s21, 0
    %p98 = por %p96, %p97
    %p99 = scmp.ne.s32.totalorder %s85, %s86
    %p100 = scmp.eq.s32.totalorder %s22, 2
    %p101 = por %p99, %p100
    %p103 = scmp.ne.s32.totalorder %s86, %s102
    %p104 = scmp.eq.s32.totalorder %s22, 0
    %p105 = por %p103, %p104
    %s106 = ssub.s32 %s16, %s23
    %p107 = scmp.eq.s32.totalorder %s106, 0
    %s109 = sadd.s32 %s108, 1
    %s110 = scalar_select %p107, %s108, %s109
    %p113 = pneg %p107
    %p114 = scmp.eq.s32.totalorder %s16, 2
    %p115 = por %p113, %p114
    %p116 = scmp.ne.s32.totalorder %s108, %s111
    %p117 = scmp.eq.s32.totalorder %s16, 0
    %p118 = por %p116, %p117
    %p119 = scmp.ne.s32.totalorder %s108, %s111
    %p120 = scmp.eq.s32.totalorder %s21, 2
    %p121 = por %p119, %p120
    %p122 = scmp.ne.s32.totalorder %s111, %s112
    %p123 = scmp.eq.s32.totalorder %s21, 0
    %p124 = por %p122, %p123
    %p125 = scmp.ne.s32.totalorder %s111, %s112
    %p126 = scmp.eq.s32.totalorder %s22, 2
    %p127 = por %p125, %p126
    %p129 = scmp.ne.s32.totalorder %s112, %s128
    %p130 = scmp.eq.s32.totalorder %s22, 0
    %p131 = por %p129, %p130
    %p132 = scmp.le.s32.totalorder 1, %s16
    %p133 = scmp.lt.s32.totalorder %s16, 4
    %p134 = pnand %p132, %p133
    %p135 = pneg %p134
    // Predicated region
    $region9: #{single_window_disc_forward.7} parent=5 // pred_check
      _
    $region10: #{single_window_disc_forward.7} parent=5 // pred_check_branch
      %137 = sbr.rel (%p134) target = $region12
    $region11: #{single_window_disc_forward.7} parent=5 // pred_region
      %s138 = ssub.s32 %s16, 1
    $region12: #{single_window_disc_forward.7} parent=5 // pred_fallthru
      _
    %p139 = scmp.lt.s32.totalorder %s16, 3
    // Predicated region
    $region13: #{single_window_disc_forward.7} parent=5 // pred_check
      %p140 = pneg %p139
    $region14: #{single_window_disc_forward.7} parent=5 // pred_check_branch
      %142 = sbr.rel (%p140) target = $region16
    $region15: #{single_window_disc_forward.7} parent=5 // pred_region
      // Predicated region
      $region17: #{single_window_disc_forward.7} parent=15 // pred_check
        %p143 = pneg %p36
      $region18: #{single_window_disc_forward.7} parent=15 // pred_check_branch
        %145 = sbr.rel (%p143) target = $region20
      $region19: #{single_window_disc_forward.7} parent=15 // pred_region
        %s146 = smul.u32 32, %s16
        %p147 = scmp.lt.s32.totalorder %s146, 95
        %s148 = scalar_select %p147, %s146, 95
        %s149 = smul.addr %s148, 3
        %s150 = smul.addr %s149, 4
        %s151 = scalar_lea.vmem %s1, %s150
        %s152 = smul.u32 32, %s16
      $region20: #{single_window_disc_forward.7} parent=15 // pred_fallthru
        _
      // Predicated region
      $region21: #{single_window_disc_forward.7} parent=15 // pred_check
        %p153 = pneg %p64
      $region22: #{single_window_disc_forward.7} parent=15 // pred_check_branch
        %155 = sbr.rel (%p153) target = $region24
      $region23: #{single_window_disc_forward.7} parent=15 // pred_region
        %s156 = sld [smem:[#allocation3 + %s16]]
        %p157 = scmp.lt.s32.totalorder %s156, 1
        %s158 = scalar_select %p157, %s156, 1
        %s159 = smul.addr %s158, 36
        %s160 = smul.addr %s159, 4
        %s161 = scalar_lea.vmem %s2, %s160
        %s162 = sld [smem:[#allocation3 + %s16]]
      $region24: #{single_window_disc_forward.7} parent=15 // pred_fallthru
        _
      // Predicated region
      $region25: #{single_window_disc_forward.7} parent=15 // pred_check
        %p163 = pneg %p92
      $region26: #{single_window_disc_forward.7} parent=15 // pred_check_branch
        %165 = sbr.rel (%p163) target = $region28
      $region27: #{single_window_disc_forward.7} parent=15 // pred_region
        %s166 = sld [smem:[#allocation3 + %s16]]
        %p167 = scmp.lt.s32.totalorder %s166, 1
        %s168 = scalar_select %p167, %s166, 1
        %s169 = smul.addr %s168, 8
        %s170 = scalar_lea.vmem %s3, %s169
        %s171 = sld [smem:[#allocation3 + %s16]]
      $region28: #{single_window_disc_forward.7} parent=15 // pred_fallthru
        _
    $region16: #{single_window_disc_forward.7} parent=5 // pred_fallthru
      _
    %p172 = scmp.le.s32.totalorder 1, %s16
    %p173 = scmp.lt.s32.totalorder %s16, 4
    %p174 = pnand %p172, %p173
    %p175 = pneg %p174
    // Predicated region
    $region29: #{single_window_disc_forward.7} parent=5 // pred_check
      _
    $region30: #{single_window_disc_forward.7} parent=5 // pred_check_branch
      %177 = sbr.rel (%p174) target = $region32
    $region31: #{single_window_disc_forward.7} parent=5 // pred_region
      %s178 = ssub.s32 %s16, 1
      %s179 = smul.u32 32, %s21
      %p180 = scmp.lt.s32.totalorder %s179, 95
      %s181 = scalar_select %p180, %s179, 95
      %s182 = smul.addr %s181, 3
      %s183 = smul.addr %s182, 4
      %s184 = scalar_lea.vmem %s1, %s183
      %p185 = pneg %p42
      %p186 = pneg %p39
      %s187 = sld [smem:[#allocation3 + %s21]]
      %p188 = scmp.lt.s32.totalorder %s187, 1
      %s189 = scalar_select %p188, %s187, 1
      %s190 = smul.addr %s189, 36
      %s191 = smul.addr %s190, 4
      %s192 = scalar_lea.vmem %s2, %s191
      %p193 = pneg %p70
      %p194 = pneg %p67
      %s195 = sld [smem:[#allocation3 + %s21]]
      %p196 = scmp.lt.s32.totalorder %s195, 1
      %s197 = scalar_select %p196, %s195, 1
      %s198 = smul.addr %s197, 8
      %s199 = scalar_lea.vmem %s3, %s198
      %p200 = pneg %p98
      %p201 = pneg %p95
      %p202 = pneg %p124
      %p203 = pneg %p121
      %s204 = smul.u32 32, %s21
      %p205 = scmp.lt.s32.totalorder %s204, 95
      %s206 = scalar_select %p205, %s204, 95
      %s207 = smul.addr %s206, 8
      %s208 = scalar_lea.vmem %s4, %s207
      %s209 = smul.u32 32, %s21
      %p210 = scmp.lt.s32.totalorder %s209, 95
      %s211 = scalar_select %p210, %s209, 95
      %s212 = smul.addr %s211, 3
      %s213 = smul.addr %s212, 4
      %s214 = scalar_lea.vmem %s1, %s213
      %s215 = smul.u32 32, %s21
      %s216 = sld [smem:[#allocation3 + %s21]]
      %p217 = scmp.lt.s32.totalorder %s216, 1
      %s218 = scalar_select %p217, %s216, 1
      %s219 = smul.addr %s218, 36
      %s220 = smul.addr %s219, 4
      %s221 = scalar_lea.vmem %s2, %s220
      %s222 = sld [smem:[#allocation3 + %s21]]
      %s223 = sld [smem:[#allocation3 + %s21]]
      %p224 = scmp.lt.s32.totalorder %s223, 1
      %s225 = scalar_select %p224, %s223, 1
      %s226 = smul.addr %s225, 8
      %s227 = scalar_lea.vmem %s3, %s226
      %s228 = sld [smem:[#allocation3 + %s21]]
      %s229 = smul.u32 32, %s21
      %p230 = scmp.lt.s32.totalorder %s229, 95
      %s231 = scalar_select %p230, %s229, 95
      %s232 = smul.addr %s231, 8
      %s233 = scalar_lea.vmem %s4, %s232
      %s234 = smul.u32 32, %s21
      %v236 = vld [vmem:[%s227] sm:$0xff]
      %v237 = vld [vmem:[%s214] sm:$0xff]
      %v238 = vld [vmem:[%s214 + $0x8] sm:$0xf]
      %v239 = vld [vmem:[%s214 + $0xc] sm:$0xff]
      %v240 = vld [vmem:[%s214 + $0x14] sm:$0xf]
      %v241 = vld [vmem:[%s214 + $0x18] sm:$0xff]
      %v242 = vld [vmem:[%s214 + $0x20] sm:$0xf]
      %v243 = vld [vmem:[%s214 + $0x24] sm:$0xff]
      %v244 = vld [vmem:[%s214 + $0x2c] sm:$0xf]
      %v245 = vld [vmem:[%s214 + $0x30] sm:$0xff]
      %v246 = vld [vmem:[%s214 + $0x38] sm:$0xf]
      %v247 = vld [vmem:[%s214 + $0x3c] sm:$0xff]
      %v248 = vld [vmem:[%s214 + $0x44] sm:$0xf]
      %v249 = vld [vmem:[%s214 + $0x48] sm:$0xff]
      %v250 = vld [vmem:[%s214 + $0x50] sm:$0xf]
      %v251 = vld [vmem:[%s214 + $0x54] sm:$0xff]
      %v252 = vld [vmem:[%s214 + $0x5c] sm:$0xf]
      %v253 = vld [vmem:[%s214 + $0x60] sm:$0xff]
      %v254 = vld [vmem:[%s214 + $0x68] sm:$0xf]
      %v255 = vld [vmem:[%s214 + $0x6c] sm:$0xff]
      %v256 = vld [vmem:[%s214 + $0x74] sm:$0xf]
      %v257 = vld [vmem:[%s214 + $0x78] sm:$0xff]
      %v258 = vld [vmem:[%s214 + $0x80] sm:$0xf]
      %v259 = vld [vmem:[%s214 + $0x84] sm:$0xff]
      %v260 = vld [vmem:[%s214 + $0x8c] sm:$0xf]
      %v261 = vld [vmem:[%s214 + $0x90] sm:$0xff]
      %v262 = vld [vmem:[%s214 + $0x98] sm:$0xf]
      %v263 = vld [vmem:[%s214 + $0x9c] sm:$0xff]
      %v264 = vld [vmem:[%s214 + $0xa4] sm:$0xf]
      %v265 = vld [vmem:[%s214 + $0xa8] sm:$0xff]
      %v266 = vld [vmem:[%s214 + $0xb0] sm:$0xf]
      %v267 = vld [vmem:[%s214 + $0xb4] sm:$0xff]
      %v268 = vld [vmem:[%s214 + $0xbc] sm:$0xf]
      %v269 = vld [vmem:[%s214 + $0xc0] sm:$0xff]
      %v270 = vld [vmem:[%s214 + $0xc8] sm:$0xf]
      %v271 = vld [vmem:[%s214 + $0xcc] sm:$0xff]
      %v272 = vld [vmem:[%s214 + $0xd4] sm:$0xf]
      %v273 = vld [vmem:[%s214 + $0xd8] sm:$0xff]
      %v274 = vld [vmem:[%s214 + $0xe0] sm:$0xf]
      %v275 = vld [vmem:[%s214 + $0xe4] sm:$0xff]
      %v276 = vld [vmem:[%s214 + $0xec] sm:$0xf]
      %v277 = vld [vmem:[%s214 + $0xf0] sm:$0xff]
      %v278 = vld [vmem:[%s214 + $0xf8] sm:$0xf]
      %v279 = vld [vmem:[%s214 + $0xfc] sm:$0xff]
      %v280 = vld [vmem:[%s214 + $0x104] sm:$0xf]
      %v281 = vld [vmem:[%s214 + $0x108] sm:$0xff]
      %v282 = vld [vmem:[%s214 + $0x110] sm:$0xf]
      %v283 = vld [vmem:[%s214 + $0x114] sm:$0xff]
      %v284 = vld [vmem:[%s214 + $0x11c] sm:$0xf]
      %v285 = vld [vmem:[%s214 + $0x120] sm:$0xff]
      %v286 = vld [vmem:[%s214 + $0x128] sm:$0xf]
      %v287 = vld [vmem:[%s214 + $0x12c] sm:$0xff]
      %v288 = vld [vmem:[%s214 + $0x134] sm:$0xf]
      %v289 = vld [vmem:[%s214 + $0x138] sm:$0xff]
      %v290 = vld [vmem:[%s214 + $0x140] sm:$0xf]
      %v291 = vld [vmem:[%s214 + $0x144] sm:$0xff]
      %v292 = vld [vmem:[%s214 + $0x14c] sm:$0xf]
      %v293 = vld [vmem:[%s214 + $0x150] sm:$0xff]
      %v294 = vld [vmem:[%s214 + $0x158] sm:$0xf]
      %v295 = vld [vmem:[%s214 + $0x15c] sm:$0xff]
      %v296 = vld [vmem:[%s214 + $0x164] sm:$0xf]
      %v297 = vld [vmem:[%s214 + $0x168] sm:$0xff]
      %v298 = vld [vmem:[%s214 + $0x170] sm:$0xf]
      %v299 = vld [vmem:[%s214 + $0x174] sm:$0xff]
      %v300 = vld [vmem:[%s214 + $0x17c] sm:$0xf]
      %v301 = vld [vmem:[%s221] sm:$0xf]
      %v302 = vld [vmem:[%s221 + $0x4] sm:$0xf]
      %v303 = vld [vmem:[%s221 + $0x8] sm:$0xf]
      %v304 = vld [vmem:[%s221 + $0xc] sm:$0xf]
      %v305 = vld [vmem:[%s221 + $0x10] sm:$0xf]
      %v306 = vld [vmem:[%s221 + $0x14] sm:$0xf]
      %v307 = vld [vmem:[%s221 + $0x18] sm:$0xf]
      %v308 = vld [vmem:[%s221 + $0x1c] sm:$0xf]
      %v309 = vld [vmem:[%s221 + $0x20] sm:$0xf]
      %v310 = vld [vmem:[%s221 + $0x24] sm:$0xf]
      %v311 = vld [vmem:[%s221 + $0x28] sm:$0xf]
      %v312 = vld [vmem:[%s221 + $0x2c] sm:$0xf]
      %v313 = vld [vmem:[%s221 + $0x30] sm:$0xf]
      %v314 = vld [vmem:[%s221 + $0x34] sm:$0xf]
      %v315 = vld [vmem:[%s221 + $0x38] sm:$0xf]
      %v316 = vld [vmem:[%s221 + $0x3c] sm:$0xf]
      %v317 = vld [vmem:[%s221 + $0x40] sm:$0xf]
      %v318 = vld [vmem:[%s221 + $0x44] sm:$0xf]
      %v319 = vld [vmem:[%s221 + $0x48] sm:$0xf]
      %v320 = vld [vmem:[%s221 + $0x4c] sm:$0xf]
      %v321 = vld [vmem:[%s221 + $0x50] sm:$0xf]
      %v322 = vld [vmem:[%s221 + $0x54] sm:$0xf]
      %v323 = vld [vmem:[%s221 + $0x58] sm:$0xf]
      %v324 = vld [vmem:[%s221 + $0x5c] sm:$0xf]
      %v325 = vld [vmem:[%s221 + $0x60] sm:$0xf]
      %v326 = vld [vmem:[%s221 + $0x64] sm:$0xf]
      %v327 = vld [vmem:[%s221 + $0x68] sm:$0xf]
      %v328 = vld [vmem:[%s221 + $0x6c] sm:$0xf]
      %v329 = vld [vmem:[%s221 + $0x70] sm:$0xf]
      %v330 = vld [vmem:[%s221 + $0x74] sm:$0xf]
      %v331 = vld [vmem:[%s221 + $0x78] sm:$0xf]
      %v332 = vld [vmem:[%s221 + $0x7c] sm:$0xf]
      %v333 = vld [vmem:[%s221 + $0x80] sm:$0xf]
      %v334 = vld [vmem:[%s221 + $0x84] sm:$0xf]
      %v335 = vld [vmem:[%s221 + $0x88] sm:$0xf]
      %v336 = vld [vmem:[%s221 + $0x8c] sm:$0xf]
      %v337 = vlaneseq
      %v338 = vshrl.u32 %v337, 7
      %v339 = vsub.s32 0, %v338
      %v340 = vrot.slane %v236, %v339
      %v405 = vunpack.c.l.b16 %v237
      %v406 = vunpack.c.h.b16 %v237
      %v407 = vunpack.c.l.b16 %v238
      %v408 = vunpack.c.l.b16 %v239
      %v409 = vunpack.c.h.b16 %v239
      %v410 = vunpack.c.l.b16 %v240
      %v411 = vunpack.c.l.b16 %v241
      %v412 = vunpack.c.h.b16 %v241
      %v413 = vunpack.c.l.b16 %v242
      %v414 = vunpack.c.l.b16 %v243
      %v415 = vunpack.c.h.b16 %v243
      %v416 = vunpack.c.l.b16 %v244
      %v417 = vunpack.c.l.b16 %v245
      %v418 = vunpack.c.h.b16 %v245
      %v419 = vunpack.c.l.b16 %v246
      %v420 = vunpack.c.l.b16 %v247
      %v421 = vunpack.c.h.b16 %v247
      %v422 = vunpack.c.l.b16 %v248
      %v423 = vunpack.c.l.b16 %v249
      %v424 = vunpack.c.h.b16 %v249
      %v425 = vunpack.c.l.b16 %v250
      %v426 = vunpack.c.l.b16 %v251
      %v427 = vunpack.c.h.b16 %v251
      %v428 = vunpack.c.l.b16 %v252
      %v429 = vunpack.c.l.b16 %v253
      %v430 = vunpack.c.h.b16 %v253
      %v431 = vunpack.c.l.b16 %v254
      %v432 = vunpack.c.l.b16 %v255
      %v433 = vunpack.c.h.b16 %v255
      %v434 = vunpack.c.l.b16 %v256
      %v435 = vunpack.c.l.b16 %v257
      %v436 = vunpack.c.h.b16 %v257
      %v437 = vunpack.c.l.b16 %v258
      %v438 = vunpack.c.l.b16 %v259
      %v439 = vunpack.c.h.b16 %v259
      %v440 = vunpack.c.l.b16 %v260
      %v441 = vunpack.c.l.b16 %v261
      %v442 = vunpack.c.h.b16 %v261
      %v443 = vunpack.c.l.b16 %v262
      %v444 = vunpack.c.l.b16 %v263
      %v445 = vunpack.c.h.b16 %v263
      %v446 = vunpack.c.l.b16 %v264
      %v447 = vunpack.c.l.b16 %v265
      %v448 = vunpack.c.h.b16 %v265
      %v449 = vunpack.c.l.b16 %v266
      %v450 = vunpack.c.l.b16 %v267
      %v451 = vunpack.c.h.b16 %v267
      %v452 = vunpack.c.l.b16 %v268
      %v453 = vunpack.c.l.b16 %v269
      %v454 = vunpack.c.h.b16 %v269
      %v455 = vunpack.c.l.b16 %v270
      %v456 = vunpack.c.l.b16 %v271
      %v457 = vunpack.c.h.b16 %v271
      %v458 = vunpack.c.l.b16 %v272
      %v459 = vunpack.c.l.b16 %v273
      %v460 = vunpack.c.h.b16 %v273
      %v461 = vunpack.c.l.b16 %v274
      %v462 = vunpack.c.l.b16 %v275
      %v463 = vunpack.c.h.b16 %v275
      %v464 = vunpack.c.l.b16 %v276
      %v465 = vunpack.c.l.b16 %v277
      %v466 = vunpack.c.h.b16 %v277
      %v467 = vunpack.c.l.b16 %v278
      %v468 = vunpack.c.l.b16 %v279
      %v469 = vunpack.c.h.b16 %v279
      %v470 = vunpack.c.l.b16 %v280
      %v471 = vunpack.c.l.b16 %v281
      %v472 = vunpack.c.h.b16 %v281
      %v473 = vunpack.c.l.b16 %v282
      %v474 = vunpack.c.l.b16 %v283
      %v475 = vunpack.c.h.b16 %v283
      %v476 = vunpack.c.l.b16 %v284
      %v477 = vunpack.c.l.b16 %v285
      %v478 = vunpack.c.h.b16 %v285
      %v479 = vunpack.c.l.b16 %v286
      %v480 = vunpack.c.l.b16 %v287
      %v481 = vunpack.c.h.b16 %v287
      %v482 = vunpack.c.l.b16 %v288
      %v483 = vunpack.c.l.b16 %v289
      %v484 = vunpack.c.h.b16 %v289
      %v485 = vunpack.c.l.b16 %v290
      %v486 = vunpack.c.l.b16 %v291
      %v487 = vunpack.c.h.b16 %v291
      %v488 = vunpack.c.l.b16 %v292
      %v489 = vunpack.c.l.b16 %v293
      %v490 = vunpack.c.h.b16 %v293
      %v491 = vunpack.c.l.b16 %v294
      %v492 = vunpack.c.l.b16 %v295
      %v493 = vunpack.c.h.b16 %v295
      %v494 = vunpack.c.l.b16 %v296
      %v495 = vunpack.c.l.b16 %v297
      %v496 = vunpack.c.h.b16 %v297
      %v497 = vunpack.c.l.b16 %v298
      %v498 = vunpack.c.l.b16 %v299
      %v499 = vunpack.c.h.b16 %v299
      %v500 = vunpack.c.l.b16 %v300
      %v501 = vpack.c.b16 %v408, %v405
      %v502 = vpack.c.b16 %v409, %v406
      %v503 = vpack.c.b16 %v410, %v407
      %v504 = vpack.c.b16 %v414, %v411
      %v505 = vpack.c.b16 %v415, %v412
      %v506 = vpack.c.b16 %v416, %v413
      %v507 = vpack.c.b16 %v420, %v417
      %v508 = vpack.c.b16 %v421, %v418
      %v509 = vpack.c.b16 %v422, %v419
      %v510 = vpack.c.b16 %v426, %v423
      %v511 = vpack.c.b16 %v427, %v424
      %v512 = vpack.c.b16 %v428, %v425
      %v513 = vpack.c.b16 %v432, %v429
      %v514 = vpack.c.b16 %v433, %v430
      %v515 = vpack.c.b16 %v434, %v431
      %v516 = vpack.c.b16 %v438, %v435
      %v517 = vpack.c.b16 %v439, %v436
      %v518 = vpack.c.b16 %v440, %v437
      %v519 = vpack.c.b16 %v444, %v441
      %v520 = vpack.c.b16 %v445, %v442
      %v521 = vpack.c.b16 %v446, %v443
      %v522 = vpack.c.b16 %v450, %v447
      %v523 = vpack.c.b16 %v451, %v448
      %v524 = vpack.c.b16 %v452, %v449
      %v525 = vpack.c.b16 %v456, %v453
      %v526 = vpack.c.b16 %v457, %v454
      %v527 = vpack.c.b16 %v458, %v455
      %v528 = vpack.c.b16 %v462, %v459
      %v529 = vpack.c.b16 %v463, %v460
      %v530 = vpack.c.b16 %v464, %v461
      %v531 = vpack.c.b16 %v468, %v465
      %v532 = vpack.c.b16 %v469, %v466
      %v533 = vpack.c.b16 %v470, %v467
      %v534 = vpack.c.b16 %v474, %v471
      %v535 = vpack.c.b16 %v475, %v472
      %v536 = vpack.c.b16 %v476, %v473
      %v537 = vpack.c.b16 %v480, %v477
      %v538 = vpack.c.b16 %v481, %v478
      %v539 = vpack.c.b16 %v482, %v479
      %v540 = vpack.c.b16 %v486, %v483
      %v541 = vpack.c.b16 %v487, %v484
      %v542 = vpack.c.b16 %v488, %v485
      %v543 = vpack.c.b16 %v492, %v489
      %v544 = vpack.c.b16 %v493, %v490
      %v545 = vpack.c.b16 %v494, %v491
      %v546 = vpack.c.b16 %v498, %v495
      %v547 = vpack.c.b16 %v499, %v496
      %v548 = vpack.c.b16 %v500, %v497
      %v617 = vunpack.c.l.b16 %v301
      %v618 = vunpack.c.l.b16 %v302
      %v619 = vunpack.c.l.b16 %v303
      %v620 = vunpack.c.l.b16 %v304
      %v621 = vunpack.c.l.b16 %v305
      %v622 = vunpack.c.l.b16 %v306
      %v623 = vunpack.c.l.b16 %v307
      %v624 = vunpack.c.l.b16 %v308
      %v625 = vunpack.c.l.b16 %v309
      %v626 = vunpack.c.l.b16 %v310
      %v627 = vunpack.c.l.b16 %v311
      %v628 = vunpack.c.l.b16 %v312
      %v629 = vunpack.c.l.b16 %v313
      %v630 = vunpack.c.l.b16 %v314
      %v631 = vunpack.c.l.b16 %v315
      %v632 = vunpack.c.l.b16 %v316
      %v633 = vunpack.c.l.b16 %v317
      %v634 = vunpack.c.l.b16 %v318
      %v635 = vunpack.c.l.b16 %v319
      %v636 = vunpack.c.l.b16 %v320
      %v637 = vunpack.c.l.b16 %v321
      %v638 = vunpack.c.l.b16 %v322
      %v639 = vunpack.c.l.b16 %v323
      %v640 = vunpack.c.l.b16 %v324
      %v641 = vunpack.c.l.b16 %v325
      %v642 = vunpack.c.l.b16 %v326
      %v643 = vunpack.c.l.b16 %v327
      %v644 = vunpack.c.l.b16 %v328
      %v645 = vunpack.c.l.b16 %v329
      %v646 = vunpack.c.l.b16 %v330
      %v647 = vunpack.c.l.b16 %v331
      %v648 = vunpack.c.l.b16 %v332
      %v649 = vunpack.c.l.b16 %v333
      %v650 = vunpack.c.l.b16 %v334
      %v651 = vunpack.c.l.b16 %v335
      %v652 = vunpack.c.l.b16 %v336
      %v653 = vpack.c.b16 %v618, %v617
      %v654 = vpack.c.b16 %v620, %v619
      %v655 = vpack.c.b16 %v622, %v621
      %v656 = vpack.c.b16 %v624, %v623
      %v657 = vpack.c.b16 %v626, %v625
      %v658 = vpack.c.b16 %v628, %v627
      %v659 = vpack.c.b16 %v630, %v629
      %v660 = vpack.c.b16 %v632, %v631
      %v661 = vpack.c.b16 %v634, %v633
      %v662 = vpack.c.b16 %v636, %v635
      %v663 = vpack.c.b16 %v638, %v637
      %v664 = vpack.c.b16 %v640, %v639
      %v665 = vpack.c.b16 %v642, %v641
      %v666 = vpack.c.b16 %v644, %v643
      %v667 = vpack.c.b16 %v646, %v645
      %v668 = vpack.c.b16 %v648, %v647
      %v669 = vpack.c.b16 %v650, %v649
      %v670 = vpack.c.b16 %v652, %v651
      %vm689 = vcmask 261120
      %v691 = vsel %vm689, %v503, 0
      %v694 = vsel %vm689, %v506, 0
      %v697 = vsel %vm689, %v509, 0
      %v700 = vsel %vm689, %v512, 0
      %v703 = vsel %vm689, %v515, 0
      %v706 = vsel %vm689, %v518, 0
      %v709 = vsel %vm689, %v521, 0
      %v712 = vsel %vm689, %v524, 0
      %v715 = vsel %vm689, %v527, 0
      %v718 = vsel %vm689, %v530, 0
      %v721 = vsel %vm689, %v533, 0
      %v724 = vsel %vm689, %v536, 0
      %v727 = vsel %vm689, %v539, 0
      %v730 = vsel %vm689, %v542, 0
      %v733 = vsel %vm689, %v545, 0
      %v736 = vsel %vm689, %v548, 0
      %738 = vmatprep.subr.bf16.mxu0 0
      %739 = vmatpush1.bf16.msra.mxu0 %v653
      %740 = vmatprep.subr.bf16.mxu0 0
      %741 = vmatpush1.bf16.msra.mxu0 %v654
      %742 = vmatprep.subr.bf16.mxu0 0
      %743 = vmatpush1.bf16.msra.mxu0 %v655
      %744 = vmatprep.subr.bf16.mxu0 0
      %745 = vmatpush1.bf16.msra.mxu0 %v656
      %746 = vmatprep.subr.bf16.mxu0 0
      %747 = vmatpush1.bf16.msra.mxu0 %v657
      %748 = vmatprep.subr.bf16.mxu0 0
      %749 = vmatpush1.bf16.msra.mxu0 %v658
      %750 = vmatprep.subr.bf16.mxu0 0
      %751 = vmatpush1.bf16.msra.mxu0 %v659
      %752 = vmatprep.subr.bf16.mxu0 0
      %753 = vmatpush1.bf16.msra.mxu0 %v660
      %754 = vmatprep.subr.bf16.mxu0 0
      %755 = vmatpush1.bf16.msra.mxu0 %v661
      %756 = vmatprep.subr.bf16.mxu0 0
      %757 = vmatpush1.bf16.msra.mxu0 %v662
      %758 = vmatprep.subr.bf16.mxu0 0
      %759 = vmatpush1.bf16.msra.mxu0 %v663
      %760 = vmatprep.subr.bf16.mxu0 0
      %761 = vmatpush1.bf16.msra.mxu0 %v664
      %762 = vmatprep.subr.bf16.mxu0 0
      %763 = vmatpush1.bf16.msra.mxu0 %v665
      %764 = vmatprep.subr.bf16.mxu0 0
      %765 = vmatpush1.bf16.msra.mxu0 %v666
      %766 = vmatprep.subr.bf16.mxu0 0
      %767 = vmatpush1.bf16.msra.mxu0 %v667
      %768 = vmatprep.subr.bf16.mxu0 0
      %769 = vmatpush1.bf16.msra.mxu0 %v668
      %770 = vmatprep.mubr.bf16.mxu0 %v502
      %771 = vmatmul.mubr.bf16.gmra.mrb[0].mxu0 %v501
      %v772 = vpop.f32.mrb[0].mxu0
      %v773 = vadd.f32 %v340, %v772
      %v774 = vpop.f32.mrb[0].mxu0
      %v775 = vpop.f32.mrb[0].mxu0
      %v776 = vadd.f32 %v340, %v775
      %v777 = vpop.f32.mrb[0].mxu0
      %778 = vmatprep.mubr.bf16.mxu0 %v505
      %779 = vmatmul.mubr.bf16.gmra.mrb[0].mxu0 %v504
      %v780 = vpop.f32.mrb[0].mxu0
      %v781 = vadd.f32 %v340, %v780
      %v782 = vpop.f32.mrb[0].mxu0
      %v783 = vpop.f32.mrb[0].mxu0
      %v784 = vadd.f32 %v340, %v783
      %v785 = vpop.f32.mrb[0].mxu0
      %786 = vmatprep.mubr.bf16.mxu0 %v508
      %787 = vmatmul.mubr.bf16.gmra.mrb[0].mxu0 %v507
      %v788 = vpop.f32.mrb[0].mxu0
      %v789 = vadd.f32 %v340, %v788
      %v790 = vpop.f32.mrb[0].mxu0
      %v791 = vpop.f32.mrb[0].mxu0
      %v792 = vadd.f32 %v340, %v791
      %v793 = vpop.f32.mrb[0].mxu0
      %794 = vmatprep.mubr.bf16.mxu0 %v511
      %795 = vmatmul.mubr.bf16.gmra.mrb[0].mxu0 %v510
      %v796 = vpop.f32.mrb[0].mxu0
      %v797 = vadd.f32 %v340, %v796
      %v798 = vpop.f32.mrb[0].mxu0
      %v799 = vpop.f32.mrb[0].mxu0
      %v800 = vadd.f32 %v340, %v799
      %v801 = vpop.f32.mrb[0].mxu0
      %802 = vmatprep.mubr.bf16.mxu0 %v514
      %803 = vmatmul.mubr.bf16.gmra.mrb[0].mxu0 %v513
      %v804 = vpop.f32.mrb[0].mxu0
      %v805 = vadd.f32 %v340, %v804
      %v806 = vpop.f32.mrb[0].mxu0
      %v807 = vpop.f32.mrb[0].mxu0
      %v808 = vadd.f32 %v340, %v807
      %v809 = vpop.f32.mrb[0].mxu0
      %810 = vmatprep.mubr.bf16.mxu0 %v517
      %811 = vmatmul.mubr.bf16.gmra.mrb[0].mxu0 %v516
      %v812 = vpop.f32.mrb[0].mxu0
      %v813 = vadd.f32 %v340, %v812
      %v814 = vpop.f32.mrb[0].mxu0
      %v815 = vpop.f32.mrb[0].mxu0
      %v816 = vadd.f32 %v340, %v815
      %v817 = vpop.f32.mrb[0].mxu0
      %818 = vmatprep.mubr.bf16.mxu0 %v520
      %819 = vmatmul.mubr.bf16.gmra.mrb[0].mxu0 %v519
      %v820 = vpop.f32.mrb[0].mxu0
      %v821 = vadd.f32 %v340, %v820
      %v822 = vpop.f32.mrb[0].mxu0
      %v823 = vpop.f32.mrb[0].mxu0
      %v824 = vadd.f32 %v340, %v823
      %v825 = vpop.f32.mrb[0].mxu0
      %826 = vmatprep.mubr.bf16.mxu0 %v523
      %827 = vmatmul.mubr.bf16.gmra.mrb[0].mxu0 %v522
      %v828 = vpop.f32.mrb[0].mxu0
      %v829 = vadd.f32 %v340, %v828
      %v830 = vpop.f32.mrb[0].mxu0
      %v831 = vpop.f32.mrb[0].mxu0
      %v832 = vadd.f32 %v340, %v831
      %v833 = vpop.f32.mrb[0].mxu0
      %834 = vmatprep.mubr.bf16.mxu0 %v526
      %835 = vmatmul.mubr.bf16.gmra.mrb[0].mxu0 %v525
      %v836 = vpop.f32.mrb[0].mxu0
      %v837 = vadd.f32 %v340, %v836
      %v838 = vpop.f32.mrb[0].mxu0
      %v839 = vpop.f32.mrb[0].mxu0
      %v840 = vadd.f32 %v340, %v839
      %v841 = vpop.f32.mrb[0].mxu0
      %842 = vmatprep.mubr.bf16.mxu0 %v529
      %843 = vmatmul.mubr.bf16.gmra.mrb[0].mxu0 %v528
      %v844 = vpop.f32.mrb[0].mxu0
      %v845 = vadd.f32 %v340, %v844
      %v846 = vpop.f32.mrb[0].mxu0
      %v847 = vpop.f32.mrb[0].mxu0
      %v848 = vadd.f32 %v340, %v847
      %v849 = vpop.f32.mrb[0].mxu0
      %850 = vmatprep.mubr.bf16.mxu0 %v532
      %851 = vmatmul.mubr.bf16.gmra.mrb[0].mxu0 %v531
      %v852 = vpop.f32.mrb[0].mxu0
      %v853 = vadd.f32 %v340, %v852
      %v854 = vpop.f32.mrb[0].mxu0
      %v855 = vpop.f32.mrb[0].mxu0
      %v856 = vadd.f32 %v340, %v855
      %v857 = vpop.f32.mrb[0].mxu0
      %858 = vmatprep.mubr.bf16.mxu0 %v535
      %859 = vmatmul.mubr.bf16.gmra.mrb[0].mxu0 %v534
      %v860 = vpop.f32.mrb[0].mxu0
      %v861 = vadd.f32 %v340, %v860
      %v862 = vpop.f32.mrb[0].mxu0
      %v863 = vpop.f32.mrb[0].mxu0
      %v864 = vadd.f32 %v340, %v863
      %v865 = vpop.f32.mrb[0].mxu0
      %866 = vmatprep.mubr.bf16.mxu0 %v538
      %867 = vmatmul.mubr.bf16.gmra.mrb[0].mxu0 %v537
      %v868 = vpop.f32.mrb[0].mxu0
      %v869 = vadd.f32 %v340, %v868
      %v870 = vpop.f32.mrb[0].mxu0
      %v871 = vpop.f32.mrb[0].mxu0
      %v872 = vadd.f32 %v340, %v871
      %v873 = vpop.f32.mrb[0].mxu0
      %874 = vmatprep.mubr.bf16.mxu0 %v541
      %875 = vmatmul.mubr.bf16.gmra.mrb[0].mxu0 %v540
      %v876 = vpop.f32.mrb[0].mxu0
      %v877 = vadd.f32 %v340, %v876
      %v878 = vpop.f32.mrb[0].mxu0
      %v879 = vpop.f32.mrb[0].mxu0
      %v880 = vadd.f32 %v340, %v879
      %v881 = vpop.f32.mrb[0].mxu0
      %882 = vmatprep.mubr.bf16.mxu0 %v544
      %883 = vmatmul.mubr.bf16.gmra.mrb[0].mxu0 %v543
      %v884 = vpop.f32.mrb[0].mxu0
      %v885 = vadd.f32 %v340, %v884
      %v886 = vpop.f32.mrb[0].mxu0
      %v887 = vpop.f32.mrb[0].mxu0
      %v888 = vadd.f32 %v340, %v887
      %v889 = vpop.f32.mrb[0].mxu0
      %890 = vmatprep.mubr.bf16.mxu0 %v547
      %891 = vmatmul.mubr.bf16.gmra.mrb[0].mxu0 %v546
      %v892 = vpop.f32.mrb[0].mxu0
      %v893 = vadd.f32 %v340, %v892
      %v894 = vpop.f32.mrb[0].mxu0
      %v895 = vpop.f32.mrb[0].mxu0
      %v896 = vadd.f32 %v340, %v895
      %v897 = vpop.f32.mrb[0].mxu0
      %898 = vdwg.mxu0
      %899 = vmatprep.subr.bf16.mxu0 0
      %900 = vmatpush1.bf16.msra.mxu0 %v669
      %901 = vmatprep.subr.bf16.mxu0 0
      %902 = vmatpush1.bf16.msra.mxu0 %v670
      %903 = vmatprep.subr.bf16.mxu0 0
      %904 = vmatpush1.bf16.msra.mxu0 0
      %905 = vmatprep.subr.bf16.mxu0 0
      %906 = vmatpush1.bf16.msra.mxu0 0
      %907 = vmatprep.subr.bf16.mxu0 0
      %908 = vmatpush1.bf16.msra.mxu0 0
      %909 = vmatprep.subr.bf16.mxu0 0
      %910 = vmatpush1.bf16.msra.mxu0 0
      %911 = vmatprep.subr.bf16.mxu0 0
      %912 = vmatpush1.bf16.msra.mxu0 0
      %913 = vmatprep.subr.bf16.mxu0 0
      %914 = vmatpush1.bf16.msra.mxu0 0
      %915 = vmatprep.subr.bf16.mxu0 0
      %916 = vmatpush1.bf16.msra.mxu0 0
      %917 = vmatprep.subr.bf16.mxu0 0
      %918 = vmatpush1.bf16.msra.mxu0 0
      %919 = vmatprep.subr.bf16.mxu0 0
      %920 = vmatpush1.bf16.msra.mxu0 0
      %921 = vmatprep.subr.bf16.mxu0 0
      %922 = vmatpush1.bf16.msra.mxu0 0
      %923 = vmatprep.subr.bf16.mxu0 0
      %924 = vmatpush1.bf16.msra.mxu0 0
      %925 = vmatprep.subr.bf16.mxu0 0
      %926 = vmatpush1.bf16.msra.mxu0 0
      %927 = vmatprep.subr.bf16.mxu0 0
      %928 = vmatpush1.bf16.msra.mxu0 0
      %929 = vmatprep.subr.bf16.mxu0 0
      %930 = vmatpush1.bf16.msra.mxu0 0
      %931 = vmatprep.mubr.bf16.mxu0 0
      %932 = vmatmul.mubr.bf16.gmra.mrb[0].mxu0 %v691
      %v933 = vpop.f32.mrb[0].mxu0
      %v934 = vadd.f32 %v773, %v933
      %v935 = vpop.f32.mrb[0].mxu0
      %v936 = vpop.f32.mrb[0].mxu0
      %v937 = vadd.f32 %v776, %v936
      %v938 = vpop.f32.mrb[0].mxu0
      %939 = vmatprep.mubr.bf16.mxu0 0
      %940 = vmatmul.mubr.bf16.gmra.mrb[0].mxu0 %v694
      %v941 = vpop.f32.mrb[0].mxu0
      %v942 = vadd.f32 %v781, %v941
      %v943 = vpop.f32.mrb[0].mxu0
      %v944 = vpop.f32.mrb[0].mxu0
      %v945 = vadd.f32 %v784, %v944
      %v946 = vpop.f32.mrb[0].mxu0
      %947 = vmatprep.mubr.bf16.mxu0 0
      %948 = vmatmul.mubr.bf16.gmra.mrb[0].mxu0 %v697
      %v949 = vpop.f32.mrb[0].mxu0
      %v950 = vadd.f32 %v789, %v949
      %v951 = vpop.f32.mrb[0].mxu0
      %v952 = vpop.f32.mrb[0].mxu0
      %v953 = vadd.f32 %v792, %v952
      %v954 = vpop.f32.mrb[0].mxu0
      %955 = vmatprep.mubr.bf16.mxu0 0
      %956 = vmatmul.mubr.bf16.gmra.mrb[0].mxu0 %v700
      %v957 = vpop.f32.mrb[0].mxu0
      %v958 = vadd.f32 %v797, %v957
      %v959 = vpop.f32.mrb[0].mxu0
      %v960 = vpop.f32.mrb[0].mxu0
      %v961 = vadd.f32 %v800, %v960
      %v962 = vpop.f32.mrb[0].mxu0
      %963 = vmatprep.mubr.bf16.mxu0 0
      %964 = vmatmul.mubr.bf16.gmra.mrb[0].mxu0 %v703
      %v965 = vpop.f32.mrb[0].mxu0
      %v966 = vadd.f32 %v805, %v965
      %v967 = vpop.f32.mrb[0].mxu0
      %v968 = vpop.f32.mrb[0].mxu0
      %v969 = vadd.f32 %v808, %v968
      %v970 = vpop.f32.mrb[0].mxu0
      %971 = vmatprep.mubr.bf16.mxu0 0
      %972 = vmatmul.mubr.bf16.gmra.mrb[0].mxu0 %v706
      %v973 = vpop.f32.mrb[0].mxu0
      %v974 = vadd.f32 %v813, %v973
      %v975 = vpop.f32.mrb[0].mxu0
      %v976 = vpop.f32.mrb[0].mxu0
      %v977 = vadd.f32 %v816, %v976
      %v978 = vpop.f32.mrb[0].mxu0
      %979 = vmatprep.mubr.bf16.mxu0 0
      %980 = vmatmul.mubr.bf16.gmra.mrb[0].mxu0 %v709
      %v981 = vpop.f32.mrb[0].mxu0
      %v982 = vadd.f32 %v821, %v981
      %v983 = vpop.f32.mrb[0].mxu0
      %v984 = vpop.f32.mrb[0].mxu0
      %v985 = vadd.f32 %v824, %v984
      %v986 = vpop.f32.mrb[0].mxu0
      %987 = vmatprep.mubr.bf16.mxu0 0
      %988 = vmatmul.mubr.bf16.gmra.mrb[0].mxu0 %v712
      %v989 = vpop.f32.mrb[0].mxu0
      %v990 = vadd.f32 %v829, %v989
      %v991 = vpop.f32.mrb[0].mxu0
      %v992 = vpop.f32.mrb[0].mxu0
      %v993 = vadd.f32 %v832, %v992
      %v994 = vpop.f32.mrb[0].mxu0
      %995 = vmatprep.mubr.bf16.mxu0 0
      %996 = vmatmul.mubr.bf16.gmra.mrb[0].mxu0 %v715
      %v997 = vpop.f32.mrb[0].mxu0
      %v998 = vadd.f32 %v837, %v997
      %v999 = vpop.f32.mrb[0].mxu0
      %v1000 = vpop.f32.mrb[0].mxu0
      %v1001 = vadd.f32 %v840, %v1000
      %v1002 = vpop.f32.mrb[0].mxu0
      %1003 = vmatprep.mubr.bf16.mxu0 0
      %1004 = vmatmul.mubr.bf16.gmra.mrb[0].mxu0 %v718
      %v1005 = vpop.f32.mrb[0].mxu0
      %v1006 = vadd.f32 %v845, %v1005
      %v1007 = vpop.f32.mrb[0].mxu0
      %v1008 = vpop.f32.mrb[0].mxu0
      %v1009 = vadd.f32 %v848, %v1008
      %v1010 = vpop.f32.mrb[0].mxu0
      %1011 = vmatprep.mubr.bf16.mxu0 0
      %1012 = vmatmul.mubr.bf16.gmra.mrb[0].mxu0 %v721
      %v1013 = vpop.f32.mrb[0].mxu0
      %v1014 = vadd.f32 %v853, %v1013
      %v1015 = vpop.f32.mrb[0].mxu0
      %v1016 = vpop.f32.mrb[0].mxu0
      %v1017 = vadd.f32 %v856, %v1016
      %v1018 = vpop.f32.mrb[0].mxu0
      %1019 = vmatprep.mubr.bf16.mxu0 0
      %1020 = vmatmul.mubr.bf16.gmra.mrb[0].mxu0 %v724
      %v1021 = vpop.f32.mrb[0].mxu0
      %v1022 = vadd.f32 %v861, %v1021
      %v1023 = vpop.f32.mrb[0].mxu0
      %v1024 = vpop.f32.mrb[0].mxu0
      %v1025 = vadd.f32 %v864, %v1024
      %v1026 = vpop.f32.mrb[0].mxu0
      %1027 = vmatprep.mubr.bf16.mxu0 0
      %1028 = vmatmul.mubr.bf16.gmra.mrb[0].mxu0 %v727
      %v1029 = vpop.f32.mrb[0].mxu0
      %v1030 = vadd.f32 %v869, %v1029
      %v1031 = vpop.f32.mrb[0].mxu0
      %v1032 = vpop.f32.mrb[0].mxu0
      %v1033 = vadd.f32 %v872, %v1032
      %v1034 = vpop.f32.mrb[0].mxu0
      %1035 = vmatprep.mubr.bf16.mxu0 0
      %1036 = vmatmul.mubr.bf16.gmra.mrb[0].mxu0 %v730
      %v1037 = vpop.f32.mrb[0].mxu0
      %v1038 = vadd.f32 %v877, %v1037
      %v1039 = vpop.f32.mrb[0].mxu0
      %v1040 = vpop.f32.mrb[0].mxu0
      %v1041 = vadd.f32 %v880, %v1040
      %v1042 = vpop.f32.mrb[0].mxu0
      %1043 = vmatprep.mubr.bf16.mxu0 0
      %1044 = vmatmul.mubr.bf16.gmra.mrb[0].mxu0 %v733
      %v1045 = vpop.f32.mrb[0].mxu0
      %v1046 = vadd.f32 %v885, %v1045
      %v1047 = vpop.f32.mrb[0].mxu0
      %v1048 = vpop.f32.mrb[0].mxu0
      %v1049 = vadd.f32 %v888, %v1048
      %v1050 = vpop.f32.mrb[0].mxu0
      %1051 = vmatprep.mubr.bf16.mxu0 0
      %1052 = vmatmul.mubr.bf16.gmra.mrb[0].mxu0 %v736
      %v1053 = vpop.f32.mrb[0].mxu0
      %v1054 = vadd.f32 %v893, %v1053
      %v1055 = vpop.f32.mrb[0].mxu0
      %v1056 = vpop.f32.mrb[0].mxu0
      %v1057 = vadd.f32 %v896, %v1056
      %v1058 = vpop.f32.mrb[0].mxu0
      %1059 = vdwg.mxu0
      %v1060 = vmul.f32 %v934, 0.2
      %v1061 = vmul.f32 %v937, 0.2
      %v1062 = vmul.f32 %v942, 0.2
      %v1063 = vmul.f32 %v945, 0.2
      %v1064 = vmul.f32 %v950, 0.2
      %v1065 = vmul.f32 %v953, 0.2
      %v1066 = vmul.f32 %v958, 0.2
      %v1067 = vmul.f32 %v961, 0.2
      %v1068 = vmul.f32 %v966, 0.2
      %v1069 = vmul.f32 %v969, 0.2
      %v1070 = vmul.f32 %v974, 0.2
      %v1071 = vmul.f32 %v977, 0.2
      %v1072 = vmul.f32 %v982, 0.2
      %v1073 = vmul.f32 %v985, 0.2
      %v1074 = vmul.f32 %v990, 0.2
      %v1075 = vmul.f32 %v993, 0.2
      %v1076 = vmul.f32 %v998, 0.2
      %v1077 = vmul.f32 %v1001, 0.2
      %v1078 = vmul.f32 %v1006, 0.2
      %v1079 = vmul.f32 %v1009, 0.2
      %v1080 = vmul.f32 %v1014, 0.2
      %v1081 = vmul.f32 %v1017, 0.2
      %v1082 = vmul.f32 %v1022, 0.2
      %v1083 = vmul.f32 %v1025, 0.2
      %v1084 = vmul.f32 %v1030, 0.2
      %v1085 = vmul.f32 %v1033, 0.2
      %v1086 = vmul.f32 %v1038, 0.2
      %v1087 = vmul.f32 %v1041, 0.2
      %v1088 = vmul.f32 %v1046, 0.2
      %v1089 = vmul.f32 %v1049, 0.2
      %v1090 = vmul.f32 %v1054, 0.2
      %v1091 = vmul.f32 %v1057, 0.2
      %v1092 = vmax.f32 %v934, %v1060
      %v1093 = vmax.f32 %v937, %v1061
      %v1094 = vmax.f32 %v942, %v1062
      %v1095 = vmax.f32 %v945, %v1063
      %v1096 = vmax.f32 %v950, %v1064
      %v1097 = vmax.f32 %v953, %v1065
      %v1098 = vmax.f32 %v958, %v1066
      %v1099 = vmax.f32 %v961, %v1067
      %v1100 = vmax.f32 %v966, %v1068
      %v1101 = vmax.f32 %v969, %v1069
      %v1102 = vmax.f32 %v974, %v1070
      %v1103 = vmax.f32 %v977, %v1071
      %v1104 = vmax.f32 %v982, %v1072
      %v1105 = vmax.f32 %v985, %v1073
      %v1106 = vmax.f32 %v990, %v1074
      %v1107 = vmax.f32 %v993, %v1075
      %v1108 = vmax.f32 %v998, %v1076
      %v1109 = vmax.f32 %v1001, %v1077
      %v1110 = vmax.f32 %v1006, %v1078
      %v1111 = vmax.f32 %v1009, %v1079
      %v1112 = vmax.f32 %v1014, %v1080
      %v1113 = vmax.f32 %v1017, %v1081
      %v1114 = vmax.f32 %v1022, %v1082
      %v1115 = vmax.f32 %v1025, %v1083
      %v1116 = vmax.f32 %v1030, %v1084
      %v1117 = vmax.f32 %v1033, %v1085
      %v1118 = vmax.f32 %v1038, %v1086
      %v1119 = vmax.f32 %v1041, %v1087
      %v1120 = vmax.f32 %v1046, %v1088
      %v1121 = vmax.f32 %v1049, %v1089
      %v1122 = vmax.f32 %v1054, %v1090
      %v1123 = vmax.f32 %v1057, %v1091
      %v1124 = vlaneseq
      %v1125 = vshrl.u32 %v1124, 7
      %v1126 = vsub.s32 1, %v1125
      %v1127 = vrot.slane %v236, %v1126
      %v1128 = vmul.f32 %v1092, %v1127
      %v1129 = vmul.f32 %v1093, %v1127
      %v1130 = vmul.f32 %v1094, %v1127
      %v1131 = vmul.f32 %v1095, %v1127
      %v1132 = vmul.f32 %v1096, %v1127
      %v1133 = vmul.f32 %v1097, %v1127
      %v1134 = vmul.f32 %v1098, %v1127
      %v1135 = vmul.f32 %v1099, %v1127
      %v1136 = vmul.f32 %v1100, %v1127
      %v1137 = vmul.f32 %v1101, %v1127
      %v1138 = vmul.f32 %v1102, %v1127
      %v1139 = vmul.f32 %v1103, %v1127
      %v1140 = vmul.f32 %v1104, %v1127
      %v1141 = vmul.f32 %v1105, %v1127
      %v1142 = vmul.f32 %v1106, %v1127
      %v1143 = vmul.f32 %v1107, %v1127
      %v1144 = vmul.f32 %v1108, %v1127
      %v1145 = vmul.f32 %v1109, %v1127
      %v1146 = vmul.f32 %v1110, %v1127
      %v1147 = vmul.f32 %v1111, %v1127
      %v1148 = vmul.f32 %v1112, %v1127
      %v1149 = vmul.f32 %v1113, %v1127
      %v1150 = vmul.f32 %v1114, %v1127
      %v1151 = vmul.f32 %v1115, %v1127
      %v1152 = vmul.f32 %v1116, %v1127
      %v1153 = vmul.f32 %v1117, %v1127
      %v1154 = vmul.f32 %v1118, %v1127
      %v1155 = vmul.f32 %v1119, %v1127
      %v1156 = vmul.f32 %v1120, %v1127
      %v1157 = vmul.f32 %v1121, %v1127
      %v1158 = vmul.f32 %v1122, %v1127
      %v1159 = vmul.f32 %v1123, %v1127
      %v1160 = vlaneseq
      %v1161 = vshrl.u32 %v1160, 7
      %v1162 = vsub.s32 2, %v1161
      %v1163 = vrot.slane %v236, %v1162
      %v1164 = vadd.f32 %v1128, %v1163
      %v1165 = vadd.f32 %v1129, %v1163
      %v1166 = vadd.f32 %v1130, %v1163
      %v1167 = vadd.f32 %v1131, %v1163
      %v1168 = vadd.f32 %v1132, %v1163
      %v1169 = vadd.f32 %v1133, %v1163
      %v1170 = vadd.f32 %v1134, %v1163
      %v1171 = vadd.f32 %v1135, %v1163
      %v1172 = vadd.f32 %v1136, %v1163
      %v1173 = vadd.f32 %v1137, %v1163
      %v1174 = vadd.f32 %v1138, %v1163
      %v1175 = vadd.f32 %v1139, %v1163
      %v1176 = vadd.f32 %v1140, %v1163
      %v1177 = vadd.f32 %v1141, %v1163
      %v1178 = vadd.f32 %v1142, %v1163
      %v1179 = vadd.f32 %v1143, %v1163
      %v1180 = vadd.f32 %v1144, %v1163
      %v1181 = vadd.f32 %v1145, %v1163
      %v1182 = vadd.f32 %v1146, %v1163
      %v1183 = vadd.f32 %v1147, %v1163
      %v1184 = vadd.f32 %v1148, %v1163
      %v1185 = vadd.f32 %v1149, %v1163
      %v1186 = vadd.f32 %v1150, %v1163
      %v1187 = vadd.f32 %v1151, %v1163
      %v1188 = vadd.f32 %v1152, %v1163
      %v1189 = vadd.f32 %v1153, %v1163
      %v1190 = vadd.f32 %v1154, %v1163
      %v1191 = vadd.f32 %v1155, %v1163
      %v1192 = vadd.f32 %v1156, %v1163
      %v1193 = vadd.f32 %v1157, %v1163
      %v1194 = vadd.f32 %v1158, %v1163
      %v1195 = vadd.f32 %v1159, %v1163
      %1196 = vst.msk [vmem:[%s233] sm:$0xff] %vm689, %v1164
      %1197 = vst.msk [vmem:[%s233 + $0x8] sm:$0xff] %vm689, %v1165
      %1198 = vst.msk [vmem:[%s233 + $0x10] sm:$0xff] %vm689, %v1166
      %1199 = vst.msk [vmem:[%s233 + $0x18] sm:$0xff] %vm689, %v1167
      %1200 = vst.msk [vmem:[%s233 + $0x20] sm:$0xff] %vm689, %v1168
      %1201 = vst.msk [vmem:[%s233 + $0x28] sm:$0xff] %vm689, %v1169
      %1202 = vst.msk [vmem:[%s233 + $0x30] sm:$0xff] %vm689, %v1170
      %1203 = vst.msk [vmem:[%s233 + $0x38] sm:$0xff] %vm689, %v1171
      %1204 = vst.msk [vmem:[%s233 + $0x40] sm:$0xff] %vm689, %v1172
      %1205 = vst.msk [vmem:[%s233 + $0x48] sm:$0xff] %vm689, %v1173
      %1206 = vst.msk [vmem:[%s233 + $0x50] sm:$0xff] %vm689, %v1174
      %1207 = vst.msk [vmem:[%s233 + $0x58] sm:$0xff] %vm689, %v1175
      %1208 = vst.msk [vmem:[%s233 + $0x60] sm:$0xff] %vm689, %v1176
      %1209 = vst.msk [vmem:[%s233 + $0x68] sm:$0xff] %vm689, %v1177
      %1210 = vst.msk [vmem:[%s233 + $0x70] sm:$0xff] %vm689, %v1178
      %1211 = vst.msk [vmem:[%s233 + $0x78] sm:$0xff] %vm689, %v1179
      %1212 = vst.msk [vmem:[%s233 + $0x80] sm:$0xff] %vm689, %v1180
      %1213 = vst.msk [vmem:[%s233 + $0x88] sm:$0xff] %vm689, %v1181
      %1214 = vst.msk [vmem:[%s233 + $0x90] sm:$0xff] %vm689, %v1182
      %1215 = vst.msk [vmem:[%s233 + $0x98] sm:$0xff] %vm689, %v1183
      %1216 = vst.msk [vmem:[%s233 + $0xa0] sm:$0xff] %vm689, %v1184
      %1217 = vst.msk [vmem:[%s233 + $0xa8] sm:$0xff] %vm689, %v1185
      %1218 = vst.msk [vmem:[%s233 + $0xb0] sm:$0xff] %vm689, %v1186
      %1219 = vst.msk [vmem:[%s233 + $0xb8] sm:$0xff] %vm689, %v1187
      %1220 = vst.msk [vmem:[%s233 + $0xc0] sm:$0xff] %vm689, %v1188
      %1221 = vst.msk [vmem:[%s233 + $0xc8] sm:$0xff] %vm689, %v1189
      %1222 = vst.msk [vmem:[%s233 + $0xd0] sm:$0xff] %vm689, %v1190
      %1223 = vst.msk [vmem:[%s233 + $0xd8] sm:$0xff] %vm689, %v1191
      %1224 = vst.msk [vmem:[%s233 + $0xe0] sm:$0xff] %vm689, %v1192
      %1225 = vst.msk [vmem:[%s233 + $0xe8] sm:$0xff] %vm689, %v1193
      %1226 = vst.msk [vmem:[%s233 + $0xf0] sm:$0xff] %vm689, %v1194
      %1227 = vst.msk [vmem:[%s233 + $0xf8] sm:$0xff] %vm689, %v1195
      %s1228 = smul.u32 32, %s21
      %p1229 = scmp.lt.s32.totalorder %s1228, 95
      %s1230 = scalar_select %p1229, %s1228, 95
      %s1231 = smul.addr %s1230, 8
      %s1232 = scalar_lea.vmem %s4, %s1231
      // Predicated region
      $region33: #{single_window_disc_forward.7} parent=31 // pred_check
        %p1233 = pneg %p121
      $region34: #{single_window_disc_forward.7} parent=31 // pred_check_branch
        %1235 = sbr.rel (%p1233) target = $region36
      $region35: #{single_window_disc_forward.7} parent=31 // pred_region
        %s1236 = smul.u32 32, %s21
      $region36: #{single_window_disc_forward.7} parent=31 // pred_fallthru
        _
    $region32: #{single_window_disc_forward.7} parent=5 // pred_fallthru
      _
    %p1237 = scmp.le.s32.totalorder 2, %s16
    // Predicated region
    $region37: #{single_window_disc_forward.7} parent=5 // pred_check
      %p1238 = pneg %p1237
    $region38: #{single_window_disc_forward.7} parent=5 // pred_check_branch
      %1240 = sbr.rel (%p1238) target = $region40
    $region39: #{single_window_disc_forward.7} parent=5 // pred_region
      %s1241 = ssub.s32 %s16, 2
      // Predicated region
      $region41: #{single_window_disc_forward.7} parent=39 // pred_check
        %p1242 = pneg %p127
      $region42: #{single_window_disc_forward.7} parent=39 // pred_check_branch
        %1244 = sbr.rel (%p1242) target = $region44
      $region43: #{single_window_disc_forward.7} parent=39 // pred_region
        %s1245 = smul.u32 32, %s22
        %p1246 = scmp.lt.s32.totalorder %s1245, 95
        %s1247 = scalar_select %p1246, %s1245, 95
        %s1248 = smul.addr %s1247, 8
        %s1249 = scalar_lea.vmem %s4, %s1248
      $region44: #{single_window_disc_forward.7} parent=39 // pred_fallthru
        _
    $region40: #{single_window_disc_forward.7} parent=5 // pred_fallthru
      _
  $region6: #{single_window_disc_forward.7} parent=0 // loop_footer
    %s20 = sadd.s32 1, %s16
  $region7: #{single_window_disc_forward.7} parent=0 // loop_footer_branch
    %15 = sbr.rel target = $region3
  $region8: #{single_window_disc_forward.7} parent=0 // loop_exit
    _

// kernel: single_window_disc_forward.8
$region0: #{single_window_disc_forward.8}
  #allocation0 [shape = 'u32[]', space=smem, size = 0x4, offset = 0x4, fixed_abs, tag = 'smem constant byte address 0x4 - core index']
  #allocation1 [shape = 'u32[144,128]{1,0:T(1,128)}', space=vmem, size = 0x12000, scoped, tag = 'internal scratch']
  #allocation2 [shape = 's32[1]{0}', space=sflag, size = 0x4, scoped, tag = 'scoped memory for single_window_disc_forward.8']
  #allocation3 [shape = 'u8[512]{0}', space=smem, size = 0x200, scoped, tag = 'prefetched SMEM operand 0']
  %s0 = inlined_call_operand.vmem [shape: s32[2], index: 0, kind: input, shape index: {}]
  %s1 = inlined_call_operand.vmem [shape: bf16[160,288], index: 1, kind: input, shape index: {}]
  %s2 = inlined_call_operand.vmem [shape: bf16[2,288,32], index: 2, kind: input, shape index: {}]
  %s3 = inlined_call_operand.vmem [shape: f32[2,8,32], index: 3, kind: input, shape index: {}]
  %s4 = inlined_call_operand.vmem [shape: f32[160,32], index: 4, kind: output, shape index: {}]
  %s5 = sld [smem:[#allocation0]]
  $region45: #{single_window_disc_forward.8} parent=0
    _
  %s7 = ssub.s32 1, %s5
  %s8 = scalar_select 0, %s7, %s5
  %s9 = sshll.u32 %s0, 4
  %s10 = int_to_ptr.vmem [resolvable:$true] %s9
  %12 = dma.vmem_to_smem %s10, 16, [#allocation3], [#allocation2]
  %13 = dma.done [#allocation2], 16
  %14 = sfence
  loop: start=0, step=1, limit=4
  $region2: #{single_window_disc_forward.8} parent=0 // loop_pre_header
    _
  $region3: #{single_window_disc_forward.8} parent=0 // loop_header
    %s16 = sphi 0, %s20
    %p17 = scmp.ge.s32.totalorder %s16, 4
    %s26 = sphi 0, %s28
    %s29 = sphi 0, %s26
    %s30 = sphi 0, %s29
    %s46 = sphi 0, %s30
    %s54 = sphi 0, %s56
    %s57 = sphi 0, %s54
    %s58 = sphi 0, %s57
    %s74 = sphi 0, %s58
    %s82 = sphi 0, %s84
    %s85 = sphi 0, %s82
    %s86 = sphi 0, %s85
    %s102 = sphi 0, %s86
    %s108 = sphi 0, %s110
    %s111 = sphi 0, %s108
    %s112 = sphi 0, %s111
    %s128 = sphi 0, %s112
  $region4: #{single_window_disc_forward.8} parent=0 // loop_header_branch
    %19 = sbr.rel (%p17) target = $region8
  $region5: #{single_window_disc_forward.8} parent=0 // loop_body
    %s21 = ssub.s32 %s16, 1
    %s22 = ssub.s32 %s16, 2
    %s23 = sadd.s32 %s16, 1
    %s24 = ssub.s32 %s16, %s23
    %p25 = scmp.eq.s32.totalorder %s24, 0
    %s27 = sadd.s32 %s26, 1
    %s28 = scalar_select %p25, %s26, %s27
    %p31 = pneg %p25
    %p32 = scmp.eq.s32.totalorder %s16, 1
    %p33 = por %p31, %p32
    %p34 = scmp.ne.s32.totalorder %s26, %s29
    %p35 = scmp.eq.s32.totalorder %s16, 0
    %p36 = por %p34, %p35
    %p37 = scmp.ne.s32.totalorder %s26, %s29
    %p38 = scmp.eq.s32.totalorder %s21, 1
    %p39 = por %p37, %p38
    %p40 = scmp.ne.s32.totalorder %s29, %s30
    %p41 = scmp.eq.s32.totalorder %s21, 0
    %p42 = por %p40, %p41
    %p43 = scmp.ne.s32.totalorder %s29, %s30
    %p44 = scmp.eq.s32.totalorder %s22, 1
    %p45 = por %p43, %p44
    %p47 = scmp.ne.s32.totalorder %s30, %s46
    %p48 = scmp.eq.s32.totalorder %s22, 0
    %p49 = por %p47, %p48
    %s50 = sld [smem:[#allocation3 + %s16]]
    %s51 = sld [smem:[#allocation3 + %s23]]
    %s52 = ssub.s32 %s50, %s51
    %p53 = scmp.eq.s32.totalorder %s52, 0
    %s55 = sadd.s32 %s54, 1
    %s56 = scalar_select %p53, %s54, %s55
    %p59 = pneg %p53
    %p60 = scmp.eq.s32.totalorder %s16, 1
    %p61 = por %p59, %p60
    %p62 = scmp.ne.s32.totalorder %s54, %s57
    %p63 = scmp.eq.s32.totalorder %s16, 0
    %p64 = por %p62, %p63
    %p65 = scmp.ne.s32.totalorder %s54, %s57
    %p66 = scmp.eq.s32.totalorder %s21, 1
    %p67 = por %p65, %p66
    %p68 = scmp.ne.s32.totalorder %s57, %s58
    %p69 = scmp.eq.s32.totalorder %s21, 0
    %p70 = por %p68, %p69
    %p71 = scmp.ne.s32.totalorder %s57, %s58
    %p72 = scmp.eq.s32.totalorder %s22, 1
    %p73 = por %p71, %p72
    %p75 = scmp.ne.s32.totalorder %s58, %s74
    %p76 = scmp.eq.s32.totalorder %s22, 0
    %p77 = por %p75, %p76
    %s78 = sld [smem:[#allocation3 + %s16]]
    %s79 = sld [smem:[#allocation3 + %s23]]
    %s80 = ssub.s32 %s78, %s79
    %p81 = scmp.eq.s32.totalorder %s80, 0
    %s83 = sadd.s32 %s82, 1
    %s84 = scalar_select %p81, %s82, %s83
    %p87 = pneg %p81
    %p88 = scmp.eq.s32.totalorder %s16, 1
    %p89 = por %p87, %p88
    %p90 = scmp.ne.s32.totalorder %s82, %s85
    %p91 = scmp.eq.s32.totalorder %s16, 0
    %p92 = por %p90, %p91
    %p93 = scmp.ne.s32.totalorder %s82, %s85
    %p94 = scmp.eq.s32.totalorder %s21, 1
    %p95 = por %p93, %p94
    %p96 = scmp.ne.s32.totalorder %s85, %s86
    %p97 = scmp.eq.s32.totalorder %s21, 0
    %p98 = por %p96, %p97
    %p99 = scmp.ne.s32.totalorder %s85, %s86
    %p100 = scmp.eq.s32.totalorder %s22, 1
    %p101 = por %p99, %p100
    %p103 = scmp.ne.s32.totalorder %s86, %s102
    %p104 = scmp.eq.s32.totalorder %s22, 0
    %p105 = por %p103, %p104
    %s106 = ssub.s32 %s16, %s23
    %p107 = scmp.eq.s32.totalorder %s106, 0
    %s109 = sadd.s32 %s108, 1
    %s110 = scalar_select %p107, %s108, %s109
    %p113 = pneg %p107
    %p114 = scmp.eq.s32.totalorder %s16, 1
    %p115 = por %p113, %p114
    %p116 = scmp.ne.s32.totalorder %s108, %s111
    %p117 = scmp.eq.s32.totalorder %s16, 0
    %p118 = por %p116, %p117
    %p119 = scmp.ne.s32.totalorder %s108, %s111
    %p120 = scmp.eq.s32.totalorder %s21, 1
    %p121 = por %p119, %p120
    %p122 = scmp.ne.s32.totalorder %s111, %s112
    %p123 = scmp.eq.s32.totalorder %s21, 0
    %p124 = por %p122, %p123
    %p125 = scmp.ne.s32.totalorder %s111, %s112
    %p126 = scmp.eq.s32.totalorder %s22, 1
    %p127 = por %p125, %p126
    %p129 = scmp.ne.s32.totalorder %s112, %s128
    %p130 = scmp.eq.s32.totalorder %s22, 0
    %p131 = por %p129, %p130
    %p132 = scmp.le.s32.totalorder 1, %s16
    %p133 = scmp.lt.s32.totalorder %s16, 3
    %p134 = pnand %p132, %p133
    %p135 = pneg %p134
    // Predicated region
    $region9: #{single_window_disc_forward.8} parent=5 // pred_check
      _
    $region10: #{single_window_disc_forward.8} parent=5 // pred_check_branch
      %137 = sbr.rel (%p134) target = $region12
    $region11: #{single_window_disc_forward.8} parent=5 // pred_region
      %s138 = ssub.s32 %s16, 1
    $region12: #{single_window_disc_forward.8} parent=5 // pred_fallthru
      _
    %p139 = scmp.lt.s32.totalorder %s16, 2
    // Predicated region
    $region13: #{single_window_disc_forward.8} parent=5 // pred_check
      %p140 = pneg %p139
    $region14: #{single_window_disc_forward.8} parent=5 // pred_check_branch
      %142 = sbr.rel (%p140) target = $region16
    $region15: #{single_window_disc_forward.8} parent=5 // pred_region
      // Predicated region
      $region17: #{single_window_disc_forward.8} parent=15 // pred_check
        %p143 = pneg %p36
      $region18: #{single_window_disc_forward.8} parent=15 // pred_check_branch
        %145 = sbr.rel (%p143) target = $region20
      $region19: #{single_window_disc_forward.8} parent=15 // pred_region
        %s146 = smul.u32 10, %s16
        %p147 = scmp.lt.s32.totalorder %s146, 19
        %s148 = scalar_select %p147, %s146, 19
        %s149 = smul.addr %s148, 3
        %s150 = smul.addr %s149, 4
        %s151 = scalar_lea.vmem %s1, %s150
        %s152 = smul.u32 10, %s16
      $region20: #{single_window_disc_forward.8} parent=15 // pred_fallthru
        _
      // Predicated region
      $region21: #{single_window_disc_forward.8} parent=15 // pred_check
        %p153 = pneg %p64
      $region22: #{single_window_disc_forward.8} parent=15 // pred_check_branch
        %155 = sbr.rel (%p153) target = $region24
      $region23: #{single_window_disc_forward.8} parent=15 // pred_region
        %s156 = sld [smem:[#allocation3 + %s16]]
        %p157 = scmp.lt.s32.totalorder %s156, 1
        %s158 = scalar_select %p157, %s156, 1
        %s159 = smul.addr %s158, 36
        %s160 = smul.addr %s159, 4
        %s161 = scalar_lea.vmem %s2, %s160
        %s162 = sld [smem:[#allocation3 + %s16]]
      $region24: #{single_window_disc_forward.8} parent=15 // pred_fallthru
        _
      // Predicated region
      $region25: #{single_window_disc_forward.8} parent=15 // pred_check
        %p163 = pneg %p92
      $region26: #{single_window_disc_forward.8} parent=15 // pred_check_branch
        %165 = sbr.rel (%p163) target = $region28
      $region27: #{single_window_disc_forward.8} parent=15 // pred_region
        %s166 = sld [smem:[#allocation3 + %s16]]
        %p167 = scmp.lt.s32.totalorder %s166, 1
        %s168 = scalar_select %p167, %s166, 1
        %s169 = smul.addr %s168, 8
        %s170 = scalar_lea.vmem %s3, %s169
        %s171 = sld [smem:[#allocation3 + %s16]]
      $region28: #{single_window_disc_forward.8} parent=15 // pred_fallthru
        _
    $region16: #{single_window_disc_forward.8} parent=5 // pred_fallthru
      _
    %p172 = scmp.le.s32.totalorder 1, %s16
    %p173 = scmp.lt.s32.totalorder %s16, 3
    %p174 = pnand %p172, %p173
    %p175 = pneg %p174
    // Predicated region
    $region29: #{single_window_disc_forward.8} parent=5 // pred_check
      _
    $region30: #{single_window_disc_forward.8} parent=5 // pred_check_branch
      %177 = sbr.rel (%p174) target = $region32
    $region31: #{single_window_disc_forward.8} parent=5 // pred_region
      %s178 = ssub.s32 %s16, 1
      %s179 = smul.u32 10, %s21
      %p180 = scmp.lt.s32.totalorder %s179, 19
      %s181 = scalar_select %p180, %s179, 19
      %s182 = smul.addr %s181, 3
      %s183 = smul.addr %s182, 4
      %s184 = scalar_lea.vmem %s1, %s183
      %p185 = pneg %p42
      %p186 = pneg %p39
      %s187 = sld [smem:[#allocation3 + %s21]]
      %p188 = scmp.lt.s32.totalorder %s187, 1
      %s189 = scalar_select %p188, %s187, 1
      %s190 = smul.addr %s189, 36
      %s191 = smul.addr %s190, 4
      %s192 = scalar_lea.vmem %s2, %s191
      %p193 = pneg %p70
      %p194 = pneg %p67
      %s195 = sld [smem:[#allocation3 + %s21]]
      %p196 = scmp.lt.s32.totalorder %s195, 1
      %s197 = scalar_select %p196, %s195, 1
      %s198 = smul.addr %s197, 8
      %s199 = scalar_lea.vmem %s3, %s198
      %p200 = pneg %p98
      %p201 = pneg %p95
      %p202 = pneg %p124
      %p203 = pneg %p121
      %s204 = smul.u32 10, %s21
      %p205 = scmp.lt.s32.totalorder %s204, 19
      %s206 = scalar_select %p205, %s204, 19
      %s207 = smul.addr %s206, 8
      %s208 = scalar_lea.vmem %s4, %s207
      %s209 = smul.u32 10, %s21
      %p210 = scmp.lt.s32.totalorder %s209, 19
      %s211 = scalar_select %p210, %s209, 19
      %s212 = smul.addr %s211, 3
      %s213 = smul.addr %s212, 4
      %s214 = scalar_lea.vmem %s1, %s213
      %s215 = smul.u32 10, %s21
      %s216 = sld [smem:[#allocation3 + %s21]]
      %p217 = scmp.lt.s32.totalorder %s216, 1
      %s218 = scalar_select %p217, %s216, 1
      %s219 = smul.addr %s218, 36
      %s220 = smul.addr %s219, 4
      %s221 = scalar_lea.vmem %s2, %s220
      %s222 = sld [smem:[#allocation3 + %s21]]
      %s223 = sld [smem:[#allocation3 + %s21]]
      %p224 = scmp.lt.s32.totalorder %s223, 1
      %s225 = scalar_select %p224, %s223, 1
      %s226 = smul.addr %s225, 8
      %s227 = scalar_lea.vmem %s3, %s226
      %s228 = sld [smem:[#allocation3 + %s21]]
      %s229 = smul.u32 10, %s21
      %p230 = scmp.lt.s32.totalorder %s229, 19
      %s231 = scalar_select %p230, %s229, 19
      %s232 = smul.addr %s231, 8
      %s233 = scalar_lea.vmem %s4, %s232
      %s234 = smul.u32 10, %s21
      %v236 = vld [vmem:[%s227] sm:$0xff]
      %v237 = vld [vmem:[%s214] sm:$0xff]
      %v238 = vld [vmem:[%s214 + $0x8] sm:$0xf]
      %v239 = vld [vmem:[%s214 + $0xc] sm:$0xff]
      %v240 = vld [vmem:[%s214 + $0x14] sm:$0xf]
      %v241 = vld [vmem:[%s214 + $0x18] sm:$0xff]
      %v242 = vld [vmem:[%s214 + $0x20] sm:$0xf]
      %v243 = vld [vmem:[%s214 + $0x24] sm:$0xff]
      %v244 = vld [vmem:[%s214 + $0x2c] sm:$0xf]
      %v245 = vld [vmem:[%s214 + $0x30] sm:$0xff]
      %v246 = vld [vmem:[%s214 + $0x38] sm:$0xf]
      %v247 = vld [vmem:[%s214 + $0x3c] sm:$0xff]
      %v248 = vld [vmem:[%s214 + $0x44] sm:$0xf]
      %v249 = vld [vmem:[%s214 + $0x48] sm:$0xff]
      %v250 = vld [vmem:[%s214 + $0x50] sm:$0xf]
      %v251 = vld [vmem:[%s214 + $0x54] sm:$0xff]
      %v252 = vld [vmem:[%s214 + $0x5c] sm:$0xf]
      %v253 = vld [vmem:[%s214 + $0x60] sm:$0xff]
      %v254 = vld [vmem:[%s214 + $0x68] sm:$0xf]
      %v255 = vld [vmem:[%s214 + $0x6c] sm:$0xff]
      %v256 = vld [vmem:[%s214 + $0x74] sm:$0xf]
      %v257 = vld [vmem:[%s221] sm:$0xf]
      %v258 = vld [vmem:[%s221 + $0x4] sm:$0xf]
      %v259 = vld [vmem:[%s221 + $0x8] sm:$0xf]
      %v260 = vld [vmem:[%s221 + $0xc] sm:$0xf]
      %v261 = vld [vmem:[%s221 + $0x10] sm:$0xf]
      %v262 = vld [vmem:[%s221 + $0x14] sm:$0xf]
      %v263 = vld [vmem:[%s221 + $0x18] sm:$0xf]
      %v264 = vld [vmem:[%s221 + $0x1c] sm:$0xf]
      %v265 = vld [vmem:[%s221 + $0x20] sm:$0xf]
      %v266 = vld [vmem:[%s221 + $0x24] sm:$0xf]
      %v267 = vld [vmem:[%s221 + $0x28] sm:$0xf]
      %v268 = vld [vmem:[%s221 + $0x2c] sm:$0xf]
      %v269 = vld [vmem:[%s221 + $0x30] sm:$0xf]
      %v270 = vld [vmem:[%s221 + $0x34] sm:$0xf]
      %v271 = vld [vmem:[%s221 + $0x38] sm:$0xf]
      %v272 = vld [vmem:[%s221 + $0x3c] sm:$0xf]
      %v273 = vld [vmem:[%s221 + $0x40] sm:$0xf]
      %v274 = vld [vmem:[%s221 + $0x44] sm:$0xf]
      %v275 = vld [vmem:[%s221 + $0x48] sm:$0xf]
      %v276 = vld [vmem:[%s221 + $0x4c] sm:$0xf]
      %v277 = vld [vmem:[%s221 + $0x50] sm:$0xf]
      %v278 = vld [vmem:[%s221 + $0x54] sm:$0xf]
      %v279 = vld [vmem:[%s221 + $0x58] sm:$0xf]
      %v280 = vld [vmem:[%s221 + $0x5c] sm:$0xf]
      %v281 = vld [vmem:[%s221 + $0x60] sm:$0xf]
      %v282 = vld [vmem:[%s221 + $0x64] sm:$0xf]
      %v283 = vld [vmem:[%s221 + $0x68] sm:$0xf]
      %v284 = vld [vmem:[%s221 + $0x6c] sm:$0xf]
      %v285 = vld [vmem:[%s221 + $0x70] sm:$0xf]
      %v286 = vld [vmem:[%s221 + $0x74] sm:$0xf]
      %v287 = vld [vmem:[%s221 + $0x78] sm:$0xf]
      %v288 = vld [vmem:[%s221 + $0x7c] sm:$0xf]
      %v289 = vld [vmem:[%s221 + $0x80] sm:$0xf]
      %v290 = vld [vmem:[%s221 + $0x84] sm:$0xf]
      %v291 = vld [vmem:[%s221 + $0x88] sm:$0xf]
      %v292 = vld [vmem:[%s221 + $0x8c] sm:$0xf]
      %v293 = vlaneseq
      %v294 = vshrl.u32 %v293, 7
      %v295 = vsub.s32 0, %v294
      %v296 = vrot.slane %v236, %v295
      %v317 = vunpack.c.l.b16 %v237
      %v318 = vunpack.c.h.b16 %v237
      %v319 = vunpack.c.l.b16 %v238
      %v320 = vunpack.c.l.b16 %v239
      %v321 = vunpack.c.h.b16 %v239
      %v322 = vunpack.c.l.b16 %v240
      %v323 = vunpack.c.l.b16 %v241
      %v324 = vunpack.c.h.b16 %v241
      %v325 = vunpack.c.l.b16 %v242
      %v326 = vunpack.c.l.b16 %v243
      %v327 = vunpack.c.h.b16 %v243
      %v328 = vunpack.c.l.b16 %v244
      %v329 = vunpack.c.l.b16 %v245
      %v330 = vunpack.c.h.b16 %v245
      %v331 = vunpack.c.l.b16 %v246
      %v332 = vunpack.c.l.b16 %v247
      %v333 = vunpack.c.h.b16 %v247
      %v334 = vunpack.c.l.b16 %v248
      %v335 = vunpack.c.l.b16 %v249
      %v336 = vunpack.c.h.b16 %v249
      %v337 = vunpack.c.l.b16 %v250
      %v338 = vunpack.c.l.b16 %v251
      %v339 = vunpack.c.h.b16 %v251
      %v340 = vunpack.c.l.b16 %v252
      %v341 = vunpack.c.l.b16 %v253
      %v342 = vunpack.c.h.b16 %v253
      %v343 = vunpack.c.l.b16 %v254
      %v344 = vunpack.c.l.b16 %v255
      %v345 = vunpack.c.h.b16 %v255
      %v346 = vunpack.c.l.b16 %v256
      %v347 = vpack.c.b16 %v320, %v317
      %v348 = vpack.c.b16 %v321, %v318
      %v349 = vpack.c.b16 %v322, %v319
      %v350 = vpack.c.b16 %v326, %v323
      %v351 = vpack.c.b16 %v327, %v324
      %v352 = vpack.c.b16 %v328, %v325
      %v353 = vpack.c.b16 %v332, %v329
      %v354 = vpack.c.b16 %v333, %v330
      %v355 = vpack.c.b16 %v334, %v331
      %v356 = vpack.c.b16 %v338, %v335
      %v357 = vpack.c.b16 %v339, %v336
      %v358 = vpack.c.b16 %v340, %v337
      %v359 = vpack.c.b16 %v344, %v341
      %v360 = vpack.c.b16 %v345, %v342
      %v361 = vpack.c.b16 %v346, %v343
      %v408 = vunpack.c.l.b16 %v257
      %v409 = vunpack.c.l.b16 %v258
      %v410 = vunpack.c.l.b16 %v259
      %v411 = vunpack.c.l.b16 %v260
      %v412 = vunpack.c.l.b16 %v261
      %v413 = vunpack.c.l.b16 %v262
      %v414 = vunpack.c.l.b16 %v263
      %v415 = vunpack.c.l.b16 %v264
      %v416 = vunpack.c.l.b16 %v265
      %v417 = vunpack.c.l.b16 %v266
      %v418 = vunpack.c.l.b16 %v267
      %v419 = vunpack.c.l.b16 %v268
      %v420 = vunpack.c.l.b16 %v269
      %v421 = vunpack.c.l.b16 %v270
      %v422 = vunpack.c.l.b16 %v271
      %v423 = vunpack.c.l.b16 %v272
      %v424 = vunpack.c.l.b16 %v273
      %v425 = vunpack.c.l.b16 %v274
      %v426 = vunpack.c.l.b16 %v275
      %v427 = vunpack.c.l.b16 %v276
      %v428 = vunpack.c.l.b16 %v277
      %v429 = vunpack.c.l.b16 %v278
      %v430 = vunpack.c.l.b16 %v279
      %v431 = vunpack.c.l.b16 %v280
      %v432 = vunpack.c.l.b16 %v281
      %v433 = vunpack.c.l.b16 %v282
      %v434 = vunpack.c.l.b16 %v283
      %v435 = vunpack.c.l.b16 %v284
      %v436 = vunpack.c.l.b16 %v285
      %v437 = vunpack.c.l.b16 %v286
      %v438 = vunpack.c.l.b16 %v287
      %v439 = vunpack.c.l.b16 %v288
      %v440 = vunpack.c.l.b16 %v289
      %v441 = vunpack.c.l.b16 %v290
      %v442 = vunpack.c.l.b16 %v291
      %v443 = vunpack.c.l.b16 %v292
      %v444 = vpack.c.b16 %v409, %v408
      %v445 = vpack.c.b16 %v411, %v410
      %v446 = vpack.c.b16 %v413, %v412
      %v447 = vpack.c.b16 %v415, %v414
      %v448 = vpack.c.b16 %v417, %v416
      %v449 = vpack.c.b16 %v419, %v418
      %v450 = vpack.c.b16 %v421, %v420
      %v451 = vpack.c.b16 %v423, %v422
      %v452 = vpack.c.b16 %v425, %v424
      %v453 = vpack.c.b16 %v427, %v426
      %v454 = vpack.c.b16 %v429, %v428
      %v455 = vpack.c.b16 %v431, %v430
      %v456 = vpack.c.b16 %v433, %v432
      %v457 = vpack.c.b16 %v435, %v434
      %v458 = vpack.c.b16 %v437, %v436
      %v459 = vpack.c.b16 %v439, %v438
      %v460 = vpack.c.b16 %v441, %v440
      %v461 = vpack.c.b16 %v443, %v442
      %vm480 = vcmask 261120
      %v482 = vsel %vm480, %v349, 0
      %v485 = vsel %vm480, %v352, 0
      %v488 = vsel %vm480, %v355, 0
      %v491 = vsel %vm480, %v358, 0
      %v494 = vsel %vm480, %v361, 0
      %496 = vmatprep.subr.bf16.mxu0 0
      %497 = vmatpush1.bf16.msra.mxu0 %v444
      %498 = vmatprep.subr.bf16.mxu0 0
      %499 = vmatpush1.bf16.msra.mxu0 %v445
      %500 = vmatprep.subr.bf16.mxu0 0
      %501 = vmatpush1.bf16.msra.mxu0 %v446
      %502 = vmatprep.subr.bf16.mxu0 0
      %503 = vmatpush1.bf16.msra.mxu0 %v447
      %504 = vmatprep.subr.bf16.mxu0 0
      %505 = vmatpush1.bf16.msra.mxu0 %v448
      %506 = vmatprep.subr.bf16.mxu0 0
      %507 = vmatpush1.bf16.msra.mxu0 %v449
      %508 = vmatprep.subr.bf16.mxu0 0
      %509 = vmatpush1.bf16.msra.mxu0 %v450
      %510 = vmatprep.subr.bf16.mxu0 0
      %511 = vmatpush1.bf16.msra.mxu0 %v451
      %512 = vmatprep.subr.bf16.mxu0 0
      %513 = vmatpush1.bf16.msra.mxu0 %v452
      %514 = vmatprep.subr.bf16.mxu0 0
      %515 = vmatpush1.bf16.msra.mxu0 %v453
      %516 = vmatprep.subr.bf16.mxu0 0
      %517 = vmatpush1.bf16.msra.mxu0 %v454
      %518 = vmatprep.subr.bf16.mxu0 0
      %519 = vmatpush1.bf16.msra.mxu0 %v455
      %520 = vmatprep.subr.bf16.mxu0 0
      %521 = vmatpush1.bf16.msra.mxu0 %v456
      %522 = vmatprep.subr.bf16.mxu0 0
      %523 = vmatpush1.bf16.msra.mxu0 %v457
      %524 = vmatprep.subr.bf16.mxu0 0
      %525 = vmatpush1.bf16.msra.mxu0 %v458
      %526 = vmatprep.subr.bf16.mxu0 0
      %527 = vmatpush1.bf16.msra.mxu0 %v459
      %528 = vmatprep.mubr.bf16.mxu0 %v348
      %529 = vmatmul.mubr.bf16.gmra.mrb[0].mxu0 %v347
      %v530 = vpop.f32.mrb[0].mxu0
      %v531 = vadd.f32 %v296, %v530
      %v532 = vpop.f32.mrb[0].mxu0
      %v533 = vpop.f32.mrb[0].mxu0
      %v534 = vadd.f32 %v296, %v533
      %v535 = vpop.f32.mrb[0].mxu0
      %536 = vmatprep.mubr.bf16.mxu0 %v351
      %537 = vmatmul.mubr.bf16.gmra.mrb[0].mxu0 %v350
      %v538 = vpop.f32.mrb[0].mxu0
      %v539 = vadd.f32 %v296, %v538
      %v540 = vpop.f32.mrb[0].mxu0
      %v541 = vpop.f32.mrb[0].mxu0
      %v542 = vadd.f32 %v296, %v541
      %v543 = vpop.f32.mrb[0].mxu0
      %544 = vmatprep.mubr.bf16.mxu0 %v354
      %545 = vmatmul.mubr.bf16.gmra.mrb[0].mxu0 %v353
      %v546 = vpop.f32.mrb[0].mxu0
      %v547 = vadd.f32 %v296, %v546
      %v548 = vpop.f32.mrb[0].mxu0
      %v549 = vpop.f32.mrb[0].mxu0
      %v550 = vadd.f32 %v296, %v549
      %v551 = vpop.f32.mrb[0].mxu0
      %552 = vmatprep.mubr.bf16.mxu0 %v357
      %553 = vmatmul.mubr.bf16.gmra.mrb[0].mxu0 %v356
      %v554 = vpop.f32.mrb[0].mxu0
      %v555 = vadd.f32 %v296, %v554
      %v556 = vpop.f32.mrb[0].mxu0
      %v557 = vpop.f32.mrb[0].mxu0
      %v558 = vadd.f32 %v296, %v557
      %v559 = vpop.f32.mrb[0].mxu0
      %560 = vmatprep.mubr.bf16.mxu0 %v360
      %561 = vmatmul.mubr.bf16.gmra.mrb[0].mxu0 %v359
      %v562 = vpop.f32.mrb[0].mxu0
      %v563 = vadd.f32 %v296, %v562
      %v564 = vpop.f32.mrb[0].mxu0
      %v565 = vpop.f32.mrb[0].mxu0
      %v566 = vadd.f32 %v296, %v565
      %v567 = vpop.f32.mrb[0].mxu0
      %568 = vdwg.mxu0
      %569 = vmatprep.subr.bf16.mxu0 0
      %570 = vmatpush1.bf16.msra.mxu0 %v460
      %571 = vmatprep.subr.bf16.mxu0 0
      %572 = vmatpush1.bf16.msra.mxu0 %v461
      %573 = vmatprep.subr.bf16.mxu0 0
      %574 = vmatpush1.bf16.msra.mxu0 0
      %575 = vmatprep.subr.bf16.mxu0 0
      %576 = vmatpush1.bf16.msra.mxu0 0
      %577 = vmatprep.subr.bf16.mxu0 0
      %578 = vmatpush1.bf16.msra.mxu0 0
      %579 = vmatprep.subr.bf16.mxu0 0
      %580 = vmatpush1.bf16.msra.mxu0 0
      %581 = vmatprep.subr.bf16.mxu0 0
      %582 = vmatpush1.bf16.msra.mxu0 0
      %583 = vmatprep.subr.bf16.mxu0 0
      %584 = vmatpush1.bf16.msra.mxu0 0
      %585 = vmatprep.subr.bf16.mxu0 0
      %586 = vmatpush1.bf16.msra.mxu0 0
      %587 = vmatprep.subr.bf16.mxu0 0
      %588 = vmatpush1.bf16.msra.mxu0 0
      %589 = vmatprep.subr.bf16.mxu0 0
      %590 = vmatpush1.bf16.msra.mxu0 0
      %591 = vmatprep.subr.bf16.mxu0 0
      %592 = vmatpush1.bf16.msra.mxu0 0
      %593 = vmatprep.subr.bf16.mxu0 0
      %594 = vmatpush1.bf16.msra.mxu0 0
      %595 = vmatprep.subr.bf16.mxu0 0
      %596 = vmatpush1.bf16.msra.mxu0 0
      %597 = vmatprep.subr.bf16.mxu0 0
      %598 = vmatpush1.bf16.msra.mxu0 0
      %599 = vmatprep.subr.bf16.mxu0 0
      %600 = vmatpush1.bf16.msra.mxu0 0
      %601 = vmatprep.mubr.bf16.mxu0 0
      %602 = vmatmul.mubr.bf16.gmra.mrb[0].mxu0 %v482
      %v603 = vpop.f32.mrb[0].mxu0
      %v604 = vadd.f32 %v531, %v603
      %v605 = vpop.f32.mrb[0].mxu0
      %v606 = vpop.f32.mrb[0].mxu0
      %v607 = vadd.f32 %v534, %v606
      %v608 = vpop.f32.mrb[0].mxu0
      %609 = vmatprep.mubr.bf16.mxu0 0
      %610 = vmatmul.mubr.bf16.gmra.mrb[0].mxu0 %v485
      %v611 = vpop.f32.mrb[0].mxu0
      %v612 = vadd.f32 %v539, %v611
      %v613 = vpop.f32.mrb[0].mxu0
      %v614 = vpop.f32.mrb[0].mxu0
      %v615 = vadd.f32 %v542, %v614
      %v616 = vpop.f32.mrb[0].mxu0
      %617 = vmatprep.mubr.bf16.mxu0 0
      %618 = vmatmul.mubr.bf16.gmra.mrb[0].mxu0 %v488
      %v619 = vpop.f32.mrb[0].mxu0
      %v620 = vadd.f32 %v547, %v619
      %v621 = vpop.f32.mrb[0].mxu0
      %v622 = vpop.f32.mrb[0].mxu0
      %v623 = vadd.f32 %v550, %v622
      %v624 = vpop.f32.mrb[0].mxu0
      %625 = vmatprep.mubr.bf16.mxu0 0
      %626 = vmatmul.mubr.bf16.gmra.mrb[0].mxu0 %v491
      %v627 = vpop.f32.mrb[0].mxu0
      %v628 = vadd.f32 %v555, %v627
      %v629 = vpop.f32.mrb[0].mxu0
      %v630 = vpop.f32.mrb[0].mxu0
      %v631 = vadd.f32 %v558, %v630
      %v632 = vpop.f32.mrb[0].mxu0
      %633 = vmatprep.mubr.bf16.mxu0 0
      %634 = vmatmul.mubr.bf16.gmra.mrb[0].mxu0 %v494
      %v635 = vpop.f32.mrb[0].mxu0
      %v636 = vadd.f32 %v563, %v635
      %v637 = vpop.f32.mrb[0].mxu0
      %v638 = vpop.f32.mrb[0].mxu0
      %v639 = vadd.f32 %v566, %v638
      %v640 = vpop.f32.mrb[0].mxu0
      %641 = vdwg.mxu0
      %v642 = vmul.f32 %v604, 0.2
      %v643 = vmul.f32 %v607, 0.2
      %v644 = vmul.f32 %v612, 0.2
      %v645 = vmul.f32 %v615, 0.2
      %v646 = vmul.f32 %v620, 0.2
      %v647 = vmul.f32 %v623, 0.2
      %v648 = vmul.f32 %v628, 0.2
      %v649 = vmul.f32 %v631, 0.2
      %v650 = vmul.f32 %v636, 0.2
      %v651 = vmul.f32 %v639, 0.2
      %v652 = vmax.f32 %v604, %v642
      %v653 = vmax.f32 %v607, %v643
      %v654 = vmax.f32 %v612, %v644
      %v655 = vmax.f32 %v615, %v645
      %v656 = vmax.f32 %v620, %v646
      %v657 = vmax.f32 %v623, %v647
      %v658 = vmax.f32 %v628, %v648
      %v659 = vmax.f32 %v631, %v649
      %v660 = vmax.f32 %v636, %v650
      %v661 = vmax.f32 %v639, %v651
      %v662 = vlaneseq
      %v663 = vshrl.u32 %v662, 7
      %v664 = vsub.s32 1, %v663
      %v665 = vrot.slane %v236, %v664
      %v666 = vmul.f32 %v652, %v665
      %v667 = vmul.f32 %v653, %v665
      %v668 = vmul.f32 %v654, %v665
      %v669 = vmul.f32 %v655, %v665
      %v670 = vmul.f32 %v656, %v665
      %v671 = vmul.f32 %v657, %v665
      %v672 = vmul.f32 %v658, %v665
      %v673 = vmul.f32 %v659, %v665
      %v674 = vmul.f32 %v660, %v665
      %v675 = vmul.f32 %v661, %v665
      %v676 = vlaneseq
      %v677 = vshrl.u32 %v676, 7
      %v678 = vsub.s32 2, %v677
      %v679 = vrot.slane %v236, %v678
      %v680 = vadd.f32 %v666, %v679
      %v681 = vadd.f32 %v667, %v679
      %v682 = vadd.f32 %v668, %v679
      %v683 = vadd.f32 %v669, %v679
      %v684 = vadd.f32 %v670, %v679
      %v685 = vadd.f32 %v671, %v679
      %v686 = vadd.f32 %v672, %v679
      %v687 = vadd.f32 %v673, %v679
      %v688 = vadd.f32 %v674, %v679
      %v689 = vadd.f32 %v675, %v679
      %690 = vst.msk [vmem:[%s233] sm:$0xff] %vm480, %v680
      %691 = vst.msk [vmem:[%s233 + $0x8] sm:$0xff] %vm480, %v681
      %692 = vst.msk [vmem:[%s233 + $0x10] sm:$0xff] %vm480, %v682
      %693 = vst.msk [vmem:[%s233 + $0x18] sm:$0xff] %vm480, %v683
      %694 = vst.msk [vmem:[%s233 + $0x20] sm:$0xff] %vm480, %v684
      %695 = vst.msk [vmem:[%s233 + $0x28] sm:$0xff] %vm480, %v685
      %696 = vst.msk [vmem:[%s233 + $0x30] sm:$0xff] %vm480, %v686
      %697 = vst.msk [vmem:[%s233 + $0x38] sm:$0xff] %vm480, %v687
      %698 = vst.msk [vmem:[%s233 + $0x40] sm:$0xff] %vm480, %v688
      %699 = vst.msk [vmem:[%s233 + $0x48] sm:$0xff] %vm480, %v689
      %s700 = smul.u32 10, %s21
      %p701 = scmp.lt.s32.totalorder %s700, 19
      %s702 = scalar_select %p701, %s700, 19
      %s703 = smul.addr %s702, 8
      %s704 = scalar_lea.vmem %s4, %s703
      // Predicated region
      $region33: #{single_window_disc_forward.8} parent=31 // pred_check
        %p705 = pneg %p121
      $region34: #{single_window_disc_forward.8} parent=31 // pred_check_branch
        %707 = sbr.rel (%p705) target = $region36
      $region35: #{single_window_disc_forward.8} parent=31 // pred_region
        %s708 = smul.u32 10, %s21
      $region36: #{single_window_disc_forward.8} parent=31 // pred_fallthru
        _
    $region32: #{single_window_disc_forward.8} parent=5 // pred_fallthru
      _
    %p709 = scmp.le.s32.totalorder 2, %s16
    // Predicated region
    $region37: #{single_window_disc_forward.8} parent=5 // pred_check
      %p710 = pneg %p709
    $region38: #{single_window_disc_forward.8} parent=5 // pred_check_branch
      %712 = sbr.rel (%p710) target = $region40
    $region39: #{single_window_disc_forward.8} parent=5 // pred_region
      %s713 = ssub.s32 %s16, 2
      // Predicated region
      $region41: #{single_window_disc_forward.8} parent=39 // pred_check
        %p714 = pneg %p127
      $region42: #{single_window_disc_forward.8} parent=39 // pred_check_branch
        %716 = sbr.rel (%p714) target = $region44
      $region43: #{single_window_disc_forward.8} parent=39 // pred_region
        %s717 = smul.u32 10, %s22
        %p718 = scmp.lt.s32.totalorder %s717, 19
        %s719 = scalar_select %p718, %s717, 19
        %s720 = smul.addr %s719, 8
        %s721 = scalar_lea.vmem %s4, %s720
      $region44: #{single_window_disc_forward.8} parent=39 // pred_fallthru
        _
    $region40: #{single_window_disc_forward.8} parent=5 // pred_fallthru
      _
  $region6: #{single_window_disc_forward.8} parent=0 // loop_footer
    %s20 = sadd.s32 1, %s16
  $region7: #{single_window_disc_forward.8} parent=0 // loop_footer_branch
    %15 = sbr.rel target = $region3
  $region8: #{single_window_disc_forward.8} parent=0 // loop_exit
    _

// kernel: single_window_disc_forward.9
$region0: #{single_window_disc_forward.9}
  #allocation0 [shape = 'u32[]', space=smem, size = 0x4, offset = 0x4, fixed_abs, tag = 'smem constant byte address 0x4 - core index']
  #allocation1 [shape = 'u32[144,128]{1,0:T(1,128)}', space=vmem, size = 0x12000, scoped, tag = 'internal scratch']
  #allocation2 [shape = 's32[1]{0}', space=sflag, size = 0x4, scoped, tag = 'scoped memory for single_window_disc_forward.9']
  #allocation3 [shape = 's32[1]{0:T(128)S(6)}', space=smem, size = 0x200, scoped, tag = 'prefetched SMEM operand 0']
  %s0 = inlined_call_operand.<no memory space> [shape: s32[1], index: 0, kind: input, shape index: {}]
  %s1 = inlined_call_operand.vmem [shape: bf16[16,1216], index: 1, kind: input, shape index: {}]
  %s2 = inlined_call_operand.vmem [shape: bf16[1,1216,2], index: 2, kind: input, shape index: {}]
  %s3 = inlined_call_operand.vmem [shape: f32[1,8,2], index: 3, kind: input, shape index: {}]
  %s4 = inlined_call_operand.vmem [shape: f32[16,2], index: 4, kind: output, shape index: {}]
  %s5 = sld [smem:[#allocation0]]
  $region22: #{single_window_disc_forward.9} parent=0
    _
  %s7 = ssub.s32 1, %s5
  %s8 = scalar_select 0, %s7, %s5
  %9 = sst [smem:[#allocation3]] %s0
  // Predicated region
  $region2: #{single_window_disc_forward.9} parent=0 // pred_check
    _
  $region3: #{single_window_disc_forward.9} parent=0 // pred_check_branch
    %11 = sbr.rel (0) target = $region5
  $region4: #{single_window_disc_forward.9} parent=0 // pred_region
    _
  $region5: #{single_window_disc_forward.9} parent=0 // pred_fallthru
    _
  // Predicated region
  $region6: #{single_window_disc_forward.9} parent=0 // pred_check
    _
  $region7: #{single_window_disc_forward.9} parent=0 // pred_check_branch
    %13 = sbr.rel (0) target = $region9
  $region8: #{single_window_disc_forward.9} parent=0 // pred_region
    %s14 = sld [smem:[#allocation3]]
    %p15 = scmp.lt.s32.totalorder %s14, 0
    %s16 = scalar_select %p15, %s14, 0
    %s17 = smul.addr %s16, 152
    %s18 = smul.addr %s17, 4
    %s19 = scalar_lea.vmem %s2, %s18
    %s20 = sld [smem:[#allocation3]]
  $region9: #{single_window_disc_forward.9} parent=0 // pred_fallthru
    _
  // Predicated region
  $region10: #{single_window_disc_forward.9} parent=0 // pred_check
    _
  $region11: #{single_window_disc_forward.9} parent=0 // pred_check_branch
    %22 = sbr.rel (0) target = $region13
  $region12: #{single_window_disc_forward.9} parent=0 // pred_region
    %s23 = sld [smem:[#allocation3]]
    %p24 = scmp.lt.s32.totalorder %s23, 0
    %s25 = scalar_select %p24, %s23, 0
    %s26 = smul.addr %s25, 8
    %s27 = scalar_lea.vmem %s3, %s26
    %s28 = sld [smem:[#allocation3]]
  $region13: #{single_window_disc_forward.9} parent=0 // pred_fallthru
    _
  %s29 = sld [smem:[#allocation3]]
  %p30 = scmp.lt.s32.totalorder %s29, 0
  %s31 = scalar_select %p30, %s29, 0
  %s32 = smul.addr %s31, 152
  %s33 = smul.addr %s32, 4
  %s34 = scalar_lea.vmem %s2, %s33
  %s35 = sld [smem:[#allocation3]]
  %p36 = scmp.lt.s32.totalorder %s35, 0
  %s37 = scalar_select %p36, %s35, 0
  %s38 = smul.addr %s37, 8
  %s39 = scalar_lea.vmem %s3, %s38
  %s40 = sld [smem:[#allocation3]]
  %p41 = scmp.lt.s32.totalorder %s40, 0
  %s42 = scalar_select %p41, %s40, 0
  %s43 = smul.addr %s42, 152
  %s44 = smul.addr %s43, 4
  %s45 = scalar_lea.vmem %s2, %s44
  %s46 = sld [smem:[#allocation3]]
  %s47 = sld [smem:[#allocation3]]
  %p48 = scmp.lt.s32.totalorder %s47, 0
  %s49 = scalar_select %p48, %s47, 0
  %s50 = smul.addr %s49, 8
  %s51 = scalar_lea.vmem %s3, %s50
  %s52 = sld [smem:[#allocation3]]
  %v54 = vld [vmem:[%s51] sm:$0xff]
  %v55 = vld [vmem:[%s1] sm:$0xff]
  %v56 = vld [vmem:[%s1 + $0x8] sm:$0xff]
  %v57 = vld [vmem:[%s1 + $0x10] sm:$0xff]
  %v58 = vld [vmem:[%s1 + $0x18] sm:$0xff]
  %v59 = vld [vmem:[%s1 + $0x20] sm:$0xff]
  %v60 = vld [vmem:[%s1 + $0x28] sm:$0xff]
  %v61 = vld [vmem:[%s1 + $0x30] sm:$0xff]
  %v62 = vld [vmem:[%s1 + $0x38] sm:$0xff]
  %v63 = vld [vmem:[%s1 + $0x40] sm:$0xff]
  %v64 = vld [vmem:[%s1 + $0x48] sm:$0xff]
  %v65 = vld [vmem:[%s45] sm:$0xf]
  %v66 = vld [vmem:[%s45 + $0x4] sm:$0xf]
  %v67 = vld [vmem:[%s45 + $0x8] sm:$0xf]
  %v68 = vld [vmem:[%s45 + $0xc] sm:$0xf]
  %v69 = vld [vmem:[%s45 + $0x10] sm:$0xf]
  %v70 = vld [vmem:[%s45 + $0x14] sm:$0xf]
  %v71 = vld [vmem:[%s45 + $0x18] sm:$0xf]
  %v72 = vld [vmem:[%s45 + $0x1c] sm:$0xf]
  %v73 = vld [vmem:[%s45 + $0x20] sm:$0xf]
  %v74 = vld [vmem:[%s45 + $0x24] sm:$0xf]
  %v75 = vld [vmem:[%s45 + $0x28] sm:$0xf]
  %v76 = vld [vmem:[%s45 + $0x2c] sm:$0xf]
  %v77 = vld [vmem:[%s45 + $0x30] sm:$0xf]
  %v78 = vld [vmem:[%s45 + $0x34] sm:$0xf]
  %v79 = vld [vmem:[%s45 + $0x38] sm:$0xf]
  %v80 = vld [vmem:[%s45 + $0x3c] sm:$0xf]
  %v81 = vld [vmem:[%s45 + $0x40] sm:$0xf]
  %v82 = vld [vmem:[%s45 + $0x44] sm:$0xf]
  %v83 = vld [vmem:[%s45 + $0x48] sm:$0xf]
  %v84 = vld [vmem:[%s45 + $0x4c] sm:$0xf]
  %v85 = vld [vmem:[%s45 + $0x50] sm:$0xf]
  %v86 = vld [vmem:[%s45 + $0x54] sm:$0xf]
  %v87 = vld [vmem:[%s45 + $0x58] sm:$0xf]
  %v88 = vld [vmem:[%s45 + $0x5c] sm:$0xf]
  %v89 = vld [vmem:[%s45 + $0x60] sm:$0xf]
  %v90 = vld [vmem:[%s45 + $0x64] sm:$0xf]
  %v91 = vld [vmem:[%s45 + $0x68] sm:$0xf]
  %v92 = vld [vmem:[%s45 + $0x6c] sm:$0xf]
  %v93 = vld [vmem:[%s45 + $0x70] sm:$0xf]
  %v94 = vld [vmem:[%s45 + $0x74] sm:$0xf]
  %v95 = vld [vmem:[%s45 + $0x78] sm:$0xf]
  %v96 = vld [vmem:[%s45 + $0x7c] sm:$0xf]
  %v97 = vld [vmem:[%s45 + $0x80] sm:$0xf]
  %v98 = vld [vmem:[%s45 + $0x84] sm:$0xf]
  %v99 = vld [vmem:[%s45 + $0x88] sm:$0xf]
  %v100 = vld [vmem:[%s45 + $0x8c] sm:$0xf]
  %v101 = vld [vmem:[%s45 + $0x90] sm:$0xf]
  %v102 = vld [vmem:[%s45 + $0x94] sm:$0xf]
  %v103 = vld [vmem:[%s45 + $0x98] sm:$0xf]
  %v104 = vld [vmem:[%s45 + $0x9c] sm:$0xf]
  %v105 = vld [vmem:[%s45 + $0xa0] sm:$0xf]
  %v106 = vld [vmem:[%s45 + $0xa4] sm:$0xf]
  %v107 = vld [vmem:[%s45 + $0xa8] sm:$0xf]
  %v108 = vld [vmem:[%s45 + $0xac] sm:$0xf]
  %v109 = vld [vmem:[%s45 + $0xb0] sm:$0xf]
  %v110 = vld [vmem:[%s45 + $0xb4] sm:$0xf]
  %v111 = vld [vmem:[%s45 + $0xb8] sm:$0xf]
  %v112 = vld [vmem:[%s45 + $0xbc] sm:$0xf]
  %v113 = vld [vmem:[%s45 + $0xc0] sm:$0xf]
  %v114 = vld [vmem:[%s45 + $0xc4] sm:$0xf]
  %v115 = vld [vmem:[%s45 + $0xc8] sm:$0xf]
  %v116 = vld [vmem:[%s45 + $0xcc] sm:$0xf]
  %v117 = vld [vmem:[%s45 + $0xd0] sm:$0xf]
  %v118 = vld [vmem:[%s45 + $0xd4] sm:$0xf]
  %v119 = vld [vmem:[%s45 + $0xd8] sm:$0xf]
  %v120 = vld [vmem:[%s45 + $0xdc] sm:$0xf]
  %v121 = vld [vmem:[%s45 + $0xe0] sm:$0xf]
  %v122 = vld [vmem:[%s45 + $0xe4] sm:$0xf]
  %v123 = vld [vmem:[%s45 + $0xe8] sm:$0xf]
  %v124 = vld [vmem:[%s45 + $0xec] sm:$0xf]
  %v125 = vld [vmem:[%s45 + $0xf0] sm:$0xf]
  %v126 = vld [vmem:[%s45 + $0xf4] sm:$0xf]
  %v127 = vld [vmem:[%s45 + $0xf8] sm:$0xf]
  %v128 = vld [vmem:[%s45 + $0xfc] sm:$0xf]
  %v129 = vld [vmem:[%s45 + $0x100] sm:$0xf]
  %v130 = vld [vmem:[%s45 + $0x104] sm:$0xf]
  %v131 = vld [vmem:[%s45 + $0x108] sm:$0xf]
  %v132 = vld [vmem:[%s45 + $0x10c] sm:$0xf]
  %v133 = vld [vmem:[%s45 + $0x110] sm:$0xf]
  %v134 = vld [vmem:[%s45 + $0x114] sm:$0xf]
  %v135 = vld [vmem:[%s45 + $0x118] sm:$0xf]
  %v136 = vld [vmem:[%s45 + $0x11c] sm:$0xf]
  %v137 = vld [vmem:[%s45 + $0x120] sm:$0xf]
  %v138 = vld [vmem:[%s45 + $0x124] sm:$0xf]
  %v139 = vld [vmem:[%s45 + $0x128] sm:$0xf]
  %v140 = vld [vmem:[%s45 + $0x12c] sm:$0xf]
  %v141 = vld [vmem:[%s45 + $0x130] sm:$0xf]
  %v142 = vld [vmem:[%s45 + $0x134] sm:$0xf]
  %v143 = vld [vmem:[%s45 + $0x138] sm:$0xf]
  %v144 = vld [vmem:[%s45 + $0x13c] sm:$0xf]
  %v145 = vld [vmem:[%s45 + $0x140] sm:$0xf]
  %v146 = vld [vmem:[%s45 + $0x144] sm:$0xf]
  %v147 = vld [vmem:[%s45 + $0x148] sm:$0xf]
  %v148 = vld [vmem:[%s45 + $0x14c] sm:$0xf]
  %v149 = vld [vmem:[%s45 + $0x150] sm:$0xf]
  %v150 = vld [vmem:[%s45 + $0x154] sm:$0xf]
  %v151 = vld [vmem:[%s45 + $0x158] sm:$0xf]
  %v152 = vld [vmem:[%s45 + $0x15c] sm:$0xf]
  %v153 = vld [vmem:[%s45 + $0x160] sm:$0xf]
  %v154 = vld [vmem:[%s45 + $0x164] sm:$0xf]
  %v155 = vld [vmem:[%s45 + $0x168] sm:$0xf]
  %v156 = vld [vmem:[%s45 + $0x16c] sm:$0xf]
  %v157 = vld [vmem:[%s45 + $0x170] sm:$0xf]
  %v158 = vld [vmem:[%s45 + $0x174] sm:$0xf]
  %v159 = vld [vmem:[%s45 + $0x178] sm:$0xf]
  %v160 = vld [vmem:[%s45 + $0x17c] sm:$0xf]
  %v161 = vld [vmem:[%s45 + $0x180] sm:$0xf]
  %v162 = vld [vmem:[%s45 + $0x184] sm:$0xf]
  %v163 = vld [vmem:[%s45 + $0x188] sm:$0xf]
  %v164 = vld [vmem:[%s45 + $0x18c] sm:$0xf]
  %v165 = vld [vmem:[%s45 + $0x190] sm:$0xf]
  %v166 = vld [vmem:[%s45 + $0x194] sm:$0xf]
  %v167 = vld [vmem:[%s45 + $0x198] sm:$0xf]
  %v168 = vld [vmem:[%s45 + $0x19c] sm:$0xf]
  %v169 = vld [vmem:[%s45 + $0x1a0] sm:$0xf]
  %v170 = vld [vmem:[%s45 + $0x1a4] sm:$0xf]
  %v171 = vld [vmem:[%s45 + $0x1a8] sm:$0xf]
  %v172 = vld [vmem:[%s45 + $0x1ac] sm:$0xf]
  %v173 = vld [vmem:[%s45 + $0x1b0] sm:$0xf]
  %v174 = vld [vmem:[%s45 + $0x1b4] sm:$0xf]
  %v175 = vld [vmem:[%s45 + $0x1b8] sm:$0xf]
  %v176 = vld [vmem:[%s45 + $0x1bc] sm:$0xf]
  %v177 = vld [vmem:[%s45 + $0x1c0] sm:$0xf]
  %v178 = vld [vmem:[%s45 + $0x1c4] sm:$0xf]
  %v179 = vld [vmem:[%s45 + $0x1c8] sm:$0xf]
  %v180 = vld [vmem:[%s45 + $0x1cc] sm:$0xf]
  %v181 = vld [vmem:[%s45 + $0x1d0] sm:$0xf]
  %v182 = vld [vmem:[%s45 + $0x1d4] sm:$0xf]
  %v183 = vld [vmem:[%s45 + $0x1d8] sm:$0xf]
  %v184 = vld [vmem:[%s45 + $0x1dc] sm:$0xf]
  %v185 = vld [vmem:[%s45 + $0x1e0] sm:$0xf]
  %v186 = vld [vmem:[%s45 + $0x1e4] sm:$0xf]
  %v187 = vld [vmem:[%s45 + $0x1e8] sm:$0xf]
  %v188 = vld [vmem:[%s45 + $0x1ec] sm:$0xf]
  %v189 = vld [vmem:[%s45 + $0x1f0] sm:$0xf]
  %v190 = vld [vmem:[%s45 + $0x1f4] sm:$0xf]
  %v191 = vld [vmem:[%s45 + $0x1f8] sm:$0xf]
  %v192 = vld [vmem:[%s45 + $0x1fc] sm:$0xf]
  %v193 = vld [vmem:[%s45 + $0x200] sm:$0xf]
  %v194 = vld [vmem:[%s45 + $0x204] sm:$0xf]
  %v195 = vld [vmem:[%s45 + $0x208] sm:$0xf]
  %v196 = vld [vmem:[%s45 + $0x20c] sm:$0xf]
  %v197 = vld [vmem:[%s45 + $0x210] sm:$0xf]
  %v198 = vld [vmem:[%s45 + $0x214] sm:$0xf]
  %v199 = vld [vmem:[%s45 + $0x218] sm:$0xf]
  %v200 = vld [vmem:[%s45 + $0x21c] sm:$0xf]
  %v201 = vld [vmem:[%s45 + $0x220] sm:$0xf]
  %v202 = vld [vmem:[%s45 + $0x224] sm:$0xf]
  %v203 = vld [vmem:[%s45 + $0x228] sm:$0xf]
  %v204 = vld [vmem:[%s45 + $0x22c] sm:$0xf]
  %v205 = vld [vmem:[%s45 + $0x230] sm:$0xf]
  %v206 = vld [vmem:[%s45 + $0x234] sm:$0xf]
  %v207 = vld [vmem:[%s45 + $0x238] sm:$0xf]
  %v208 = vld [vmem:[%s45 + $0x23c] sm:$0xf]
  %v209 = vld [vmem:[%s45 + $0x240] sm:$0xf]
  %v210 = vld [vmem:[%s45 + $0x244] sm:$0xf]
  %v211 = vld [vmem:[%s45 + $0x248] sm:$0xf]
  %v212 = vld [vmem:[%s45 + $0x24c] sm:$0xf]
  %v213 = vld [vmem:[%s45 + $0x250] sm:$0xf]
  %v214 = vld [vmem:[%s45 + $0x254] sm:$0xf]
  %v215 = vld [vmem:[%s45 + $0x258] sm:$0xf]
  %v216 = vld [vmem:[%s45 + $0x25c] sm:$0xf]
  %v217 = vlaneseq
  %v218 = vshrl.u32 %v217, 7
  %v219 = vsub.s32 0, %v218
  %v220 = vrot.slane %v54, %v219
  %v231 = vunpack.c.l.b16 %v55
  %v232 = vunpack.c.h.b16 %v55
  %v233 = vunpack.c.l.b16 %v56
  %v234 = vunpack.c.h.b16 %v56
  %v235 = vunpack.c.l.b16 %v57
  %v236 = vunpack.c.h.b16 %v57
  %v237 = vunpack.c.l.b16 %v58
  %v238 = vunpack.c.h.b16 %v58
  %v239 = vunpack.c.l.b16 %v59
  %v240 = vunpack.c.h.b16 %v59
  %v241 = vunpack.c.l.b16 %v60
  %v242 = vunpack.c.h.b16 %v60
  %v243 = vunpack.c.l.b16 %v61
  %v244 = vunpack.c.h.b16 %v61
  %v245 = vunpack.c.l.b16 %v62
  %v246 = vunpack.c.h.b16 %v62
  %v247 = vunpack.c.l.b16 %v63
  %v248 = vunpack.c.h.b16 %v63
  %v249 = vunpack.c.l.b16 %v64
  %v250 = vunpack.c.h.b16 %v64
  %v251 = vpack.c.b16 %v241, %v231
  %v252 = vpack.c.b16 %v242, %v232
  %v253 = vpack.c.b16 %v243, %v233
  %v254 = vpack.c.b16 %v244, %v234
  %v255 = vpack.c.b16 %v245, %v235
  %v256 = vpack.c.b16 %v246, %v236
  %v257 = vpack.c.b16 %v247, %v237
  %v258 = vpack.c.b16 %v248, %v238
  %v259 = vpack.c.b16 %v249, %v239
  %v260 = vpack.c.b16 %v250, %v240
  %v422 = vunpack.c.l.b16 %v65
  %v423 = vunpack.c.l.b16 %v66
  %v424 = vunpack.c.l.b16 %v67
  %v425 = vunpack.c.l.b16 %v68
  %v426 = vunpack.c.l.b16 %v69
  %v427 = vunpack.c.l.b16 %v70
  %v428 = vunpack.c.l.b16 %v71
  %v429 = vunpack.c.l.b16 %v72
  %v430 = vunpack.c.l.b16 %v73
  %v431 = vunpack.c.l.b16 %v74
  %v432 = vunpack.c.l.b16 %v75
  %v433 = vunpack.c.l.b16 %v76
  %v434 = vunpack.c.l.b16 %v77
  %v435 = vunpack.c.l.b16 %v78
  %v436 = vunpack.c.l.b16 %v79
  %v437 = vunpack.c.l.b16 %v80
  %v438 = vunpack.c.l.b16 %v81
  %v439 = vunpack.c.l.b16 %v82
  %v440 = vunpack.c.l.b16 %v83
  %v441 = vunpack.c.l.b16 %v84
  %v442 = vunpack.c.l.b16 %v85
  %v443 = vunpack.c.l.b16 %v86
  %v444 = vunpack.c.l.b16 %v87
  %v445 = vunpack.c.l.b16 %v88
  %v446 = vunpack.c.l.b16 %v89
  %v447 = vunpack.c.l.b16 %v90
  %v448 = vunpack.c.l.b16 %v91
  %v449 = vunpack.c.l.b16 %v92
  %v450 = vunpack.c.l.b16 %v93
  %v451 = vunpack.c.l.b16 %v94
  %v452 = vunpack.c.l.b16 %v95
  %v453 = vunpack.c.l.b16 %v96
  %v454 = vunpack.c.l.b16 %v97
  %v455 = vunpack.c.l.b16 %v98
  %v456 = vunpack.c.l.b16 %v99
  %v457 = vunpack.c.l.b16 %v100
  %v458 = vunpack.c.l.b16 %v101
  %v459 = vunpack.c.l.b16 %v102
  %v460 = vunpack.c.l.b16 %v103
  %v461 = vunpack.c.l.b16 %v104
  %v462 = vunpack.c.l.b16 %v105
  %v463 = vunpack.c.l.b16 %v106
  %v464 = vunpack.c.l.b16 %v107
  %v465 = vunpack.c.l.b16 %v108
  %v466 = vunpack.c.l.b16 %v109
  %v467 = vunpack.c.l.b16 %v110
  %v468 = vunpack.c.l.b16 %v111
  %v469 = vunpack.c.l.b16 %v112
  %v470 = vunpack.c.l.b16 %v113
  %v471 = vunpack.c.l.b16 %v114
  %v472 = vunpack.c.l.b16 %v115
  %v473 = vunpack.c.l.b16 %v116
  %v474 = vunpack.c.l.b16 %v117
  %v475 = vunpack.c.l.b16 %v118
  %v476 = vunpack.c.l.b16 %v119
  %v477 = vunpack.c.l.b16 %v120
  %v478 = vunpack.c.l.b16 %v121
  %v479 = vunpack.c.l.b16 %v122
  %v480 = vunpack.c.l.b16 %v123
  %v481 = vunpack.c.l.b16 %v124
  %v482 = vunpack.c.l.b16 %v125
  %v483 = vunpack.c.l.b16 %v126
  %v484 = vunpack.c.l.b16 %v127
  %v485 = vunpack.c.l.b16 %v128
  %v486 = vunpack.c.l.b16 %v129
  %v487 = vunpack.c.l.b16 %v130
  %v488 = vunpack.c.l.b16 %v131
  %v489 = vunpack.c.l.b16 %v132
  %v490 = vunpack.c.l.b16 %v133
  %v491 = vunpack.c.l.b16 %v134
  %v492 = vunpack.c.l.b16 %v135
  %v493 = vunpack.c.l.b16 %v136
  %v494 = vunpack.c.l.b16 %v137
  %v495 = vunpack.c.l.b16 %v138
  %v496 = vunpack.c.l.b16 %v139
  %v497 = vunpack.c.l.b16 %v140
  %v498 = vunpack.c.l.b16 %v141
  %v499 = vunpack.c.l.b16 %v142
  %v500 = vunpack.c.l.b16 %v143
  %v501 = vunpack.c.l.b16 %v144
  %v502 = vunpack.c.l.b16 %v145
  %v503 = vunpack.c.l.b16 %v146
  %v504 = vunpack.c.l.b16 %v147
  %v505 = vunpack.c.l.b16 %v148
  %v506 = vunpack.c.l.b16 %v149
  %v507 = vunpack.c.l.b16 %v150
  %v508 = vunpack.c.l.b16 %v151
  %v509 = vunpack.c.l.b16 %v152
  %v510 = vunpack.c.l.b16 %v153
  %v511 = vunpack.c.l.b16 %v154
  %v512 = vunpack.c.l.b16 %v155
  %v513 = vunpack.c.l.b16 %v156
  %v514 = vunpack.c.l.b16 %v157
  %v515 = vunpack.c.l.b16 %v158
  %v516 = vunpack.c.l.b16 %v159
  %v517 = vunpack.c.l.b16 %v160
  %v518 = vunpack.c.l.b16 %v161
  %v519 = vunpack.c.l.b16 %v162
  %v520 = vunpack.c.l.b16 %v163
  %v521 = vunpack.c.l.b16 %v164
  %v522 = vunpack.c.l.b16 %v165
  %v523 = vunpack.c.l.b16 %v166
  %v524 = vunpack.c.l.b16 %v167
  %v525 = vunpack.c.l.b16 %v168
  %v526 = vunpack.c.l.b16 %v169
  %v527 = vunpack.c.l.b16 %v170
  %v528 = vunpack.c.l.b16 %v171
  %v529 = vunpack.c.l.b16 %v172
  %v530 = vunpack.c.l.b16 %v173
  %v531 = vunpack.c.l.b16 %v174
  %v532 = vunpack.c.l.b16 %v175
  %v533 = vunpack.c.l.b16 %v176
  %v534 = vunpack.c.l.b16 %v177
  %v535 = vunpack.c.l.b16 %v178
  %v536 = vunpack.c.l.b16 %v179
  %v537 = vunpack.c.l.b16 %v180
  %v538 = vunpack.c.l.b16 %v181
  %v539 = vunpack.c.l.b16 %v182
  %v540 = vunpack.c.l.b16 %v183
  %v541 = vunpack.c.l.b16 %v184
  %v542 = vunpack.c.l.b16 %v185
  %v543 = vunpack.c.l.b16 %v186
  %v544 = vunpack.c.l.b16 %v187
  %v545 = vunpack.c.l.b16 %v188
  %v546 = vunpack.c.l.b16 %v189
  %v547 = vunpack.c.l.b16 %v190
  %v548 = vunpack.c.l.b16 %v191
  %v549 = vunpack.c.l.b16 %v192
  %v550 = vunpack.c.l.b16 %v193
  %v551 = vunpack.c.l.b16 %v194
  %v552 = vunpack.c.l.b16 %v195
  %v553 = vunpack.c.l.b16 %v196
  %v554 = vunpack.c.l.b16 %v197
  %v555 = vunpack.c.l.b16 %v198
  %v556 = vunpack.c.l.b16 %v199
  %v557 = vunpack.c.l.b16 %v200
  %v558 = vunpack.c.l.b16 %v201
  %v559 = vunpack.c.l.b16 %v202
  %v560 = vunpack.c.l.b16 %v203
  %v561 = vunpack.c.l.b16 %v204
  %v562 = vunpack.c.l.b16 %v205
  %v563 = vunpack.c.l.b16 %v206
  %v564 = vunpack.c.l.b16 %v207
  %v565 = vunpack.c.l.b16 %v208
  %v566 = vunpack.c.l.b16 %v209
  %v567 = vunpack.c.l.b16 %v210
  %v568 = vunpack.c.l.b16 %v211
  %v569 = vunpack.c.l.b16 %v212
  %v570 = vunpack.c.l.b16 %v213
  %v571 = vunpack.c.l.b16 %v214
  %v572 = vunpack.c.l.b16 %v215
  %v573 = vunpack.c.l.b16 %v216
  %v574 = vpack.c.b16 %v423, %v422
  %v575 = vpack.c.b16 %v425, %v424
  %v576 = vpack.c.b16 %v427, %v426
  %v577 = vpack.c.b16 %v429, %v428
  %v578 = vpack.c.b16 %v431, %v430
  %v579 = vpack.c.b16 %v433, %v432
  %v580 = vpack.c.b16 %v435, %v434
  %v581 = vpack.c.b16 %v437, %v436
  %v582 = vpack.c.b16 %v439, %v438
  %v583 = vpack.c.b16 %v441, %v440
  %v584 = vpack.c.b16 %v443, %v442
  %v585 = vpack.c.b16 %v445, %v444
  %v586 = vpack.c.b16 %v447, %v446
  %v587 = vpack.c.b16 %v449, %v448
  %v588 = vpack.c.b16 %v451, %v450
  %v589 = vpack.c.b16 %v453, %v452
  %v590 = vpack.c.b16 %v455, %v454
  %v591 = vpack.c.b16 %v457, %v456
  %v592 = vpack.c.b16 %v459, %v458
  %v593 = vpack.c.b16 %v461, %v460
  %v594 = vpack.c.b16 %v463, %v462
  %v595 = vpack.c.b16 %v465, %v464
  %v596 = vpack.c.b16 %v467, %v466
  %v597 = vpack.c.b16 %v469, %v468
  %v598 = vpack.c.b16 %v471, %v470
  %v599 = vpack.c.b16 %v473, %v472
  %v600 = vpack.c.b16 %v475, %v474
  %v601 = vpack.c.b16 %v477, %v476
  %v602 = vpack.c.b16 %v479, %v478
  %v603 = vpack.c.b16 %v481, %v480
  %v604 = vpack.c.b16 %v483, %v482
  %v605 = vpack.c.b16 %v485, %v484
  %v606 = vpack.c.b16 %v487, %v486
  %v607 = vpack.c.b16 %v489, %v488
  %v608 = vpack.c.b16 %v491, %v490
  %v609 = vpack.c.b16 %v493, %v492
  %v610 = vpack.c.b16 %v495, %v494
  %v611 = vpack.c.b16 %v497, %v496
  %v612 = vpack.c.b16 %v499, %v498
  %v613 = vpack.c.b16 %v501, %v500
  %v614 = vpack.c.b16 %v503, %v502
  %v615 = vpack.c.b16 %v505, %v504
  %v616 = vpack.c.b16 %v507, %v506
  %v617 = vpack.c.b16 %v509, %v508
  %v618 = vpack.c.b16 %v511, %v510
  %v619 = vpack.c.b16 %v513, %v512
  %v620 = vpack.c.b16 %v515, %v514
  %v621 = vpack.c.b16 %v517, %v516
  %v622 = vpack.c.b16 %v519, %v518
  %v623 = vpack.c.b16 %v521, %v520
  %v624 = vpack.c.b16 %v523, %v522
  %v625 = vpack.c.b16 %v525, %v524
  %v626 = vpack.c.b16 %v527, %v526
  %v627 = vpack.c.b16 %v529, %v528
  %v628 = vpack.c.b16 %v531, %v530
  %v629 = vpack.c.b16 %v533, %v532
  %v630 = vpack.c.b16 %v535, %v534
  %v631 = vpack.c.b16 %v537, %v536
  %v632 = vpack.c.b16 %v539, %v538
  %v633 = vpack.c.b16 %v541, %v540
  %v634 = vpack.c.b16 %v543, %v542
  %v635 = vpack.c.b16 %v545, %v544
  %v636 = vpack.c.b16 %v547, %v546
  %v637 = vpack.c.b16 %v549, %v548
  %v638 = vpack.c.b16 %v551, %v550
  %v639 = vpack.c.b16 %v553, %v552
  %v640 = vpack.c.b16 %v555, %v554
  %v641 = vpack.c.b16 %v557, %v556
  %v642 = vpack.c.b16 %v559, %v558
  %v643 = vpack.c.b16 %v561, %v560
  %v644 = vpack.c.b16 %v563, %v562
  %v645 = vpack.c.b16 %v565, %v564
  %v646 = vpack.c.b16 %v567, %v566
  %v647 = vpack.c.b16 %v569, %v568
  %v648 = vpack.c.b16 %v571, %v570
  %v649 = vpack.c.b16 %v573, %v572
  %vm726 = vcmask 523264
  %v728 = vsel %vm726, %v260, 0
  %730 = vmatprep.subr.bf16.mxu0 0
  %731 = vmatpush1.bf16.msra.mxu0 %v574
  %732 = vmatprep.subr.bf16.mxu0 0
  %733 = vmatpush1.bf16.msra.mxu0 %v575
  %734 = vmatprep.subr.bf16.mxu0 0
  %735 = vmatpush1.bf16.msra.mxu0 %v576
  %736 = vmatprep.subr.bf16.mxu0 0
  %737 = vmatpush1.bf16.msra.mxu0 %v577
  %738 = vmatprep.subr.bf16.mxu0 0
  %739 = vmatpush1.bf16.msra.mxu0 %v578
  %740 = vmatprep.subr.bf16.mxu0 0
  %741 = vmatpush1.bf16.msra.mxu0 %v579
  %742 = vmatprep.subr.bf16.mxu0 0
  %743 = vmatpush1.bf16.msra.mxu0 %v580
  %744 = vmatprep.subr.bf16.mxu0 0
  %745 = vmatpush1.bf16.msra.mxu0 %v581
  %746 = vmatprep.subr.bf16.mxu0 0
  %747 = vmatpush1.bf16.msra.mxu0 %v582
  %748 = vmatprep.subr.bf16.mxu0 0
  %749 = vmatpush1.bf16.msra.mxu0 %v583
  %750 = vmatprep.subr.bf16.mxu0 0
  %751 = vmatpush1.bf16.msra.mxu0 %v584
  %752 = vmatprep.subr.bf16.mxu0 0
  %753 = vmatpush1.bf16.msra.mxu0 %v585
  %754 = vmatprep.subr.bf16.mxu0 0
  %755 = vmatpush1.bf16.msra.mxu0 %v586
  %756 = vmatprep.subr.bf16.mxu0 0
  %757 = vmatpush1.bf16.msra.mxu0 %v587
  %758 = vmatprep.subr.bf16.mxu0 0
  %759 = vmatpush1.bf16.msra.mxu0 %v588
  %760 = vmatprep.subr.bf16.mxu0 0
  %761 = vmatpush1.bf16.msra.mxu0 %v589
  %762 = vmatprep.mubr.bf16.mxu0 %v252
  %763 = vmatmul.mubr.bf16.gmra.mrb[0].mxu0 %v251
  %v764 = vpop.f32.mrb[0].mxu0
  %v765 = vadd.f32 %v220, %v764
  %v766 = vpop.f32.mrb[0].mxu0
  %v767 = vpop.f32.mrb[0].mxu0
  %v768 = vadd.f32 %v220, %v767
  %v769 = vpop.f32.mrb[0].mxu0
  %770 = vdwg.mxu0
  %771 = vmatprep.subr.bf16.mxu0 0
  %772 = vmatpush1.bf16.msra.mxu0 %v590
  %773 = vmatprep.subr.bf16.mxu0 0
  %774 = vmatpush1.bf16.msra.mxu0 %v591
  %775 = vmatprep.subr.bf16.mxu0 0
  %776 = vmatpush1.bf16.msra.mxu0 %v592
  %777 = vmatprep.subr.bf16.mxu0 0
  %778 = vmatpush1.bf16.msra.mxu0 %v593
  %779 = vmatprep.subr.bf16.mxu0 0
  %780 = vmatpush1.bf16.msra.mxu0 %v594
  %781 = vmatprep.subr.bf16.mxu0 0
  %782 = vmatpush1.bf16.msra.mxu0 %v595
  %783 = vmatprep.subr.bf16.mxu0 0
  %784 = vmatpush1.bf16.msra.mxu0 %v596
  %785 = vmatprep.subr.bf16.mxu0 0
  %786 = vmatpush1.bf16.msra.mxu0 %v597
  %787 = vmatprep.subr.bf16.mxu0 0
  %788 = vmatpush1.bf16.msra.mxu0 %v598
  %789 = vmatprep.subr.bf16.mxu0 0
  %790 = vmatpush1.bf16.msra.mxu0 %v599
  %791 = vmatprep.subr.bf16.mxu0 0
  %792 = vmatpush1.bf16.msra.mxu0 %v600
  %793 = vmatprep.subr.bf16.mxu0 0
  %794 = vmatpush1.bf16.msra.mxu0 %v601
  %795 = vmatprep.subr.bf16.mxu0 0
  %796 = vmatpush1.bf16.msra.mxu0 %v602
  %797 = vmatprep.subr.bf16.mxu0 0
  %798 = vmatpush1.bf16.msra.mxu0 %v603
  %799 = vmatprep.subr.bf16.mxu0 0
  %800 = vmatpush1.bf16.msra.mxu0 %v604
  %801 = vmatprep.subr.bf16.mxu0 0
  %802 = vmatpush1.bf16.msra.mxu0 %v605
  %803 = vmatprep.mubr.bf16.mxu0 %v254
  %804 = vmatmul.mubr.bf16.gmra.mrb[0].mxu0 %v253
  %v805 = vpop.f32.mrb[0].mxu0
  %v806 = vadd.f32 %v765, %v805
  %v807 = vpop.f32.mrb[0].mxu0
  %v808 = vpop.f32.mrb[0].mxu0
  %v809 = vadd.f32 %v768, %v808
  %v810 = vpop.f32.mrb[0].mxu0
  %811 = vdwg.mxu0
  %812 = vmatprep.subr.bf16.mxu0 0
  %813 = vmatpush1.bf16.msra.mxu0 %v606
  %814 = vmatprep.subr.bf16.mxu0 0
  %815 = vmatpush1.bf16.msra.mxu0 %v607
  %816 = vmatprep.subr.bf16.mxu0 0
  %817 = vmatpush1.bf16.msra.mxu0 %v608
  %818 = vmatprep.subr.bf16.mxu0 0
  %819 = vmatpush1.bf16.msra.mxu0 %v609
  %820 = vmatprep.subr.bf16.mxu0 0
  %821 = vmatpush1.bf16.msra.mxu0 %v610
  %822 = vmatprep.subr.bf16.mxu0 0
  %823 = vmatpush1.bf16.msra.mxu0 %v611
  %824 = vmatprep.subr.bf16.mxu0 0
  %825 = vmatpush1.bf16.msra.mxu0 %v612
  %826 = vmatprep.subr.bf16.mxu0 0
  %827 = vmatpush1.bf16.msra.mxu0 %v613
  %828 = vmatprep.subr.bf16.mxu0 0
  %829 = vmatpush1.bf16.msra.mxu0 %v614
  %830 = vmatprep.subr.bf16.mxu0 0
  %831 = vmatpush1.bf16.msra.mxu0 %v615
  %832 = vmatprep.subr.bf16.mxu0 0
  %833 = vmatpush1.bf16.msra.mxu0 %v616
  %834 = vmatprep.subr.bf16.mxu0 0
  %835 = vmatpush1.bf16.msra.mxu0 %v617
  %836 = vmatprep.subr.bf16.mxu0 0
  %837 = vmatpush1.bf16.msra.mxu0 %v618
  %838 = vmatprep.subr.bf16.mxu0 0
  %839 = vmatpush1.bf16.msra.mxu0 %v619
  %840 = vmatprep.subr.bf16.mxu0 0
  %841 = vmatpush1.bf16.msra.mxu0 %v620
  %842 = vmatprep.subr.bf16.mxu0 0
  %843 = vmatpush1.bf16.msra.mxu0 %v621
  %844 = vmatprep.mubr.bf16.mxu0 %v256
  %845 = vmatmul.mubr.bf16.gmra.mrb[0].mxu0 %v255
  %v846 = vpop.f32.mrb[0].mxu0
  %v847 = vadd.f32 %v806, %v846
  %v848 = vpop.f32.mrb[0].mxu0
  %v849 = vpop.f32.mrb[0].mxu0
  %v850 = vadd.f32 %v809, %v849
  %v851 = vpop.f32.mrb[0].mxu0
  %852 = vdwg.mxu0
  %853 = vmatprep.subr.bf16.mxu0 0
  %854 = vmatpush1.bf16.msra.mxu0 %v622
  %855 = vmatprep.subr.bf16.mxu0 0
  %856 = vmatpush1.bf16.msra.mxu0 %v623
  %857 = vmatprep.subr.bf16.mxu0 0
  %858 = vmatpush1.bf16.msra.mxu0 %v624
  %859 = vmatprep.subr.bf16.mxu0 0
  %860 = vmatpush1.bf16.msra.mxu0 %v625
  %861 = vmatprep.subr.bf16.mxu0 0
  %862 = vmatpush1.bf16.msra.mxu0 %v626
  %863 = vmatprep.subr.bf16.mxu0 0
  %864 = vmatpush1.bf16.msra.mxu0 %v627
  %865 = vmatprep.subr.bf16.mxu0 0
  %866 = vmatpush1.bf16.msra.mxu0 %v628
  %867 = vmatprep.subr.bf16.mxu0 0
  %868 = vmatpush1.bf16.msra.mxu0 %v629
  %869 = vmatprep.subr.bf16.mxu0 0
  %870 = vmatpush1.bf16.msra.mxu0 %v630
  %871 = vmatprep.subr.bf16.mxu0 0
  %872 = vmatpush1.bf16.msra.mxu0 %v631
  %873 = vmatprep.subr.bf16.mxu0 0
  %874 = vmatpush1.bf16.msra.mxu0 %v632
  %875 = vmatprep.subr.bf16.mxu0 0
  %876 = vmatpush1.bf16.msra.mxu0 %v633
  %877 = vmatprep.subr.bf16.mxu0 0
  %878 = vmatpush1.bf16.msra.mxu0 %v634
  %879 = vmatprep.subr.bf16.mxu0 0
  %880 = vmatpush1.bf16.msra.mxu0 %v635
  %881 = vmatprep.subr.bf16.mxu0 0
  %882 = vmatpush1.bf16.msra.mxu0 %v636
  %883 = vmatprep.subr.bf16.mxu0 0
  %884 = vmatpush1.bf16.msra.mxu0 %v637
  %885 = vmatprep.mubr.bf16.mxu0 %v258
  %886 = vmatmul.mubr.bf16.gmra.mrb[0].mxu0 %v257
  %v887 = vpop.f32.mrb[0].mxu0
  %v888 = vadd.f32 %v847, %v887
  %v889 = vpop.f32.mrb[0].mxu0
  %v890 = vpop.f32.mrb[0].mxu0
  %v891 = vadd.f32 %v850, %v890
  %v892 = vpop.f32.mrb[0].mxu0
  %893 = vdwg.mxu0
  %894 = vmatprep.subr.bf16.mxu0 0
  %895 = vmatpush1.bf16.msra.mxu0 %v638
  %896 = vmatprep.subr.bf16.mxu0 0
  %897 = vmatpush1.bf16.msra.mxu0 %v639
  %898 = vmatprep.subr.bf16.mxu0 0
  %899 = vmatpush1.bf16.msra.mxu0 %v640
  %900 = vmatprep.subr.bf16.mxu0 0
  %901 = vmatpush1.bf16.msra.mxu0 %v641
  %902 = vmatprep.subr.bf16.mxu0 0
  %903 = vmatpush1.bf16.msra.mxu0 %v642
  %904 = vmatprep.subr.bf16.mxu0 0
  %905 = vmatpush1.bf16.msra.mxu0 %v643
  %906 = vmatprep.subr.bf16.mxu0 0
  %907 = vmatpush1.bf16.msra.mxu0 %v644
  %908 = vmatprep.subr.bf16.mxu0 0
  %909 = vmatpush1.bf16.msra.mxu0 %v645
  %910 = vmatprep.subr.bf16.mxu0 0
  %911 = vmatpush1.bf16.msra.mxu0 %v646
  %912 = vmatprep.subr.bf16.mxu0 0
  %913 = vmatpush1.bf16.msra.mxu0 %v647
  %914 = vmatprep.subr.bf16.mxu0 0
  %915 = vmatpush1.bf16.msra.mxu0 %v648
  %916 = vmatprep.subr.bf16.mxu0 0
  %917 = vmatpush1.bf16.msra.mxu0 %v649
  %918 = vmatprep.subr.bf16.mxu0 0
  %919 = vmatpush1.bf16.msra.mxu0 0
  %920 = vmatprep.subr.bf16.mxu0 0
  %921 = vmatpush1.bf16.msra.mxu0 0
  %922 = vmatprep.subr.bf16.mxu0 0
  %923 = vmatpush1.bf16.msra.mxu0 0
  %924 = vmatprep.subr.bf16.mxu0 0
  %925 = vmatpush1.bf16.msra.mxu0 0
  %926 = vmatprep.mubr.bf16.mxu0 %v728
  %927 = vmatmul.mubr.bf16.gmra.mrb[0].mxu0 %v259
  %v928 = vpop.f32.mrb[0].mxu0
  %v929 = vadd.f32 %v888, %v928
  %v930 = vpop.f32.mrb[0].mxu0
  %v931 = vpop.f32.mrb[0].mxu0
  %v932 = vadd.f32 %v891, %v931
  %v933 = vpop.f32.mrb[0].mxu0
  %934 = vdwg.mxu0
  %v935 = vlaneseq
  %v936 = vshrl.u32 %v935, 7
  %v937 = vsub.s32 1, %v936
  %v938 = vrot.slane %v54, %v937
  %v939 = vmul.f32 %v929, %v938
  %v940 = vmul.f32 %v932, %v938
  %v941 = vlaneseq
  %v942 = vshrl.u32 %v941, 7
  %v943 = vsub.s32 2, %v942
  %v944 = vrot.slane %v54, %v943
  %v945 = vadd.f32 %v939, %v944
  %v946 = vadd.f32 %v940, %v944
  %vm947 = vcmask 15360
  %948 = vst.msk [vmem:[%s4] sm:$0xff] %vm947, %v945
  %949 = vst.msk [vmem:[%s4 + $0x8] sm:$0xff] %vm947, %v946
  // Predicated region
  $region14: #{single_window_disc_forward.9} parent=0 // pred_check
    _
  $region15: #{single_window_disc_forward.9} parent=0 // pred_check_branch
    %951 = sbr.rel (0) target = $region17
  $region16: #{single_window_disc_forward.9} parent=0 // pred_region
    _
  $region17: #{single_window_disc_forward.9} parent=0 // pred_fallthru
    _
  // Predicated region
  $region18: #{single_window_disc_forward.9} parent=0 // pred_check
    _
  $region19: #{single_window_disc_forward.9} parent=0 // pred_check_branch
    %953 = sbr.rel (0) target = $region21
  $region20: #{single_window_disc_forward.9} parent=0 // pred_region
    _
  $region21: #{single_window_disc_forward.9} parent=0 // pred_fallthru
    _

</llo_original>
